<compile_context>
chip_gen: v6e
topology: v6e:2x2x1
jax: 0.10.0
libtpu: 0.0.40
codegen_flags: <defaults>
</compile_context>

<pallas_src>
import functools
import math

import jax
import jax.numpy as jnp
from jax import lax
from jax.experimental import pallas as pl
from jax.experimental.pallas import tpu as pltpu

NEG_SLOPE = 0.01   # torch F.leaky_relu default
EPS = 1e-12        # torch F.normalize default eps


# ------------------------------ in-kernel helpers ------------------------------

def _bf16(x):
    return x.astype(jnp.bfloat16)


def _leaky(y):
    return jnp.where(y >= 0.0, y, NEG_SLOPE * y)


def _softmax_rows(y, exact=False):
    y = y - jnp.max(y, axis=1, keepdims=True)
    e = jnp.exp(y)
    s = jnp.sum(e, axis=1, keepdims=True)
    if exact:
        return e / s
    return e * pl.reciprocal(s, approx=True)


def _l2norm_rows(s):
    # F.normalize(p=2, dim=1): s / max(||s||, eps)
    nsq = jnp.sum(s * s, axis=1, keepdims=True)
    return s * lax.rsqrt(jnp.maximum(nsq, EPS * EPS))


def _attn(parts, bias):
    # softmax(leaky_relu(concat(parts) @ W + b), dim=1), then L2-normalize.
    # concat never materialized: concat([a,b]) @ W == a @ W_a + b @ W_b.
    y = bias
    for h, w in parts:
        y = y + jnp.dot(h, w, preferred_element_type=jnp.float32)
    return _l2norm_rows(_softmax_rows(_leaky(y)))


# ----------------------------------- kernels -----------------------------------

def ae_kernel(x_ref,
              we1, be1, we2, be2, we3, be3, wz, bz,
              wd1, bd1, wd2, bd2, wd3, bd3, wxb, bxb,
              wg0, clT_ref, csq_ref,
              xbar_ref, h1_ref, h2_ref, h3_ref, z_ref, s0_ref, q_ref, *, v):
    """AE (8 linears) + first GNN support s0 = x @ W0 + Student-t q, row-tiled."""
    x = x_ref[...]                                    # (TM, n_input) f32

    def lin(h, w_ref, b_ref, relu):
        y = jnp.dot(_bf16(h), w_ref[...], preferred_element_type=jnp.float32)
        y = y + b_ref[...]
        return jnp.maximum(y, 0.0) if relu else y

    h1 = lin(x, we1, be1, True)
    h2 = lin(h1, we2, be2, True)
    h3 = lin(h2, we3, be3, True)
    z = lin(h3, wz, bz, False)
    d1 = lin(z, wd1, bd1, True)
    d2 = lin(d1, wd2, bd2, True)
    d3 = lin(d2, wd3, bd3, True)
    xbar_ref[...] = lin(d3, wxb, bxb, False)

    h1_ref[...] = h1
    h2_ref[...] = h2
    h3_ref[...] = h3
    z_ref[...] = z

    # support for the first graph conv (bf16 MXU operands, f32 accumulation)
    s0_ref[...] = jnp.dot(_bf16(x), wg0[...],
                          preferred_element_type=jnp.float32).astype(jnp.bfloat16)

    # Student's t q — exact division; cluster pre-transposed, c_sq precomputed.
    cT = clT_ref[...]                                 # (n_z, K) f32
    z_sq = jnp.sum(z * z, axis=1, keepdims=True)      # (TM, 1)
    d = z_sq + csq_ref[...] - 2.0 * jnp.dot(z, cT, preferred_element_type=jnp.float32)
    d = jnp.maximum(d, 0.0)
    qv = 1.0 / (1.0 + d * (1.0 / v))
    exponent = (v + 1.0) / 2.0
    if exponent != 1.0:     # static check: v == 1 -> exponent 1 -> skip pow
        qv = qv ** exponent
    q_ref[...] = qv / jnp.sum(qv, axis=1, keepdims=True)


def fuse_step_kernel(adj_ref, sprev_ref, h_ref, wma, wmb, bm, wg,
                     zcur_ref, scur_ref):
    """z_k = relu(adj_tile @ s_{k-1}); 2-way attention fusion; s_k = f_k @ W_k."""
    zc = jnp.maximum(
        jnp.dot(adj_ref[...], sprev_ref[...], preferred_element_type=jnp.float32),
        0.0)
    h = h_ref[...]
    m = _attn([(h, wma[...]), (zc, wmb[...])], bm[...])      # cat order (h, z)
    f = m[:, 0:1] * zc + m[:, 1:2] * h                       # m11*z + m12*h
    zcur_ref[...] = zc
    scur_ref[...] = jnp.dot(_bf16(f), wg[...],
                            preferred_element_type=jnp.float32).astype(jnp.bfloat16)


def scale_fuse_kernel(adj_ref, s3_ref, z1_ref, z2_ref, z3_ref, z_ref,
                      wl1, wl2, wl3, wl4, wl5, bl,
                      wgz1, wgz2, wgz3, wgz4, wgz5,
                      sfin_ref):
    """z4 = relu(adj_tile @ s3); 5-way attention u; scale-wise fused support."""
    z4 = jnp.maximum(
        jnp.dot(adj_ref[...], s3_ref[...], preferred_element_type=jnp.float32),
        0.0)
    z1 = z1_ref[...]; z2 = z2_ref[...]; z3 = z3_ref[...]; z = z_ref[...]
    u = _attn([(z1, wl1[...]), (z2, wl2[...]), (z3, wl3[...]),
               (z4, wl4[...]), (z, wl5[...])], bl[...])
    # per-row attention scale AFTER the matmul (exact; diag scale commutes)
    s = (u[:, 0:1] * jnp.dot(_bf16(z1), wgz1[...], preferred_element_type=jnp.float32)
         + u[:, 1:2] * jnp.dot(_bf16(z2), wgz2[...], preferred_element_type=jnp.float32)
         + u[:, 2:3] * jnp.dot(_bf16(z3), wgz3[...], preferred_element_type=jnp.float32)
         + u[:, 3:4] * jnp.dot(_bf16(z4), wgz4[...], preferred_element_type=jnp.float32)
         + u[:, 4:5] * jnp.dot(_bf16(z), wgz5[...], preferred_element_type=jnp.float32))
    sfin_ref[...] = s.astype(jnp.bfloat16)


def predict_kernel(adj_ref, sfin_ref, net_ref, pred_ref):
    """net = adj_tile @ s_final (no relu); predict = exact softmax."""
    net = jnp.dot(adj_ref[...], sfin_ref[...], preferred_element_type=jnp.float32)
    net_ref[...] = net
    pred_ref[...] = _softmax_rows(net, exact=True)


# ------------------------------ parameter setup --------------------------------

def init_linear(key, n_in, n_out, w_dtype=jnp.float32):
    kw, kb = jax.random.split(key)
    scale = 1.0 / jnp.sqrt(jnp.float32(n_in))
    w = jax.random.uniform(kw, (n_in, n_out), jnp.float32, -scale, scale)
    b = jax.random.uniform(kb, (1, n_out), jnp.float32, -scale, scale)
    return w.astype(w_dtype), b          # bias stays f32 (added after f32 accum)


def _split_rows(w, sizes):
    parts, off = [], 0
    for s in sizes:
        parts.append(w[off:off + s])
        off += s
    return tuple(parts)


def init_split_linear(key, sizes, n_out):
    # nn.Linear over the concatenated input, stored pre-split by row block for
    # concat-free split-weight matmuls (tiny attention MLPs: keep f32).
    w, b = init_linear(key, sum(sizes), n_out, jnp.float32)
    return _split_rows(w, sizes) + (b,)


def init_gnn(key, n_in, n_out, w_dtype=jnp.bfloat16):
    # xavier_uniform_
    bound = jnp.sqrt(6.0 / jnp.float32(n_in + n_out))
    w = jax.random.uniform(key, (n_in, n_out), jnp.float32, -bound, bound)
    return w.astype(w_dtype)


def init_split_gnn(key, sizes, n_out, w_dtype=jnp.bfloat16):
    w = init_gnn(key, sum(sizes), n_out, jnp.float32)
    return tuple(p.astype(w_dtype) for p in _split_rows(w, sizes))


def init_params(key, dims):
    (n_enc_1, n_enc_2, n_enc_3, n_dec_1, n_dec_2, n_dec_3,
     n_input, n_z, n_clusters) = dims
    cat_sizes = (n_enc_1, n_enc_2, n_enc_3, n_z, n_z)     # "3020" in the original
    keys = jax.random.split(key, 18)
    p = {}
    # TODO(synk): the reference loads a pretrained AE state_dict via torch.load;
    # parameters are randomly initialized in-script instead.
    p["enc_1"] = init_linear(keys[0], n_input, n_enc_1, jnp.bfloat16)
    p["enc_2"] = init_linear(keys[1], n_enc_1, n_enc_2, jnp.bfloat16)
    p["enc_3"] = init_linear(keys[2], n_enc_2, n_enc_3, jnp.bfloat16)
    p["z_layer"] = init_linear(keys[3], n_enc_3, n_z, jnp.bfloat16)
    p["dec_1"] = init_linear(keys[4], n_z, n_dec_1, jnp.bfloat16)
    p["dec_2"] = init_linear(keys[5], n_dec_1, n_dec_2, jnp.bfloat16)
    p["dec_3"] = init_linear(keys[6], n_dec_2, n_dec_3, jnp.bfloat16)
    p["x_bar"] = init_linear(keys[7], n_dec_3, n_input, jnp.bfloat16)
    # GNN layers (bf16 weights, f32 accumulation in-kernel)
    p["agcn_0"] = init_gnn(keys[8], n_input, n_enc_1)
    p["agcn_1"] = init_gnn(keys[9], n_enc_1, n_enc_2)
    p["agcn_2"] = init_gnn(keys[10], n_enc_2, n_enc_3)
    p["agcn_3"] = init_gnn(keys[11], n_enc_3, n_z)
    p["agcn_z"] = init_split_gnn(keys[12], cat_sizes, n_clusters)
    # attention MLPs (f32, pre-split along the concat axis)
    p["mlp1"] = init_split_linear(keys[13], (n_enc_1, n_enc_1), 2)
    p["mlp2"] = init_split_linear(keys[14], (n_enc_2, n_enc_2), 2)
    p["mlp3"] = init_split_linear(keys[15], (n_enc_3, n_enc_3), 2)
    p["mlp"] = init_split_linear(keys[16], cat_sizes, 5)
    # cluster layer (xavier_normal_), stored pre-transposed + squared norms
    std = jnp.sqrt(2.0 / jnp.float32(n_clusters + n_z))
    c = std * jax.random.normal(keys[17], (n_clusters, n_z), jnp.float32)
    p["cluster_T"] = jnp.transpose(c)                                # (n_z, K)
    p["c_sq"] = jnp.transpose(jnp.sum(c * c, axis=1, keepdims=True))  # (1, K)
    return p


# ----------------------------------- wrapper ------------------------------------

def _pick_tm(n, cap=256):
    # largest divisor of n that is <= cap and a multiple of 16 (bf16 sublanes)
    for cand in range(min(cap, n), 0, -1):
        if n % cand == 0 and cand % 16 == 0:
            return cand
    return n


def _row_spec(tm, f):
    return pl.BlockSpec((tm, f), lambda i: (i, 0))


def _full_spec(shape):
    nd = len(shape)
    return pl.BlockSpec(shape, lambda i: (0,) * nd)


def _nbytes(shape, dtype):
    return math.prod(shape) * jnp.dtype(dtype).itemsize


def agcn_forward(p, x, adj, v=1.0, tm=None, vmem_cap_bytes=64 << 20):
    n, n_input = x.shape
    n_enc_1 = p["enc_1"][0].shape[1]
    n_enc_2 = p["enc_2"][0].shape[1]
    n_enc_3 = p["enc_3"][0].shape[1]
    n_z = p["z_layer"][0].shape[1]
    n_clusters = p["agcn_z"][0].shape[1]

    if tm is None:
        tm = _pick_tm(n)
    assert n % tm == 0, "node tile must divide N"
    grid = (n // tm,)

    adj_b = adj.astype(jnp.bfloat16)      # halves adj VMEM footprint + DMA bytes

    def call(kernel, inputs, in_specs, out_shape, out_specs, flops, transc):
        total = (sum(_nbytes(a.shape, a.dtype) for a in inputs)
                 + sum(_nbytes(s.shape, s.dtype) for s in out_shape))
        vmem = int(min(vmem_cap_bytes, max(8 << 20, 2 * total + (2 << 20))))
        fn = pl.pallas_call(
            kernel,
            out_shape=out_shape,
            grid=grid,
            in_specs=in_specs,
            out_specs=out_specs,
            compiler_params=pltpu.CompilerParams(
                dimension_semantics=("parallel",),
                vmem_limit_bytes=vmem),
            cost_estimate=pl.CostEstimate(
                flops=int(flops), transcendentals=int(transc),
                bytes_accessed=int(total)),
        )
        return fn(*inputs)

    # ---------------- Phase A: AE + first support + Student-t q ----------------
    ae_inputs = [x,
                 *p["enc_1"], *p["enc_2"], *p["enc_3"], *p["z_layer"],
                 *p["dec_1"], *p["dec_2"], *p["dec_3"], *p["x_bar"],
                 p["agcn_0"], p["cluster_T"], p["c_sq"]]
    ae_specs = [_row_spec(tm, n_input)] + [_full_spec(a.shape) for a in ae_inputs[1:]]
    ae_out_shape = (
        jax.ShapeDtypeStruct((n, n_input), jnp.float32),       # x_bar
        jax.ShapeDtypeStruct((n, n_enc_1), jnp.float32),       # h1
        jax.ShapeDtypeStruct((n, n_enc_2), jnp.float32),       # h2
        jax.ShapeDtypeStruct((n, n_enc_3), jnp.float32),       # h3
        jax.ShapeDtypeStruct((n, n_z), jnp.float32),           # z
        jax.ShapeDtypeStruct((n, n_enc_1), jnp.bfloat16),      # s0 = x @ W0
        jax.ShapeDtypeStruct((n, n_clusters), jnp.float32),    # q
    )
    ae_out_specs = tuple(_row_spec(tm, s.shape[1]) for s in ae_out_shape)
    ae_mats = [p["enc_1"][0], p["enc_2"][0], p["enc_3"][0], p["z_layer"][0],
               p["dec_1"][0], p["dec_2"][0], p["dec_3"][0], p["x_bar"][0],
               p["agcn_0"], p["cluster_T"]]
    ae_flops = 2 * n * sum(w.shape[0] * w.shape[1] for w in ae_mats)
    x_bar, h1, h2, h3, z, s0, q = call(
        functools.partial(ae_kernel, v=float(v)),
        ae_inputs, ae_specs, ae_out_shape, ae_out_specs, ae_flops, 0)

    # ------------- Phases B1-B3: graph conv + heterogeneity fusion -------------
    def fuse_step(s_prev, h, mlp_params, w_gnn):
        wma, wmb, bm = mlp_params
        f_prev = s_prev.shape[1]
        f_h = h.shape[1]
        f_next = w_gnn.shape[1]
        inputs = [adj_b, s_prev, h, wma, wmb, bm, w_gnn]
        in_specs = [_row_spec(tm, n),                 # adj row tile (TM, N)
                    _full_spec(s_prev.shape),         # full prev support, resident
                    _row_spec(tm, f_h),
                    _full_spec(wma.shape), _full_spec(wmb.shape),
                    _full_spec(bm.shape), _full_spec(w_gnn.shape)]
        out_shape = (jax.ShapeDtypeStruct((n, f_prev), jnp.float32),   # z_k
                     jax.ShapeDtypeStruct((n, f_next), jnp.bfloat16))  # s_k
        out_specs = (_row_spec(tm, f_prev), _row_spec(tm, f_next))
        flops = 2 * n * (n * f_prev + f_h * f_next + 4 * f_h)
        return call(fuse_step_kernel, inputs, in_specs, out_shape, out_specs,
                    flops, 2 * n)

    z1, s1 = fuse_step(s0, h1, p["mlp1"], p["agcn_1"])
    z2, s2 = fuse_step(s1, h2, p["mlp2"], p["agcn_2"])
    z3, s3 = fuse_step(s2, h3, p["mlp3"], p["agcn_3"])

    # ------------------ Phase C: z4 + scale-wise (AGCN-S) fusion ----------------
    wl1, wl2, wl3, wl4, wl5, bl = p["mlp"]
    wgz1, wgz2, wgz3, wgz4, wgz5 = p["agcn_z"]
    c_inputs = [adj_b, s3, z1, z2, z3, z,
                wl1, wl2, wl3, wl4, wl5, bl,
                wgz1, wgz2, wgz3, wgz4, wgz5]
    c_specs = ([_row_spec(tm, n), _full_spec(s3.shape),
                _row_spec(tm, n_enc_1), _row_spec(tm, n_enc_2),
                _row_spec(tm, n_enc_3), _row_spec(tm, n_z)]
               + [_full_spec(a.shape) for a in c_inputs[6:]])
    c_out_shape = (jax.ShapeDtypeStruct((n, n_clusters), jnp.bfloat16),)
    c_out_specs = (_row_spec(tm, n_clusters),)
    sum_w = n_enc_1 + n_enc_2 + n_enc_3 + 2 * n_z
    c_flops = 2 * n * (n * n_z + sum_w * (n_clusters + 5))
    (s_final,) = call(scale_fuse_kernel, c_inputs, c_specs,
                      c_out_shape, c_out_specs, c_flops, 5 * n)

    # --------------------- Phase D: final aggregation + softmax ----------------
    d_inputs = [adj_b, s_final]
    d_specs = [_row_spec(tm, n), _full_spec(s_final.shape)]
    d_out_shape = (jax.ShapeDtypeStruct((n, n_clusters), jnp.float32),   # net
                   jax.ShapeDtypeStruct((n, n_clusters), jnp.float32))   # predict
    d_out_specs = (_row_spec(tm, n_clusters), _row_spec(tm, n_clusters))
    net, predict = call(predict_kernel, d_inputs, d_specs, d_out_shape, d_out_specs,
                        2 * n * n * n_clusters, n * n_clusters)

    return x_bar, q, predict, z, net


# ------------------------------------- main -------------------------------------

if __name__ == "__main__":
    # small synthetic configuration (original: 500/500/2000/.../10)
    N = 512           # number of graph nodes (-> grid of 2 row tiles of 256)
    n_input = 48
    n_enc_1 = n_dec_3 = 32
    n_enc_2 = n_dec_2 = 32
    n_enc_3 = n_dec_1 = 64
    n_z = 16
    n_clusters = 8

    dims = (n_enc_1, n_enc_2, n_enc_3, n_dec_1, n_dec_2, n_dec_3,
            n_input, n_z, n_clusters)

    key = jax.random.PRNGKey(0)
    k_param, k_x, k_adj = jax.random.split(key, 3)
    params = init_params(k_param, dims)

    x = jax.random.normal(k_x, (N, n_input), jnp.float32)

    # symmetric, self-looped, row-normalized adjacency
    a = jax.random.uniform(k_adj, (N, N), jnp.float32)
    a = (a > 0.95).astype(jnp.float32)
    a = jnp.maximum(a, a.T) + jnp.eye(N, dtype=jnp.float32)
    adj = a / jnp.sum(a, axis=1, keepdims=True)

    outs = agcn_forward(params, x, adj, v=1.0)
    outs = jax.block_until_ready(outs)

    x_bar, q, predict, z, net_output = outs
    assert x_bar.shape == (N, n_input)
    assert q.shape == (N, n_clusters)
    assert predict.shape == (N, n_clusters)
    assert z.shape == (N, n_z)
    assert net_output.shape == (N, n_clusters)
    assert all(bool(jnp.isfinite(o).all()) for o in outs)

    print("KERNEL_OK")
</pallas_src>

<mosaic_0001>
module attributes {stable_mosaic.version = 11 : i64} {
  func.func @ae_kernel(%arg0: i32, %arg1: memref<256x48xf32, #tpu.memory_space<vmem>>, %arg2: memref<48x32xbf16, #tpu.memory_space<vmem>>, %arg3: memref<1x32xf32, #tpu.memory_space<vmem>>, %arg4: memref<32x32xbf16, #tpu.memory_space<vmem>>, %arg5: memref<1x32xf32, #tpu.memory_space<vmem>>, %arg6: memref<32x64xbf16, #tpu.memory_space<vmem>>, %arg7: memref<1x64xf32, #tpu.memory_space<vmem>>, %arg8: memref<64x16xbf16, #tpu.memory_space<vmem>>, %arg9: memref<1x16xf32, #tpu.memory_space<vmem>>, %arg10: memref<16x64xbf16, #tpu.memory_space<vmem>>, %arg11: memref<1x64xf32, #tpu.memory_space<vmem>>, %arg12: memref<64x32xbf16, #tpu.memory_space<vmem>>, %arg13: memref<1x32xf32, #tpu.memory_space<vmem>>, %arg14: memref<32x32xbf16, #tpu.memory_space<vmem>>, %arg15: memref<1x32xf32, #tpu.memory_space<vmem>>, %arg16: memref<32x48xbf16, #tpu.memory_space<vmem>>, %arg17: memref<1x48xf32, #tpu.memory_space<vmem>>, %arg18: memref<48x32xbf16, #tpu.memory_space<vmem>>, %arg19: memref<16x8xf32, #tpu.memory_space<vmem>>, %arg20: memref<1x8xf32, #tpu.memory_space<vmem>>, %arg21: memref<256x48xf32, #tpu.memory_space<vmem>>, %arg22: memref<256x32xf32, #tpu.memory_space<vmem>>, %arg23: memref<256x32xf32, #tpu.memory_space<vmem>>, %arg24: memref<256x64xf32, #tpu.memory_space<vmem>>, %arg25: memref<256x16xf32, #tpu.memory_space<vmem>>, %arg26: memref<256x32xbf16, #tpu.memory_space<vmem>>, %arg27: memref<256x8xf32, #tpu.memory_space<vmem>>) attributes {dimension_semantics = [#tpu.dimension_semantics<parallel>], iteration_bounds = array<i64: 2>, scalar_prefetch = 0 : i64, scratch_operands = 0 : i64, tpu.core_type = #tpu.core_type<tc>, window_params = [{transform_indices = @transform_0, window_bounds = array<i64: 256, 48>}, {pipeline_mode = #tpu.pipeline_mode<synchronous>, transform_indices = @transform_1, window_bounds = array<i64: 48, 32>}, {pipeline_mode = #tpu.pipeline_mode<synchronous>, transform_indices = @transform_2, window_bounds = array<i64: 1, 32>}, {pipeline_mode = #tpu.pipeline_mode<synchronous>, transform_indices = @transform_3, window_bounds = array<i64: 32, 32>}, {pipeline_mode = #tpu.pipeline_mode<synchronous>, transform_indices = @transform_4, window_bounds = array<i64: 1, 32>}, {pipeline_mode = #tpu.pipeline_mode<synchronous>, transform_indices = @transform_5, window_bounds = array<i64: 32, 64>}, {pipeline_mode = #tpu.pipeline_mode<synchronous>, transform_indices = @transform_6, window_bounds = array<i64: 1, 64>}, {pipeline_mode = #tpu.pipeline_mode<synchronous>, transform_indices = @transform_7, window_bounds = array<i64: 64, 16>}, {pipeline_mode = #tpu.pipeline_mode<synchronous>, transform_indices = @transform_8, window_bounds = array<i64: 1, 16>}, {pipeline_mode = #tpu.pipeline_mode<synchronous>, transform_indices = @transform_9, window_bounds = array<i64: 16, 64>}, {pipeline_mode = #tpu.pipeline_mode<synchronous>, transform_indices = @transform_10, window_bounds = array<i64: 1, 64>}, {pipeline_mode = #tpu.pipeline_mode<synchronous>, transform_indices = @transform_11, window_bounds = array<i64: 64, 32>}, {pipeline_mode = #tpu.pipeline_mode<synchronous>, transform_indices = @transform_12, window_bounds = array<i64: 1, 32>}, {pipeline_mode = #tpu.pipeline_mode<synchronous>, transform_indices = @transform_13, window_bounds = array<i64: 32, 32>}, {pipeline_mode = #tpu.pipeline_mode<synchronous>, transform_indices = @transform_14, window_bounds = array<i64: 1, 32>}, {pipeline_mode = #tpu.pipeline_mode<synchronous>, transform_indices = @transform_15, window_bounds = array<i64: 32, 48>}, {pipeline_mode = #tpu.pipeline_mode<synchronous>, transform_indices = @transform_16, window_bounds = array<i64: 1, 48>}, {pipeline_mode = #tpu.pipeline_mode<synchronous>, transform_indices = @transform_17, window_bounds = array<i64: 48, 32>}, {pipeline_mode = #tpu.pipeline_mode<synchronous>, transform_indices = @transform_18, window_bounds = array<i64: 16, 8>}, {pipeline_mode = #tpu.pipeline_mode<synchronous>, transform_indices = @transform_19, window_bounds = array<i64: 1, 8>}, {transform_indices = @transform_20, window_bounds = array<i64: 256, 48>}, {transform_indices = @transform_21, window_bounds = array<i64: 256, 32>}, {transform_indices = @transform_22, window_bounds = array<i64: 256, 32>}, {transform_indices = @transform_23, window_bounds = array<i64: 256, 64>}, {transform_indices = @transform_24, window_bounds = array<i64: 256, 16>}, {transform_indices = @transform_25, window_bounds = array<i64: 256, 32>}, {transform_indices = @transform_26, window_bounds = array<i64: 256, 8>}]} {
    %c0 = arith.constant 0 : index
    %c0_0 = arith.constant 0 : index
    %0 = vector.load %arg1[%c0, %c0_0] : memref<256x48xf32, #tpu.memory_space<vmem>>, vector<256x48xf32>
    %1 = arith.truncf %0 : vector<256x48xf32> to vector<256x48xbf16>
    %c0_1 = arith.constant 0 : index
    %c0_2 = arith.constant 0 : index
    %2 = vector.load %arg2[%c0_1, %c0_2] : memref<48x32xbf16, #tpu.memory_space<vmem>>, vector<48x32xbf16>
    %cst = arith.constant dense<0.000000e+00> : vector<256x32xf32>
    %3 = tpu.matmul %1, %2, %cst {dimension_numbers = #tpu.dot_dimension_numbers<[1], [0], [0], [1], [0, 0, 1, 1], [], []>} : vector<256x48xbf16>, vector<48x32xbf16>, vector<256x32xf32> -> vector<256x32xf32>
    %c0_3 = arith.constant 0 : index
    %c0_4 = arith.constant 0 : index
    %4 = vector.load %arg3[%c0_3, %c0_4] : memref<1x32xf32, #tpu.memory_space<vmem>>, vector<1x32xf32>
    %5 = vector.broadcast %4 : vector<1x32xf32> to vector<256x32xf32>
    %6 = arith.addf %3, %5 : vector<256x32xf32>
    %cst_5 = arith.constant 0.000000e+00 : f32
    %7 = vector.broadcast %cst_5 : f32 to vector<256x32xf32>
    %8 = arith.maximumf %6, %7 : vector<256x32xf32>
    %9 = arith.truncf %8 : vector<256x32xf32> to vector<256x32xbf16>
    %c0_6 = arith.constant 0 : index
    %c0_7 = arith.constant 0 : index
    %10 = vector.load %arg4[%c0_6, %c0_7] : memref<32x32xbf16, #tpu.memory_space<vmem>>, vector<32x32xbf16>
    %cst_8 = arith.constant dense<0.000000e+00> : vector<256x32xf32>
    %11 = tpu.matmul %9, %10, %cst_8 {dimension_numbers = #tpu.dot_dimension_numbers<[1], [0], [0], [1], [0, 0, 1, 1], [], []>} : vector<256x32xbf16>, vector<32x32xbf16>, vector<256x32xf32> -> vector<256x32xf32>
    %c0_9 = arith.constant 0 : index
    %c0_10 = arith.constant 0 : index
    %12 = vector.load %arg5[%c0_9, %c0_10] : memref<1x32xf32, #tpu.memory_space<vmem>>, vector<1x32xf32>
    %13 = vector.broadcast %12 : vector<1x32xf32> to vector<256x32xf32>
    %14 = arith.addf %11, %13 : vector<256x32xf32>
    %cst_11 = arith.constant 0.000000e+00 : f32
    %15 = vector.broadcast %cst_11 : f32 to vector<256x32xf32>
    %16 = arith.maximumf %14, %15 : vector<256x32xf32>
    %17 = arith.truncf %16 : vector<256x32xf32> to vector<256x32xbf16>
    %c0_12 = arith.constant 0 : index
    %c0_13 = arith.constant 0 : index
    %18 = vector.load %arg6[%c0_12, %c0_13] : memref<32x64xbf16, #tpu.memory_space<vmem>>, vector<32x64xbf16>
    %cst_14 = arith.constant dense<0.000000e+00> : vector<256x64xf32>
    %19 = tpu.matmul %17, %18, %cst_14 {dimension_numbers = #tpu.dot_dimension_numbers<[1], [0], [0], [1], [0, 0, 1, 1], [], []>} : vector<256x32xbf16>, vector<32x64xbf16>, vector<256x64xf32> -> vector<256x64xf32>
    %c0_15 = arith.constant 0 : index
    %c0_16 = arith.constant 0 : index
    %20 = vector.load %arg7[%c0_15, %c0_16] : memref<1x64xf32, #tpu.memory_space<vmem>>, vector<1x64xf32>
    %21 = vector.broadcast %20 : vector<1x64xf32> to vector<256x64xf32>
    %22 = arith.addf %19, %21 : vector<256x64xf32>
    %cst_17 = arith.constant 0.000000e+00 : f32
    %23 = vector.broadcast %cst_17 : f32 to vector<256x64xf32>
    %24 = arith.maximumf %22, %23 : vector<256x64xf32>
    %25 = arith.truncf %24 : vector<256x64xf32> to vector<256x64xbf16>
    %c0_18 = arith.constant 0 : index
    %c0_19 = arith.constant 0 : index
    %26 = vector.load %arg8[%c0_18, %c0_19] : memref<64x16xbf16, #tpu.memory_space<vmem>>, vector<64x16xbf16>
    %cst_20 = arith.constant dense<0.000000e+00> : vector<256x16xf32>
    %27 = tpu.matmul %25, %26, %cst_20 {dimension_numbers = #tpu.dot_dimension_numbers<[1], [0], [0], [1], [0, 0, 1, 1], [], []>} : vector<256x64xbf16>, vector<64x16xbf16>, vector<256x16xf32> -> vector<256x16xf32>
    %c0_21 = arith.constant 0 : index
    %c0_22 = arith.constant 0 : index
    %28 = vector.load %arg9[%c0_21, %c0_22] : memref<1x16xf32, #tpu.memory_space<vmem>>, vector<1x16xf32>
    %29 = vector.broadcast %28 : vector<1x16xf32> to vector<256x16xf32>
    %30 = arith.addf %27, %29 : vector<256x16xf32>
    %31 = arith.truncf %30 : vector<256x16xf32> to vector<256x16xbf16>
    %c0_23 = arith.constant 0 : index
    %c0_24 = arith.constant 0 : index
    %32 = vector.load %arg10[%c0_23, %c0_24] : memref<16x64xbf16, #tpu.memory_space<vmem>>, vector<16x64xbf16>
    %cst_25 = arith.constant dense<0.000000e+00> : vector<256x64xf32>
    %33 = tpu.matmul %31, %32, %cst_25 {dimension_numbers = #tpu.dot_dimension_numbers<[1], [0], [0], [1], [0, 0, 1, 1], [], []>} : vector<256x16xbf16>, vector<16x64xbf16>, vector<256x64xf32> -> vector<256x64xf32>
    %c0_26 = arith.constant 0 : index
    %c0_27 = arith.constant 0 : index
    %34 = vector.load %arg11[%c0_26, %c0_27] : memref<1x64xf32, #tpu.memory_space<vmem>>, vector<1x64xf32>
    %35 = vector.broadcast %34 : vector<1x64xf32> to vector<256x64xf32>
    %36 = arith.addf %33, %35 : vector<256x64xf32>
    %cst_28 = arith.constant 0.000000e+00 : f32
    %37 = vector.broadcast %cst_28 : f32 to vector<256x64xf32>
    %38 = arith.maximumf %36, %37 : vector<256x64xf32>
    %39 = arith.truncf %38 : vector<256x64xf32> to vector<256x64xbf16>
    %c0_29 = arith.constant 0 : index
    %c0_30 = arith.constant 0 : index
    %40 = vector.load %arg12[%c0_29, %c0_30] : memref<64x32xbf16, #tpu.memory_space<vmem>>, vector<64x32xbf16>
    %cst_31 = arith.constant dense<0.000000e+00> : vector<256x32xf32>
    %41 = tpu.matmul %39, %40, %cst_31 {dimension_numbers = #tpu.dot_dimension_numbers<[1], [0], [0], [1], [0, 0, 1, 1], [], []>} : vector<256x64xbf16>, vector<64x32xbf16>, vector<256x32xf32> -> vector<256x32xf32>
    %c0_32 = arith.constant 0 : index
    %c0_33 = arith.constant 0 : index
    %42 = vector.load %arg13[%c0_32, %c0_33] : memref<1x32xf32, #tpu.memory_space<vmem>>, vector<1x32xf32>
    %43 = vector.broadcast %42 : vector<1x32xf32> to vector<256x32xf32>
    %44 = arith.addf %41, %43 : vector<256x32xf32>
    %cst_34 = arith.constant 0.000000e+00 : f32
    %45 = vector.broadcast %cst_34 : f32 to vector<256x32xf32>
    %46 = arith.maximumf %44, %45 : vector<256x32xf32>
    %47 = arith.truncf %46 : vector<256x32xf32> to vector<256x32xbf16>
    %c0_35 = arith.constant 0 : index
    %c0_36 = arith.constant 0 : index
    %48 = vector.load %arg14[%c0_35, %c0_36] : memref<32x32xbf16, #tpu.memory_space<vmem>>, vector<32x32xbf16>
    %cst_37 = arith.constant dense<0.000000e+00> : vector<256x32xf32>
    %49 = tpu.matmul %47, %48, %cst_37 {dimension_numbers = #tpu.dot_dimension_numbers<[1], [0], [0], [1], [0, 0, 1, 1], [], []>} : vector<256x32xbf16>, vector<32x32xbf16>, vector<256x32xf32> -> vector<256x32xf32>
    %c0_38 = arith.constant 0 : index
    %c0_39 = arith.constant 0 : index
    %50 = vector.load %arg15[%c0_38, %c0_39] : memref<1x32xf32, #tpu.memory_space<vmem>>, vector<1x32xf32>
    %51 = vector.broadcast %50 : vector<1x32xf32> to vector<256x32xf32>
    %52 = arith.addf %49, %51 : vector<256x32xf32>
    %cst_40 = arith.constant 0.000000e+00 : f32
    %53 = vector.broadcast %cst_40 : f32 to vector<256x32xf32>
    %54 = arith.maximumf %52, %53 : vector<256x32xf32>
    %55 = arith.truncf %54 : vector<256x32xf32> to vector<256x32xbf16>
    %c0_41 = arith.constant 0 : index
    %c0_42 = arith.constant 0 : index
    %56 = vector.load %arg16[%c0_41, %c0_42] : memref<32x48xbf16, #tpu.memory_space<vmem>>, vector<32x48xbf16>
    %cst_43 = arith.constant dense<0.000000e+00> : vector<256x48xf32>
    %57 = tpu.matmul %55, %56, %cst_43 {dimension_numbers = #tpu.dot_dimension_numbers<[1], [0], [0], [1], [0, 0, 1, 1], [], []>} : vector<256x32xbf16>, vector<32x48xbf16>, vector<256x48xf32> -> vector<256x48xf32>
    %c0_44 = arith.constant 0 : index
    %c0_45 = arith.constant 0 : index
    %58 = vector.load %arg17[%c0_44, %c0_45] : memref<1x48xf32, #tpu.memory_space<vmem>>, vector<1x48xf32>
    %59 = vector.broadcast %58 : vector<1x48xf32> to vector<256x48xf32>
    %60 = arith.addf %57, %59 : vector<256x48xf32>
    %c0_46 = arith.constant 0 : index
    %c0_47 = arith.constant 0 : index
    %61 = vector.load %arg21[%c0_46, %c0_47] : memref<256x48xf32, #tpu.memory_space<vmem>>, vector<256x48xf32>
    tpu.vector_store %arg21[%c0_46, %c0_47], %60 {strides = array<i32>} : memref<256x48xf32, #tpu.memory_space<vmem>>, vector<256x48xf32>,
    %c0_48 = arith.constant 0 : index
    %c0_49 = arith.constant 0 : index
    %62 = vector.load %arg22[%c0_48, %c0_49] : memref<256x32xf32, #tpu.memory_space<vmem>>, vector<256x32xf32>
    tpu.vector_store %arg22[%c0_48, %c0_49], %8 {strides = array<i32>} : memref<256x32xf32, #tpu.memory_space<vmem>>, vector<256x32xf32>,
    %c0_50 = arith.constant 0 : index
    %c0_51 = arith.constant 0 : index
    %63 = vector.load %arg23[%c0_50, %c0_51] : memref<256x32xf32, #tpu.memory_space<vmem>>, vector<256x32xf32>
    tpu.vector_store %arg23[%c0_50, %c0_51], %16 {strides = array<i32>} : memref<256x32xf32, #tpu.memory_space<vmem>>, vector<256x32xf32>,
    %c0_52 = arith.constant 0 : index
    %c0_53 = arith.constant 0 : index
    %64 = vector.load %arg24[%c0_52, %c0_53] : memref<256x64xf32, #tpu.memory_space<vmem>>, vector<256x64xf32>
    tpu.vector_store %arg24[%c0_52, %c0_53], %24 {strides = array<i32>} : memref<256x64xf32, #tpu.memory_space<vmem>>, vector<256x64xf32>,
    %c0_54 = arith.constant 0 : index
    %c0_55 = arith.constant 0 : index
    %65 = vector.load %arg25[%c0_54, %c0_55] : memref<256x16xf32, #tpu.memory_space<vmem>>, vector<256x16xf32>
    tpu.vector_store %arg25[%c0_54, %c0_55], %30 {strides = array<i32>} : memref<256x16xf32, #tpu.memory_space<vmem>>, vector<256x16xf32>,
    %66 = arith.truncf %0 : vector<256x48xf32> to vector<256x48xbf16>
    %c0_56 = arith.constant 0 : index
    %c0_57 = arith.constant 0 : index
    %67 = vector.load %arg18[%c0_56, %c0_57] : memref<48x32xbf16, #tpu.memory_space<vmem>>, vector<48x32xbf16>
    %cst_58 = arith.constant dense<0.000000e+00> : vector<256x32xf32>
    %68 = tpu.matmul %66, %67, %cst_58 {dimension_numbers = #tpu.dot_dimension_numbers<[1], [0], [0], [1], [0, 0, 1, 1], [], []>} : vector<256x48xbf16>, vector<48x32xbf16>, vector<256x32xf32> -> vector<256x32xf32>
    %69 = arith.truncf %68 : vector<256x32xf32> to vector<256x32xbf16>
    %c0_59 = arith.constant 0 : index
    %c0_60 = arith.constant 0 : index
    %70 = vector.load %arg26[%c0_59, %c0_60] : memref<256x32xbf16, #tpu.memory_space<vmem>>, vector<256x32xbf16>
    tpu.vector_store %arg26[%c0_59, %c0_60], %69 {strides = array<i32>} : memref<256x32xbf16, #tpu.memory_space<vmem>>, vector<256x32xbf16>,
    %c0_61 = arith.constant 0 : index
    %c0_62 = arith.constant 0 : index
    %71 = vector.load %arg19[%c0_61, %c0_62] : memref<16x8xf32, #tpu.memory_space<vmem>>, vector<16x8xf32>
    %72 = arith.mulf %30, %30 : vector<256x16xf32>
    %cst_63 = arith.constant dense<0.000000e+00> : vector<256xf32>
    %73 = vector.multi_reduction <add>, %72, %cst_63 [1] : vector<256x16xf32> to vector<256xf32>
    %74 = vector.shape_cast %73 : vector<256xf32> to vector<256x1xf32>
    %c0_64 = arith.constant 0 : index
    %c0_65 = arith.constant 0 : index
    %75 = vector.load %arg20[%c0_64, %c0_65] : memref<1x8xf32, #tpu.memory_space<vmem>>, vector<1x8xf32>
    %76 = vector.broadcast %74 : vector<256x1xf32> to vector<256x8xf32>
    %77 = vector.broadcast %75 : vector<1x8xf32> to vector<256x8xf32>
    %78 = arith.addf %76, %77 : vector<256x8xf32>
    %cst_66 = arith.constant dense<0.000000e+00> : vector<256x8xf32>
    %79 = tpu.matmul %30, %71, %cst_66 {dimension_numbers = #tpu.dot_dimension_numbers<[1], [0], [0], [1], [0, 0, 1, 1], [], []>} : vector<256x16xf32>, vector<16x8xf32>, vector<256x8xf32> -> vector<256x8xf32>
    %cst_67 = arith.constant 2.000000e+00 : f32
    %80 = vector.broadcast %cst_67 : f32 to vector<256x8xf32>
    %81 = arith.mulf %80, %79 : vector<256x8xf32>
    %82 = arith.subf %78, %81 : vector<256x8xf32>
    %cst_68 = arith.constant 0.000000e+00 : f32
    %83 = vector.broadcast %cst_68 : f32 to vector<256x8xf32>
    %84 = arith.maximumf %82, %83 : vector<256x8xf32>
    %cst_69 = arith.constant 1.000000e+00 : f32
    %85 = vector.broadcast %cst_69 : f32 to vector<256x8xf32>
    %86 = arith.mulf %84, %85 : vector<256x8xf32>
    %cst_70 = arith.constant 1.000000e+00 : f32
    %87 = vector.broadcast %cst_70 : f32 to vector<256x8xf32>
    %88 = arith.addf %87, %86 : vector<256x8xf32>
    %cst_71 = arith.constant 1.000000e+00 : f32
    %89 = vector.broadcast %cst_71 : f32 to vector<256x8xf32>
    %90 = arith.divf %89, %88 : vector<256x8xf32>
    %cst_72 = arith.constant dense<0.000000e+00> : vector<256xf32>
    %91 = vector.multi_reduction <add>, %90, %cst_72 [1] : vector<256x8xf32> to vector<256xf32>
    %92 = vector.shape_cast %91 : vector<256xf32> to vector<256x1xf32>
    %93 = vector.broadcast %92 : vector<256x1xf32> to vector<256x8xf32>
    %94 = arith.divf %90, %93 : vector<256x8xf32>
    %c0_73 = arith.constant 0 : index
    %c0_74 = arith.constant 0 : index
    %95 = vector.load %arg27[%c0_73, %c0_74] : memref<256x8xf32, #tpu.memory_space<vmem>>, vector<256x8xf32>
    tpu.vector_store %arg27[%c0_73, %c0_74], %94 {strides = array<i32>} : memref<256x8xf32, #tpu.memory_space<vmem>>, vector<256x8xf32>,
    return
  }
  func.func @transform_0(%arg0: i32) -> (i32, i32) {
    %c0_i32 = arith.constant 0 : i32
    %c0_i32_0 = arith.constant 0 : i32
    return %arg0, %c0_i32 : i32, i32
  }
  func.func @transform_1(%arg0: i32) -> (i32, i32) {
    %c0_i32 = arith.constant 0 : i32
    %c0_i32_0 = arith.constant 0 : i32
    %c0_i32_1 = arith.constant 0 : i32
    return %c0_i32, %c0_i32_0 : i32, i32
  }
  func.func @transform_2(%arg0: i32) -> (i32, i32) {
    %c0_i32 = arith.constant 0 : i32
    %c0_i32_0 = arith.constant 0 : i32
    %c0_i32_1 = arith.constant 0 : i32
    return %c0_i32, %c0_i32_0 : i32, i32
  }
  func.func @transform_3(%arg0: i32) -> (i32, i32) {
    %c0_i32 = arith.constant 0 : i32
    %c0_i32_0 = arith.constant 0 : i32
    %c0_i32_1 = arith.constant 0 : i32
    return %c0_i32, %c0_i32_0 : i32, i32
  }
  func.func @transform_4(%arg0: i32) -> (i32, i32) {
    %c0_i32 = arith.constant 0 : i32
    %c0_i32_0 = arith.constant 0 : i32
    %c0_i32_1 = arith.constant 0 : i32
    return %c0_i32, %c0_i32_0 : i32, i32
  }
  func.func @transform_5(%arg0: i32) -> (i32, i32) {
    %c0_i32 = arith.constant 0 : i32
    %c0_i32_0 = arith.constant 0 : i32
    %c0_i32_1 = arith.constant 0 : i32
    return %c0_i32, %c0_i32_0 : i32, i32
  }
  func.func @transform_6(%arg0: i32) -> (i32, i32) {
    %c0_i32 = arith.constant 0 : i32
    %c0_i32_0 = arith.constant 0 : i32
    %c0_i32_1 = arith.constant 0 : i32
    return %c0_i32, %c0_i32_0 : i32, i32
  }
  func.func @transform_7(%arg0: i32) -> (i32, i32) {
    %c0_i32 = arith.constant 0 : i32
    %c0_i32_0 = arith.constant 0 : i32
    %c0_i32_1 = arith.constant 0 : i32
    return %c0_i32, %c0_i32_0 : i32, i32
  }
  func.func @transform_8(%arg0: i32) -> (i32, i32) {
    %c0_i32 = arith.constant 0 : i32
    %c0_i32_0 = arith.constant 0 : i32
    %c0_i32_1 = arith.constant 0 : i32
    return %c0_i32, %c0_i32_0 : i32, i32
  }
  func.func @transform_9(%arg0: i32) -> (i32, i32) {
    %c0_i32 = arith.constant 0 : i32
    %c0_i32_0 = arith.constant 0 : i32
    %c0_i32_1 = arith.constant 0 : i32
    return %c0_i32, %c0_i32_0 : i32, i32
  }
  func.func @transform_10(%arg0: i32) -> (i32, i32) {
    %c0_i32 = arith.constant 0 : i32
    %c0_i32_0 = arith.constant 0 : i32
    %c0_i32_1 = arith.constant 0 : i32
    return %c0_i32, %c0_i32_0 : i32, i32
  }
  func.func @transform_11(%arg0: i32) -> (i32, i32) {
    %c0_i32 = arith.constant 0 : i32
    %c0_i32_0 = arith.constant 0 : i32
    %c0_i32_1 = arith.constant 0 : i32
    return %c0_i32, %c0_i32_0 : i32, i32
  }
  func.func @transform_12(%arg0: i32) -> (i32, i32) {
    %c0_i32 = arith.constant 0 : i32
    %c0_i32_0 = arith.constant 0 : i32
    %c0_i32_1 = arith.constant 0 : i32
    return %c0_i32, %c0_i32_0 : i32, i32
  }
  func.func @transform_13(%arg0: i32) -> (i32, i32) {
    %c0_i32 = arith.constant 0 : i32
    %c0_i32_0 = arith.constant 0 : i32
    %c0_i32_1 = arith.constant 0 : i32
    return %c0_i32, %c0_i32_0 : i32, i32
  }
  func.func @transform_14(%arg0: i32) -> (i32, i32) {
    %c0_i32 = arith.constant 0 : i32
    %c0_i32_0 = arith.constant 0 : i32
    %c0_i32_1 = arith.constant 0 : i32
    return %c0_i32, %c0_i32_0 : i32, i32
  }
  func.func @transform_15(%arg0: i32) -> (i32, i32) {
    %c0_i32 = arith.constant 0 : i32
    %c0_i32_0 = arith.constant 0 : i32
    %c0_i32_1 = arith.constant 0 : i32
    return %c0_i32, %c0_i32_0 : i32, i32
  }
  func.func @transform_16(%arg0: i32) -> (i32, i32) {
    %c0_i32 = arith.constant 0 : i32
    %c0_i32_0 = arith.constant 0 : i32
    %c0_i32_1 = arith.constant 0 : i32
    return %c0_i32, %c0_i32_0 : i32, i32
  }
  func.func @transform_17(%arg0: i32) -> (i32, i32) {
    %c0_i32 = arith.constant 0 : i32
    %c0_i32_0 = arith.constant 0 : i32
    %c0_i32_1 = arith.constant 0 : i32
    return %c0_i32, %c0_i32_0 : i32, i32
  }
  func.func @transform_18(%arg0: i32) -> (i32, i32) {
    %c0_i32 = arith.constant 0 : i32
    %c0_i32_0 = arith.constant 0 : i32
    %c0_i32_1 = arith.constant 0 : i32
    return %c0_i32, %c0_i32_0 : i32, i32
  }
  func.func @transform_19(%arg0: i32) -> (i32, i32) {
    %c0_i32 = arith.constant 0 : i32
    %c0_i32_0 = arith.constant 0 : i32
    %c0_i32_1 = arith.constant 0 : i32
    return %c0_i32, %c0_i32_0 : i32, i32
  }
  func.func @transform_20(%arg0: i32) -> (i32, i32) {
    %c0_i32 = arith.constant 0 : i32
    %c0_i32_0 = arith.constant 0 : i32
    return %arg0, %c0_i32 : i32, i32
  }
  func.func @transform_21(%arg0: i32) -> (i32, i32) {
    %c0_i32 = arith.constant 0 : i32
    %c0_i32_0 = arith.constant 0 : i32
    return %arg0, %c0_i32 : i32, i32
  }
  func.func @transform_22(%arg0: i32) -> (i32, i32) {
    %c0_i32 = arith.constant 0 : i32
    %c0_i32_0 = arith.constant 0 : i32
    return %arg0, %c0_i32 : i32, i32
  }
  func.func @transform_23(%arg0: i32) -> (i32, i32) {
    %c0_i32 = arith.constant 0 : i32
    %c0_i32_0 = arith.constant 0 : i32
    return %arg0, %c0_i32 : i32, i32
  }
  func.func @transform_24(%arg0: i32) -> (i32, i32) {
    %c0_i32 = arith.constant 0 : i32
    %c0_i32_0 = arith.constant 0 : i32
    return %arg0, %c0_i32 : i32, i32
  }
  func.func @transform_25(%arg0: i32) -> (i32, i32) {
    %c0_i32 = arith.constant 0 : i32
    %c0_i32_0 = arith.constant 0 : i32
    return %arg0, %c0_i32 : i32, i32
  }
  func.func @transform_26(%arg0: i32) -> (i32, i32) {
    %c0_i32 = arith.constant 0 : i32
    %c0_i32_0 = arith.constant 0 : i32
    return %arg0, %c0_i32 : i32, i32
  }
}

</mosaic_0001>

<llo_original>
// kernel: tpu_custom_call.1
$region0: #{tpu_custom_call.1}
  #allocation0 [shape = 'u32[]', space=smem, size = 0x4, offset = 0x4, fixed_abs, tag = 'smem constant byte address 0x4 - core index']
  #allocation1 [shape = 'u32[144,128]{1,0:T(1,128)}', space=vmem, size = 0x12000, scoped, tag = 'internal scratch']
  %s0 = inlined_call_operand.vmem [shape: f32[512,48], index: 0, kind: input, shape index: {}]
  %s1 = inlined_call_operand.vmem [shape: bf16[48,32], index: 1, kind: input, shape index: {}]
  %s2 = inlined_call_operand.vmem [shape: f32[1,32], index: 2, kind: input, shape index: {}]
  %s3 = inlined_call_operand.vmem [shape: bf16[32,32], index: 3, kind: input, shape index: {}]
  %s4 = inlined_call_operand.vmem [shape: f32[1,32], index: 4, kind: input, shape index: {}]
  %s5 = inlined_call_operand.vmem [shape: bf16[32,64], index: 5, kind: input, shape index: {}]
  %s6 = inlined_call_operand.vmem [shape: f32[1,64], index: 6, kind: input, shape index: {}]
  %s7 = inlined_call_operand.vmem [shape: bf16[64,16], index: 7, kind: input, shape index: {}]
  %s8 = inlined_call_operand.vmem [shape: f32[1,16], index: 8, kind: input, shape index: {}]
  %s9 = inlined_call_operand.vmem [shape: bf16[16,64], index: 9, kind: input, shape index: {}]
  %s10 = inlined_call_operand.vmem [shape: f32[1,64], index: 10, kind: input, shape index: {}]
  %s11 = inlined_call_operand.vmem [shape: bf16[64,32], index: 11, kind: input, shape index: {}]
  %s12 = inlined_call_operand.vmem [shape: f32[1,32], index: 12, kind: input, shape index: {}]
  %s13 = inlined_call_operand.vmem [shape: bf16[32,32], index: 13, kind: input, shape index: {}]
  %s14 = inlined_call_operand.vmem [shape: f32[1,32], index: 14, kind: input, shape index: {}]
  %s15 = inlined_call_operand.vmem [shape: bf16[32,48], index: 15, kind: input, shape index: {}]
  %s16 = inlined_call_operand.vmem [shape: f32[1,48], index: 16, kind: input, shape index: {}]
  %s17 = inlined_call_operand.vmem [shape: bf16[48,32], index: 17, kind: input, shape index: {}]
  %s18 = inlined_call_operand.vmem [shape: f32[16,8], index: 18, kind: input, shape index: {}]
  %s19 = inlined_call_operand.vmem [shape: f32[1,8], index: 19, kind: input, shape index: {}]
  %s20 = inlined_call_operand.vmem [shape: f32[512,48], index: 20, kind: output, shape index: {0}]
  %s21 = inlined_call_operand.vmem [shape: f32[512,32], index: 21, kind: output, shape index: {1}]
  %s22 = inlined_call_operand.vmem [shape: f32[512,32], index: 22, kind: output, shape index: {2}]
  %s23 = inlined_call_operand.vmem [shape: f32[512,64], index: 23, kind: output, shape index: {3}]
  %s24 = inlined_call_operand.vmem [shape: f32[512,16], index: 24, kind: output, shape index: {4}]
  %s25 = inlined_call_operand.vmem [shape: bf16[512,32], index: 25, kind: output, shape index: {5}]
  %s26 = inlined_call_operand.vmem [shape: f32[512,8], index: 26, kind: output, shape index: {6}]
  %27 = xla_tuple %s20, %s21, %s22, %s23, %s24, %s25, %s26
  %s28 = sld [smem:[#allocation0]]
  $region161: #{tpu_custom_call.1} parent=0
    _
  %s30 = ssub.s32 1, %s28
  %s31 = scalar_select 0, %s30, %s28
  loop: start=0, step=1, limit=4
  $region2: #{tpu_custom_call.1} parent=0 // loop_pre_header
    _
  $region3: #{tpu_custom_call.1} parent=0 // loop_header
    %s33 = sphi 0, %s37
    %p34 = scmp.ge.s32.totalorder %s33, 4
    %s43 = sphi 0, %s45
    %s46 = sphi 0, %s43
    %s47 = sphi 0, %s46
    %s63 = sphi 0, %s47
    %s67 = sphi 0, %s67
    %s69 = sphi 0, %s67
    %s70 = sphi 0, %s69
    %s84 = sphi 0, %s70
    %s88 = sphi 0, %s88
    %s90 = sphi 0, %s88
    %s91 = sphi 0, %s90
    %s105 = sphi 0, %s91
    %s109 = sphi 0, %s109
    %s111 = sphi 0, %s109
    %s112 = sphi 0, %s111
    %s126 = sphi 0, %s112
    %s130 = sphi 0, %s130
    %s132 = sphi 0, %s130
    %s133 = sphi 0, %s132
    %s147 = sphi 0, %s133
    %s151 = sphi 0, %s151
    %s153 = sphi 0, %s151
    %s154 = sphi 0, %s153
    %s168 = sphi 0, %s154
    %s172 = sphi 0, %s172
    %s174 = sphi 0, %s172
    %s175 = sphi 0, %s174
    %s189 = sphi 0, %s175
    %s193 = sphi 0, %s193
    %s195 = sphi 0, %s193
    %s196 = sphi 0, %s195
    %s210 = sphi 0, %s196
    %s214 = sphi 0, %s214
    %s216 = sphi 0, %s214
    %s217 = sphi 0, %s216
    %s231 = sphi 0, %s217
    %s235 = sphi 0, %s235
    %s237 = sphi 0, %s235
    %s238 = sphi 0, %s237
    %s252 = sphi 0, %s238
    %s256 = sphi 0, %s256
    %s258 = sphi 0, %s256
    %s259 = sphi 0, %s258
    %s273 = sphi 0, %s259
    %s277 = sphi 0, %s277
    %s279 = sphi 0, %s277
    %s280 = sphi 0, %s279
    %s294 = sphi 0, %s280
    %s298 = sphi 0, %s298
    %s300 = sphi 0, %s298
    %s301 = sphi 0, %s300
    %s315 = sphi 0, %s301
    %s319 = sphi 0, %s319
    %s321 = sphi 0, %s319
    %s322 = sphi 0, %s321
    %s336 = sphi 0, %s322
    %s340 = sphi 0, %s340
    %s342 = sphi 0, %s340
    %s343 = sphi 0, %s342
    %s357 = sphi 0, %s343
    %s361 = sphi 0, %s361
    %s363 = sphi 0, %s361
    %s364 = sphi 0, %s363
    %s378 = sphi 0, %s364
    %s382 = sphi 0, %s382
    %s384 = sphi 0, %s382
    %s385 = sphi 0, %s384
    %s399 = sphi 0, %s385
    %s403 = sphi 0, %s403
    %s405 = sphi 0, %s403
    %s406 = sphi 0, %s405
    %s420 = sphi 0, %s406
    %s424 = sphi 0, %s424
    %s426 = sphi 0, %s424
    %s427 = sphi 0, %s426
    %s441 = sphi 0, %s427
    %s445 = sphi 0, %s445
    %s447 = sphi 0, %s445
    %s448 = sphi 0, %s447
    %s462 = sphi 0, %s448
    %s468 = sphi 0, %s470
    %s471 = sphi 0, %s468
    %s472 = sphi 0, %s471
    %s488 = sphi 0, %s472
    %s494 = sphi 0, %s496
    %s497 = sphi 0, %s494
    %s498 = sphi 0, %s497
    %s514 = sphi 0, %s498
    %s520 = sphi 0, %s522
    %s523 = sphi 0, %s520
    %s524 = sphi 0, %s523
    %s540 = sphi 0, %s524
    %s546 = sphi 0, %s548
    %s549 = sphi 0, %s546
    %s550 = sphi 0, %s549
    %s566 = sphi 0, %s550
    %s572 = sphi 0, %s574
    %s575 = sphi 0, %s572
    %s576 = sphi 0, %s575
    %s592 = sphi 0, %s576
    %s598 = sphi 0, %s600
    %s601 = sphi 0, %s598
    %s602 = sphi 0, %s601
    %s618 = sphi 0, %s602
    %s624 = sphi 0, %s626
    %s627 = sphi 0, %s624
    %s628 = sphi 0, %s627
    %s644 = sphi 0, %s628
  $region4: #{tpu_custom_call.1} parent=0 // loop_header_branch
    %36 = sbr.rel (%p34) target = $region8
  $region5: #{tpu_custom_call.1} parent=0 // loop_body
    %s38 = ssub.s32 %s33, 1
    %s39 = ssub.s32 %s33, 2
    %s40 = sadd.s32 %s33, 1
    %s41 = ssub.s32 %s33, %s40
    %p42 = scmp.eq.s32.totalorder %s41, 0
    %s44 = sadd.s32 %s43, 1
    %s45 = scalar_select %p42, %s43, %s44
    %p48 = pneg %p42
    %p49 = scmp.eq.s32.totalorder %s33, 1
    %p50 = por %p48, %p49
    %p51 = scmp.ne.s32.totalorder %s43, %s46
    %p52 = scmp.eq.s32.totalorder %s33, 0
    %p53 = por %p51, %p52
    %p54 = scmp.ne.s32.totalorder %s43, %s46
    %p55 = scmp.eq.s32.totalorder %s38, 1
    %p56 = por %p54, %p55
    %p57 = scmp.ne.s32.totalorder %s46, %s47
    %p58 = scmp.eq.s32.totalorder %s38, 0
    %p59 = por %p57, %p58
    %p60 = scmp.ne.s32.totalorder %s46, %s47
    %p61 = scmp.eq.s32.totalorder %s39, 1
    %p62 = por %p60, %p61
    %p64 = scmp.ne.s32.totalorder %s47, %s63
    %p65 = scmp.eq.s32.totalorder %s39, 0
    %p66 = por %p64, %p65
    %s68 = sadd.s32 %s67, 1
    %p71 = scmp.eq.s32.totalorder %s33, 1
    %p72 = scmp.ne.s32.totalorder %s67, %s69
    %p73 = scmp.eq.s32.totalorder %s33, 0
    %p74 = por %p72, %p73
    %p75 = scmp.ne.s32.totalorder %s67, %s69
    %p76 = scmp.eq.s32.totalorder %s38, 1
    %p77 = por %p75, %p76
    %p78 = scmp.ne.s32.totalorder %s69, %s70
    %p79 = scmp.eq.s32.totalorder %s38, 0
    %p80 = por %p78, %p79
    %p81 = scmp.ne.s32.totalorder %s69, %s70
    %p82 = scmp.eq.s32.totalorder %s39, 1
    %p83 = por %p81, %p82
    %p85 = scmp.ne.s32.totalorder %s70, %s84
    %p86 = scmp.eq.s32.totalorder %s39, 0
    %p87 = por %p85, %p86
    %s89 = sadd.s32 %s88, 1
    %p92 = scmp.eq.s32.totalorder %s33, 1
    %p93 = scmp.ne.s32.totalorder %s88, %s90
    %p94 = scmp.eq.s32.totalorder %s33, 0
    %p95 = por %p93, %p94
    %p96 = scmp.ne.s32.totalorder %s88, %s90
    %p97 = scmp.eq.s32.totalorder %s38, 1
    %p98 = por %p96, %p97
    %p99 = scmp.ne.s32.totalorder %s90, %s91
    %p100 = scmp.eq.s32.totalorder %s38, 0
    %p101 = por %p99, %p100
    %p102 = scmp.ne.s32.totalorder %s90, %s91
    %p103 = scmp.eq.s32.totalorder %s39, 1
    %p104 = por %p102, %p103
    %p106 = scmp.ne.s32.totalorder %s91, %s105
    %p107 = scmp.eq.s32.totalorder %s39, 0
    %p108 = por %p106, %p107
    %s110 = sadd.s32 %s109, 1
    %p113 = scmp.eq.s32.totalorder %s33, 1
    %p114 = scmp.ne.s32.totalorder %s109, %s111
    %p115 = scmp.eq.s32.totalorder %s33, 0
    %p116 = por %p114, %p115
    %p117 = scmp.ne.s32.totalorder %s109, %s111
    %p118 = scmp.eq.s32.totalorder %s38, 1
    %p119 = por %p117, %p118
    %p120 = scmp.ne.s32.totalorder %s111, %s112
    %p121 = scmp.eq.s32.totalorder %s38, 0
    %p122 = por %p120, %p121
    %p123 = scmp.ne.s32.totalorder %s111, %s112
    %p124 = scmp.eq.s32.totalorder %s39, 1
    %p125 = por %p123, %p124
    %p127 = scmp.ne.s32.totalorder %s112, %s126
    %p128 = scmp.eq.s32.totalorder %s39, 0
    %p129 = por %p127, %p128
    %s131 = sadd.s32 %s130, 1
    %p134 = scmp.eq.s32.totalorder %s33, 1
    %p135 = scmp.ne.s32.totalorder %s130, %s132
    %p136 = scmp.eq.s32.totalorder %s33, 0
    %p137 = por %p135, %p136
    %p138 = scmp.ne.s32.totalorder %s130, %s132
    %p139 = scmp.eq.s32.totalorder %s38, 1
    %p140 = por %p138, %p139
    %p141 = scmp.ne.s32.totalorder %s132, %s133
    %p142 = scmp.eq.s32.totalorder %s38, 0
    %p143 = por %p141, %p142
    %p144 = scmp.ne.s32.totalorder %s132, %s133
    %p145 = scmp.eq.s32.totalorder %s39, 1
    %p146 = por %p144, %p145
    %p148 = scmp.ne.s32.totalorder %s133, %s147
    %p149 = scmp.eq.s32.totalorder %s39, 0
    %p150 = por %p148, %p149
    %s152 = sadd.s32 %s151, 1
    %p155 = scmp.eq.s32.totalorder %s33, 1
    %p156 = scmp.ne.s32.totalorder %s151, %s153
    %p157 = scmp.eq.s32.totalorder %s33, 0
    %p158 = por %p156, %p157
    %p159 = scmp.ne.s32.totalorder %s151, %s153
    %p160 = scmp.eq.s32.totalorder %s38, 1
    %p161 = por %p159, %p160
    %p162 = scmp.ne.s32.totalorder %s153, %s154
    %p163 = scmp.eq.s32.totalorder %s38, 0
    %p164 = por %p162, %p163
    %p165 = scmp.ne.s32.totalorder %s153, %s154
    %p166 = scmp.eq.s32.totalorder %s39, 1
    %p167 = por %p165, %p166
    %p169 = scmp.ne.s32.totalorder %s154, %s168
    %p170 = scmp.eq.s32.totalorder %s39, 0
    %p171 = por %p169, %p170
    %s173 = sadd.s32 %s172, 1
    %p176 = scmp.eq.s32.totalorder %s33, 1
    %p177 = scmp.ne.s32.totalorder %s172, %s174
    %p178 = scmp.eq.s32.totalorder %s33, 0
    %p179 = por %p177, %p178
    %p180 = scmp.ne.s32.totalorder %s172, %s174
    %p181 = scmp.eq.s32.totalorder %s38, 1
    %p182 = por %p180, %p181
    %p183 = scmp.ne.s32.totalorder %s174, %s175
    %p184 = scmp.eq.s32.totalorder %s38, 0
    %p185 = por %p183, %p184
    %p186 = scmp.ne.s32.totalorder %s174, %s175
    %p187 = scmp.eq.s32.totalorder %s39, 1
    %p188 = por %p186, %p187
    %p190 = scmp.ne.s32.totalorder %s175, %s189
    %p191 = scmp.eq.s32.totalorder %s39, 0
    %p192 = por %p190, %p191
    %s194 = sadd.s32 %s193, 1
    %p197 = scmp.eq.s32.totalorder %s33, 1
    %p198 = scmp.ne.s32.totalorder %s193, %s195
    %p199 = scmp.eq.s32.totalorder %s33, 0
    %p200 = por %p198, %p199
    %p201 = scmp.ne.s32.totalorder %s193, %s195
    %p202 = scmp.eq.s32.totalorder %s38, 1
    %p203 = por %p201, %p202
    %p204 = scmp.ne.s32.totalorder %s195, %s196
    %p205 = scmp.eq.s32.totalorder %s38, 0
    %p206 = por %p204, %p205
    %p207 = scmp.ne.s32.totalorder %s195, %s196
    %p208 = scmp.eq.s32.totalorder %s39, 1
    %p209 = por %p207, %p208
    %p211 = scmp.ne.s32.totalorder %s196, %s210
    %p212 = scmp.eq.s32.totalorder %s39, 0
    %p213 = por %p211, %p212
    %s215 = sadd.s32 %s214, 1
    %p218 = scmp.eq.s32.totalorder %s33, 1
    %p219 = scmp.ne.s32.totalorder %s214, %s216
    %p220 = scmp.eq.s32.totalorder %s33, 0
    %p221 = por %p219, %p220
    %p222 = scmp.ne.s32.totalorder %s214, %s216
    %p223 = scmp.eq.s32.totalorder %s38, 1
    %p224 = por %p222, %p223
    %p225 = scmp.ne.s32.totalorder %s216, %s217
    %p226 = scmp.eq.s32.totalorder %s38, 0
    %p227 = por %p225, %p226
    %p228 = scmp.ne.s32.totalorder %s216, %s217
    %p229 = scmp.eq.s32.totalorder %s39, 1
    %p230 = por %p228, %p229
    %p232 = scmp.ne.s32.totalorder %s217, %s231
    %p233 = scmp.eq.s32.totalorder %s39, 0
    %p234 = por %p232, %p233
    %s236 = sadd.s32 %s235, 1
    %p239 = scmp.eq.s32.totalorder %s33, 1
    %p240 = scmp.ne.s32.totalorder %s235, %s237
    %p241 = scmp.eq.s32.totalorder %s33, 0
    %p242 = por %p240, %p241
    %p243 = scmp.ne.s32.totalorder %s235, %s237
    %p244 = scmp.eq.s32.totalorder %s38, 1
    %p245 = por %p243, %p244
    %p246 = scmp.ne.s32.totalorder %s237, %s238
    %p247 = scmp.eq.s32.totalorder %s38, 0
    %p248 = por %p246, %p247
    %p249 = scmp.ne.s32.totalorder %s237, %s238
    %p250 = scmp.eq.s32.totalorder %s39, 1
    %p251 = por %p249, %p250
    %p253 = scmp.ne.s32.totalorder %s238, %s252
    %p254 = scmp.eq.s32.totalorder %s39, 0
    %p255 = por %p253, %p254
    %s257 = sadd.s32 %s256, 1
    %p260 = scmp.eq.s32.totalorder %s33, 1
    %p261 = scmp.ne.s32.totalorder %s256, %s258
    %p262 = scmp.eq.s32.totalorder %s33, 0
    %p263 = por %p261, %p262
    %p264 = scmp.ne.s32.totalorder %s256, %s258
    %p265 = scmp.eq.s32.totalorder %s38, 1
    %p266 = por %p264, %p265
    %p267 = scmp.ne.s32.totalorder %s258, %s259
    %p268 = scmp.eq.s32.totalorder %s38, 0
    %p269 = por %p267, %p268
    %p270 = scmp.ne.s32.totalorder %s258, %s259
    %p271 = scmp.eq.s32.totalorder %s39, 1
    %p272 = por %p270, %p271
    %p274 = scmp.ne.s32.totalorder %s259, %s273
    %p275 = scmp.eq.s32.totalorder %s39, 0
    %p276 = por %p274, %p275
    %s278 = sadd.s32 %s277, 1
    %p281 = scmp.eq.s32.totalorder %s33, 1
    %p282 = scmp.ne.s32.totalorder %s277, %s279
    %p283 = scmp.eq.s32.totalorder %s33, 0
    %p284 = por %p282, %p283
    %p285 = scmp.ne.s32.totalorder %s277, %s279
    %p286 = scmp.eq.s32.totalorder %s38, 1
    %p287 = por %p285, %p286
    %p288 = scmp.ne.s32.totalorder %s279, %s280
    %p289 = scmp.eq.s32.totalorder %s38, 0
    %p290 = por %p288, %p289
    %p291 = scmp.ne.s32.totalorder %s279, %s280
    %p292 = scmp.eq.s32.totalorder %s39, 1
    %p293 = por %p291, %p292
    %p295 = scmp.ne.s32.totalorder %s280, %s294
    %p296 = scmp.eq.s32.totalorder %s39, 0
    %p297 = por %p295, %p296
    %s299 = sadd.s32 %s298, 1
    %p302 = scmp.eq.s32.totalorder %s33, 1
    %p303 = scmp.ne.s32.totalorder %s298, %s300
    %p304 = scmp.eq.s32.totalorder %s33, 0
    %p305 = por %p303, %p304
    %p306 = scmp.ne.s32.totalorder %s298, %s300
    %p307 = scmp.eq.s32.totalorder %s38, 1
    %p308 = por %p306, %p307
    %p309 = scmp.ne.s32.totalorder %s300, %s301
    %p310 = scmp.eq.s32.totalorder %s38, 0
    %p311 = por %p309, %p310
    %p312 = scmp.ne.s32.totalorder %s300, %s301
    %p313 = scmp.eq.s32.totalorder %s39, 1
    %p314 = por %p312, %p313
    %p316 = scmp.ne.s32.totalorder %s301, %s315
    %p317 = scmp.eq.s32.totalorder %s39, 0
    %p318 = por %p316, %p317
    %s320 = sadd.s32 %s319, 1
    %p323 = scmp.eq.s32.totalorder %s33, 1
    %p324 = scmp.ne.s32.totalorder %s319, %s321
    %p325 = scmp.eq.s32.totalorder %s33, 0
    %p326 = por %p324, %p325
    %p327 = scmp.ne.s32.totalorder %s319, %s321
    %p328 = scmp.eq.s32.totalorder %s38, 1
    %p329 = por %p327, %p328
    %p330 = scmp.ne.s32.totalorder %s321, %s322
    %p331 = scmp.eq.s32.totalorder %s38, 0
    %p332 = por %p330, %p331
    %p333 = scmp.ne.s32.totalorder %s321, %s322
    %p334 = scmp.eq.s32.totalorder %s39, 1
    %p335 = por %p333, %p334
    %p337 = scmp.ne.s32.totalorder %s322, %s336
    %p338 = scmp.eq.s32.totalorder %s39, 0
    %p339 = por %p337, %p338
    %s341 = sadd.s32 %s340, 1
    %p344 = scmp.eq.s32.totalorder %s33, 1
    %p345 = scmp.ne.s32.totalorder %s340, %s342
    %p346 = scmp.eq.s32.totalorder %s33, 0
    %p347 = por %p345, %p346
    %p348 = scmp.ne.s32.totalorder %s340, %s342
    %p349 = scmp.eq.s32.totalorder %s38, 1
    %p350 = por %p348, %p349
    %p351 = scmp.ne.s32.totalorder %s342, %s343
    %p352 = scmp.eq.s32.totalorder %s38, 0
    %p353 = por %p351, %p352
    %p354 = scmp.ne.s32.totalorder %s342, %s343
    %p355 = scmp.eq.s32.totalorder %s39, 1
    %p356 = por %p354, %p355
    %p358 = scmp.ne.s32.totalorder %s343, %s357
    %p359 = scmp.eq.s32.totalorder %s39, 0
    %p360 = por %p358, %p359
    %s362 = sadd.s32 %s361, 1
    %p365 = scmp.eq.s32.totalorder %s33, 1
    %p366 = scmp.ne.s32.totalorder %s361, %s363
    %p367 = scmp.eq.s32.totalorder %s33, 0
    %p368 = por %p366, %p367
    %p369 = scmp.ne.s32.totalorder %s361, %s363
    %p370 = scmp.eq.s32.totalorder %s38, 1
    %p371 = por %p369, %p370
    %p372 = scmp.ne.s32.totalorder %s363, %s364
    %p373 = scmp.eq.s32.totalorder %s38, 0
    %p374 = por %p372, %p373
    %p375 = scmp.ne.s32.totalorder %s363, %s364
    %p376 = scmp.eq.s32.totalorder %s39, 1
    %p377 = por %p375, %p376
    %p379 = scmp.ne.s32.totalorder %s364, %s378
    %p380 = scmp.eq.s32.totalorder %s39, 0
    %p381 = por %p379, %p380
    %s383 = sadd.s32 %s382, 1
    %p386 = scmp.eq.s32.totalorder %s33, 1
    %p387 = scmp.ne.s32.totalorder %s382, %s384
    %p388 = scmp.eq.s32.totalorder %s33, 0
    %p389 = por %p387, %p388
    %p390 = scmp.ne.s32.totalorder %s382, %s384
    %p391 = scmp.eq.s32.totalorder %s38, 1
    %p392 = por %p390, %p391
    %p393 = scmp.ne.s32.totalorder %s384, %s385
    %p394 = scmp.eq.s32.totalorder %s38, 0
    %p395 = por %p393, %p394
    %p396 = scmp.ne.s32.totalorder %s384, %s385
    %p397 = scmp.eq.s32.totalorder %s39, 1
    %p398 = por %p396, %p397
    %p400 = scmp.ne.s32.totalorder %s385, %s399
    %p401 = scmp.eq.s32.totalorder %s39, 0
    %p402 = por %p400, %p401
    %s404 = sadd.s32 %s403, 1
    %p407 = scmp.eq.s32.totalorder %s33, 1
    %p408 = scmp.ne.s32.totalorder %s403, %s405
    %p409 = scmp.eq.s32.totalorder %s33, 0
    %p410 = por %p408, %p409
    %p411 = scmp.ne.s32.totalorder %s403, %s405
    %p412 = scmp.eq.s32.totalorder %s38, 1
    %p413 = por %p411, %p412
    %p414 = scmp.ne.s32.totalorder %s405, %s406
    %p415 = scmp.eq.s32.totalorder %s38, 0
    %p416 = por %p414, %p415
    %p417 = scmp.ne.s32.totalorder %s405, %s406
    %p418 = scmp.eq.s32.totalorder %s39, 1
    %p419 = por %p417, %p418
    %p421 = scmp.ne.s32.totalorder %s406, %s420
    %p422 = scmp.eq.s32.totalorder %s39, 0
    %p423 = por %p421, %p422
    %s425 = sadd.s32 %s424, 1
    %p428 = scmp.eq.s32.totalorder %s33, 1
    %p429 = scmp.ne.s32.totalorder %s424, %s426
    %p430 = scmp.eq.s32.totalorder %s33, 0
    %p431 = por %p429, %p430
    %p432 = scmp.ne.s32.totalorder %s424, %s426
    %p433 = scmp.eq.s32.totalorder %s38, 1
    %p434 = por %p432, %p433
    %p435 = scmp.ne.s32.totalorder %s426, %s427
    %p436 = scmp.eq.s32.totalorder %s38, 0
    %p437 = por %p435, %p436
    %p438 = scmp.ne.s32.totalorder %s426, %s427
    %p439 = scmp.eq.s32.totalorder %s39, 1
    %p440 = por %p438, %p439
    %p442 = scmp.ne.s32.totalorder %s427, %s441
    %p443 = scmp.eq.s32.totalorder %s39, 0
    %p444 = por %p442, %p443
    %s446 = sadd.s32 %s445, 1
    %p449 = scmp.eq.s32.totalorder %s33, 1
    %p450 = scmp.ne.s32.totalorder %s445, %s447
    %p451 = scmp.eq.s32.totalorder %s33, 0
    %p452 = por %p450, %p451
    %p453 = scmp.ne.s32.totalorder %s445, %s447
    %p454 = scmp.eq.s32.totalorder %s38, 1
    %p455 = por %p453, %p454
    %p456 = scmp.ne.s32.totalorder %s447, %s448
    %p457 = scmp.eq.s32.totalorder %s38, 0
    %p458 = por %p456, %p457
    %p459 = scmp.ne.s32.totalorder %s447, %s448
    %p460 = scmp.eq.s32.totalorder %s39, 1
    %p461 = por %p459, %p460
    %p463 = scmp.ne.s32.totalorder %s448, %s462
    %p464 = scmp.eq.s32.totalorder %s39, 0
    %p465 = por %p463, %p464
    %s466 = ssub.s32 %s33, %s40
    %p467 = scmp.eq.s32.totalorder %s466, 0
    %s469 = sadd.s32 %s468, 1
    %s470 = scalar_select %p467, %s468, %s469
    %p473 = pneg %p467
    %p474 = scmp.eq.s32.totalorder %s33, 1
    %p475 = por %p473, %p474
    %p476 = scmp.ne.s32.totalorder %s468, %s471
    %p477 = scmp.eq.s32.totalorder %s33, 0
    %p478 = por %p476, %p477
    %p479 = scmp.ne.s32.totalorder %s468, %s471
    %p480 = scmp.eq.s32.totalorder %s38, 1
    %p481 = por %p479, %p480
    %p482 = scmp.ne.s32.totalorder %s471, %s472
    %p483 = scmp.eq.s32.totalorder %s38, 0
    %p484 = por %p482, %p483
    %p485 = scmp.ne.s32.totalorder %s471, %s472
    %p486 = scmp.eq.s32.totalorder %s39, 1
    %p487 = por %p485, %p486
    %p489 = scmp.ne.s32.totalorder %s472, %s488
    %p490 = scmp.eq.s32.totalorder %s39, 0
    %p491 = por %p489, %p490
    %s492 = ssub.s32 %s33, %s40
    %p493 = scmp.eq.s32.totalorder %s492, 0
    %s495 = sadd.s32 %s494, 1
    %s496 = scalar_select %p493, %s494, %s495
    %p499 = pneg %p493
    %p500 = scmp.eq.s32.totalorder %s33, 1
    %p501 = por %p499, %p500
    %p502 = scmp.ne.s32.totalorder %s494, %s497
    %p503 = scmp.eq.s32.totalorder %s33, 0
    %p504 = por %p502, %p503
    %p505 = scmp.ne.s32.totalorder %s494, %s497
    %p506 = scmp.eq.s32.totalorder %s38, 1
    %p507 = por %p505, %p506
    %p508 = scmp.ne.s32.totalorder %s497, %s498
    %p509 = scmp.eq.s32.totalorder %s38, 0
    %p510 = por %p508, %p509
    %p511 = scmp.ne.s32.totalorder %s497, %s498
    %p512 = scmp.eq.s32.totalorder %s39, 1
    %p513 = por %p511, %p512
    %p515 = scmp.ne.s32.totalorder %s498, %s514
    %p516 = scmp.eq.s32.totalorder %s39, 0
    %p517 = por %p515, %p516
    %s518 = ssub.s32 %s33, %s40
    %p519 = scmp.eq.s32.totalorder %s518, 0
    %s521 = sadd.s32 %s520, 1
    %s522 = scalar_select %p519, %s520, %s521
    %p525 = pneg %p519
    %p526 = scmp.eq.s32.totalorder %s33, 1
    %p527 = por %p525, %p526
    %p528 = scmp.ne.s32.totalorder %s520, %s523
    %p529 = scmp.eq.s32.totalorder %s33, 0
    %p530 = por %p528, %p529
    %p531 = scmp.ne.s32.totalorder %s520, %s523
    %p532 = scmp.eq.s32.totalorder %s38, 1
    %p533 = por %p531, %p532
    %p534 = scmp.ne.s32.totalorder %s523, %s524
    %p535 = scmp.eq.s32.totalorder %s38, 0
    %p536 = por %p534, %p535
    %p537 = scmp.ne.s32.totalorder %s523, %s524
    %p538 = scmp.eq.s32.totalorder %s39, 1
    %p539 = por %p537, %p538
    %p541 = scmp.ne.s32.totalorder %s524, %s540
    %p542 = scmp.eq.s32.totalorder %s39, 0
    %p543 = por %p541, %p542
    %s544 = ssub.s32 %s33, %s40
    %p545 = scmp.eq.s32.totalorder %s544, 0
    %s547 = sadd.s32 %s546, 1
    %s548 = scalar_select %p545, %s546, %s547
    %p551 = pneg %p545
    %p552 = scmp.eq.s32.totalorder %s33, 1
    %p553 = por %p551, %p552
    %p554 = scmp.ne.s32.totalorder %s546, %s549
    %p555 = scmp.eq.s32.totalorder %s33, 0
    %p556 = por %p554, %p555
    %p557 = scmp.ne.s32.totalorder %s546, %s549
    %p558 = scmp.eq.s32.totalorder %s38, 1
    %p559 = por %p557, %p558
    %p560 = scmp.ne.s32.totalorder %s549, %s550
    %p561 = scmp.eq.s32.totalorder %s38, 0
    %p562 = por %p560, %p561
    %p563 = scmp.ne.s32.totalorder %s549, %s550
    %p564 = scmp.eq.s32.totalorder %s39, 1
    %p565 = por %p563, %p564
    %p567 = scmp.ne.s32.totalorder %s550, %s566
    %p568 = scmp.eq.s32.totalorder %s39, 0
    %p569 = por %p567, %p568
    %s570 = ssub.s32 %s33, %s40
    %p571 = scmp.eq.s32.totalorder %s570, 0
    %s573 = sadd.s32 %s572, 1
    %s574 = scalar_select %p571, %s572, %s573
    %p577 = pneg %p571
    %p578 = scmp.eq.s32.totalorder %s33, 1
    %p579 = por %p577, %p578
    %p580 = scmp.ne.s32.totalorder %s572, %s575
    %p581 = scmp.eq.s32.totalorder %s33, 0
    %p582 = por %p580, %p581
    %p583 = scmp.ne.s32.totalorder %s572, %s575
    %p584 = scmp.eq.s32.totalorder %s38, 1
    %p585 = por %p583, %p584
    %p586 = scmp.ne.s32.totalorder %s575, %s576
    %p587 = scmp.eq.s32.totalorder %s38, 0
    %p588 = por %p586, %p587
    %p589 = scmp.ne.s32.totalorder %s575, %s576
    %p590 = scmp.eq.s32.totalorder %s39, 1
    %p591 = por %p589, %p590
    %p593 = scmp.ne.s32.totalorder %s576, %s592
    %p594 = scmp.eq.s32.totalorder %s39, 0
    %p595 = por %p593, %p594
    %s596 = ssub.s32 %s33, %s40
    %p597 = scmp.eq.s32.totalorder %s596, 0
    %s599 = sadd.s32 %s598, 1
    %s600 = scalar_select %p597, %s598, %s599
    %p603 = pneg %p597
    %p604 = scmp.eq.s32.totalorder %s33, 1
    %p605 = por %p603, %p604
    %p606 = scmp.ne.s32.totalorder %s598, %s601
    %p607 = scmp.eq.s32.totalorder %s33, 0
    %p608 = por %p606, %p607
    %p609 = scmp.ne.s32.totalorder %s598, %s601
    %p610 = scmp.eq.s32.totalorder %s38, 1
    %p611 = por %p609, %p610
    %p612 = scmp.ne.s32.totalorder %s601, %s602
    %p613 = scmp.eq.s32.totalorder %s38, 0
    %p614 = por %p612, %p613
    %p615 = scmp.ne.s32.totalorder %s601, %s602
    %p616 = scmp.eq.s32.totalorder %s39, 1
    %p617 = por %p615, %p616
    %p619 = scmp.ne.s32.totalorder %s602, %s618
    %p620 = scmp.eq.s32.totalorder %s39, 0
    %p621 = por %p619, %p620
    %s622 = ssub.s32 %s33, %s40
    %p623 = scmp.eq.s32.totalorder %s622, 0
    %s625 = sadd.s32 %s624, 1
    %s626 = scalar_select %p623, %s624, %s625
    %p629 = pneg %p623
    %p630 = scmp.eq.s32.totalorder %s33, 1
    %p631 = por %p629, %p630
    %p632 = scmp.ne.s32.totalorder %s624, %s627
    %p633 = scmp.eq.s32.totalorder %s33, 0
    %p634 = por %p632, %p633
    %p635 = scmp.ne.s32.totalorder %s624, %s627
    %p636 = scmp.eq.s32.totalorder %s38, 1
    %p637 = por %p635, %p636
    %p638 = scmp.ne.s32.totalorder %s627, %s628
    %p639 = scmp.eq.s32.totalorder %s38, 0
    %p640 = por %p638, %p639
    %p641 = scmp.ne.s32.totalorder %s627, %s628
    %p642 = scmp.eq.s32.totalorder %s39, 1
    %p643 = por %p641, %p642
    %p645 = scmp.ne.s32.totalorder %s628, %s644
    %p646 = scmp.eq.s32.totalorder %s39, 0
    %p647 = por %p645, %p646
    %p648 = scmp.le.s32.totalorder 1, %s33
    %p649 = scmp.lt.s32.totalorder %s33, 3
    %p650 = pnand %p648, %p649
    %p651 = pneg %p650
    // Predicated region
    $region9: #{tpu_custom_call.1} parent=5 // pred_check
      _
    $region10: #{tpu_custom_call.1} parent=5 // pred_check_branch
      %653 = sbr.rel (%p650) target = $region12
    $region11: #{tpu_custom_call.1} parent=5 // pred_region
      %s654 = ssub.s32 %s33, 1
      // Predicated region
      $region13: #{tpu_custom_call.1} parent=11 // pred_check
        %p655 = pneg %p80
      $region14: #{tpu_custom_call.1} parent=11 // pred_check_branch
        %657 = sbr.rel (%p655) target = $region16
      $region15: #{tpu_custom_call.1} parent=11 // pred_region
        _
      $region16: #{tpu_custom_call.1} parent=11 // pred_fallthru
        _
      // Predicated region
      $region17: #{tpu_custom_call.1} parent=11 // pred_check
        %p658 = pneg %p101
      $region18: #{tpu_custom_call.1} parent=11 // pred_check_branch
        %660 = sbr.rel (%p658) target = $region20
      $region19: #{tpu_custom_call.1} parent=11 // pred_region
        _
      $region20: #{tpu_custom_call.1} parent=11 // pred_fallthru
        _
      // Predicated region
      $region21: #{tpu_custom_call.1} parent=11 // pred_check
        %p661 = pneg %p122
      $region22: #{tpu_custom_call.1} parent=11 // pred_check_branch
        %663 = sbr.rel (%p661) target = $region24
      $region23: #{tpu_custom_call.1} parent=11 // pred_region
        _
      $region24: #{tpu_custom_call.1} parent=11 // pred_fallthru
        _
      // Predicated region
      $region25: #{tpu_custom_call.1} parent=11 // pred_check
        %p664 = pneg %p143
      $region26: #{tpu_custom_call.1} parent=11 // pred_check_branch
        %666 = sbr.rel (%p664) target = $region28
      $region27: #{tpu_custom_call.1} parent=11 // pred_region
        _
      $region28: #{tpu_custom_call.1} parent=11 // pred_fallthru
        _
      // Predicated region
      $region29: #{tpu_custom_call.1} parent=11 // pred_check
        %p667 = pneg %p164
      $region30: #{tpu_custom_call.1} parent=11 // pred_check_branch
        %669 = sbr.rel (%p667) target = $region32
      $region31: #{tpu_custom_call.1} parent=11 // pred_region
        _
      $region32: #{tpu_custom_call.1} parent=11 // pred_fallthru
        _
      // Predicated region
      $region33: #{tpu_custom_call.1} parent=11 // pred_check
        %p670 = pneg %p185
      $region34: #{tpu_custom_call.1} parent=11 // pred_check_branch
        %672 = sbr.rel (%p670) target = $region36
      $region35: #{tpu_custom_call.1} parent=11 // pred_region
        _
      $region36: #{tpu_custom_call.1} parent=11 // pred_fallthru
        _
      // Predicated region
      $region37: #{tpu_custom_call.1} parent=11 // pred_check
        %p673 = pneg %p206
      $region38: #{tpu_custom_call.1} parent=11 // pred_check_branch
        %675 = sbr.rel (%p673) target = $region40
      $region39: #{tpu_custom_call.1} parent=11 // pred_region
        _
      $region40: #{tpu_custom_call.1} parent=11 // pred_fallthru
        _
      // Predicated region
      $region41: #{tpu_custom_call.1} parent=11 // pred_check
        %p676 = pneg %p227
      $region42: #{tpu_custom_call.1} parent=11 // pred_check_branch
        %678 = sbr.rel (%p676) target = $region44
      $region43: #{tpu_custom_call.1} parent=11 // pred_region
        _
      $region44: #{tpu_custom_call.1} parent=11 // pred_fallthru
        _
      // Predicated region
      $region45: #{tpu_custom_call.1} parent=11 // pred_check
        %p679 = pneg %p248
      $region46: #{tpu_custom_call.1} parent=11 // pred_check_branch
        %681 = sbr.rel (%p679) target = $region48
      $region47: #{tpu_custom_call.1} parent=11 // pred_region
        _
      $region48: #{tpu_custom_call.1} parent=11 // pred_fallthru
        _
      // Predicated region
      $region49: #{tpu_custom_call.1} parent=11 // pred_check
        %p682 = pneg %p269
      $region50: #{tpu_custom_call.1} parent=11 // pred_check_branch
        %684 = sbr.rel (%p682) target = $region52
      $region51: #{tpu_custom_call.1} parent=11 // pred_region
        _
      $region52: #{tpu_custom_call.1} parent=11 // pred_fallthru
        _
      // Predicated region
      $region53: #{tpu_custom_call.1} parent=11 // pred_check
        %p685 = pneg %p290
      $region54: #{tpu_custom_call.1} parent=11 // pred_check_branch
        %687 = sbr.rel (%p685) target = $region56
      $region55: #{tpu_custom_call.1} parent=11 // pred_region
        _
      $region56: #{tpu_custom_call.1} parent=11 // pred_fallthru
        _
      // Predicated region
      $region57: #{tpu_custom_call.1} parent=11 // pred_check
        %p688 = pneg %p311
      $region58: #{tpu_custom_call.1} parent=11 // pred_check_branch
        %690 = sbr.rel (%p688) target = $region60
      $region59: #{tpu_custom_call.1} parent=11 // pred_region
        _
      $region60: #{tpu_custom_call.1} parent=11 // pred_fallthru
        _
      // Predicated region
      $region61: #{tpu_custom_call.1} parent=11 // pred_check
        %p691 = pneg %p332
      $region62: #{tpu_custom_call.1} parent=11 // pred_check_branch
        %693 = sbr.rel (%p691) target = $region64
      $region63: #{tpu_custom_call.1} parent=11 // pred_region
        _
      $region64: #{tpu_custom_call.1} parent=11 // pred_fallthru
        _
      // Predicated region
      $region65: #{tpu_custom_call.1} parent=11 // pred_check
        %p694 = pneg %p353
      $region66: #{tpu_custom_call.1} parent=11 // pred_check_branch
        %696 = sbr.rel (%p694) target = $region68
      $region67: #{tpu_custom_call.1} parent=11 // pred_region
        _
      $region68: #{tpu_custom_call.1} parent=11 // pred_fallthru
        _
      // Predicated region
      $region69: #{tpu_custom_call.1} parent=11 // pred_check
        %p697 = pneg %p374
      $region70: #{tpu_custom_call.1} parent=11 // pred_check_branch
        %699 = sbr.rel (%p697) target = $region72
      $region71: #{tpu_custom_call.1} parent=11 // pred_region
        _
      $region72: #{tpu_custom_call.1} parent=11 // pred_fallthru
        _
      // Predicated region
      $region73: #{tpu_custom_call.1} parent=11 // pred_check
        %p700 = pneg %p395
      $region74: #{tpu_custom_call.1} parent=11 // pred_check_branch
        %702 = sbr.rel (%p700) target = $region76
      $region75: #{tpu_custom_call.1} parent=11 // pred_region
        _
      $region76: #{tpu_custom_call.1} parent=11 // pred_fallthru
        _
      // Predicated region
      $region77: #{tpu_custom_call.1} parent=11 // pred_check
        %p703 = pneg %p416
      $region78: #{tpu_custom_call.1} parent=11 // pred_check_branch
        %705 = sbr.rel (%p703) target = $region80
      $region79: #{tpu_custom_call.1} parent=11 // pred_region
        _
      $region80: #{tpu_custom_call.1} parent=11 // pred_fallthru
        _
      // Predicated region
      $region81: #{tpu_custom_call.1} parent=11 // pred_check
        %p706 = pneg %p437
      $region82: #{tpu_custom_call.1} parent=11 // pred_check_branch
        %708 = sbr.rel (%p706) target = $region84
      $region83: #{tpu_custom_call.1} parent=11 // pred_region
        _
      $region84: #{tpu_custom_call.1} parent=11 // pred_fallthru
        _
      // Predicated region
      $region85: #{tpu_custom_call.1} parent=11 // pred_check
        %p709 = pneg %p458
      $region86: #{tpu_custom_call.1} parent=11 // pred_check_branch
        %711 = sbr.rel (%p709) target = $region88
      $region87: #{tpu_custom_call.1} parent=11 // pred_region
        _
      $region88: #{tpu_custom_call.1} parent=11 // pred_fallthru
        _
    $region12: #{tpu_custom_call.1} parent=5 // pred_fallthru
      _
    %p712 = scmp.lt.s32.totalorder %s33, 2
    // Predicated region
    $region89: #{tpu_custom_call.1} parent=5 // pred_check
      %p713 = pneg %p712
    $region90: #{tpu_custom_call.1} parent=5 // pred_check_branch
      %715 = sbr.rel (%p713) target = $region92
    $region91: #{tpu_custom_call.1} parent=5 // pred_region
      // Predicated region
      $region93: #{tpu_custom_call.1} parent=91 // pred_check
        %p716 = pneg %p53
      $region94: #{tpu_custom_call.1} parent=91 // pred_check_branch
        %718 = sbr.rel (%p716) target = $region96
      $region95: #{tpu_custom_call.1} parent=91 // pred_region
        %s719 = smul.u32 32, %s33
        %p720 = scmp.lt.s32.totalorder %s719, 63
        %s721 = scalar_select %p720, %s719, 63
        %s722 = smul.addr %s721, 8
        %s723 = scalar_lea.vmem %s0, %s722
        %s724 = smul.u32 32, %s33
      $region96: #{tpu_custom_call.1} parent=91 // pred_fallthru
        _
    $region92: #{tpu_custom_call.1} parent=5 // pred_fallthru
      _
    %p725 = scmp.le.s32.totalorder 1, %s33
    %p726 = scmp.lt.s32.totalorder %s33, 3
    %p727 = pnand %p725, %p726
    %p728 = pneg %p727
    // Predicated region
    $region97: #{tpu_custom_call.1} parent=5 // pred_check
      _
    $region98: #{tpu_custom_call.1} parent=5 // pred_check_branch
      %730 = sbr.rel (%p727) target = $region100
    $region99: #{tpu_custom_call.1} parent=5 // pred_region
      %s731 = ssub.s32 %s33, 1
      %s732 = smul.u32 32, %s38
      %p733 = scmp.lt.s32.totalorder %s732, 63
      %s734 = scalar_select %p733, %s732, 63
      %s735 = smul.addr %s734, 8
      %s736 = scalar_lea.vmem %s0, %s735
      %p737 = pneg %p59
      %p738 = pneg %p56
      %p739 = pneg %p80
      %p740 = pneg %p77
      %p741 = pneg %p101
      %p742 = pneg %p98
      %p743 = pneg %p122
      %p744 = pneg %p119
      %p745 = pneg %p143
      %p746 = pneg %p140
      %p747 = pneg %p164
      %p748 = pneg %p161
      %p749 = pneg %p185
      %p750 = pneg %p182
      %p751 = pneg %p206
      %p752 = pneg %p203
      %p753 = pneg %p227
      %p754 = pneg %p224
      %p755 = pneg %p248
      %p756 = pneg %p245
      %p757 = pneg %p269
      %p758 = pneg %p266
      %p759 = pneg %p290
      %p760 = pneg %p287
      %p761 = pneg %p311
      %p762 = pneg %p308
      %p763 = pneg %p332
      %p764 = pneg %p329
      %p765 = pneg %p353
      %p766 = pneg %p350
      %p767 = pneg %p374
      %p768 = pneg %p371
      %p769 = pneg %p395
      %p770 = pneg %p392
      %p771 = pneg %p416
      %p772 = pneg %p413
      %p773 = pneg %p437
      %p774 = pneg %p434
      %p775 = pneg %p458
      %p776 = pneg %p455
      %p777 = pneg %p484
      %p778 = pneg %p481
      %s779 = smul.u32 32, %s38
      %p780 = scmp.lt.s32.totalorder %s779, 63
      %s781 = scalar_select %p780, %s779, 63
      %s782 = smul.addr %s781, 8
      %s783 = scalar_lea.vmem %s20, %s782
      %p784 = pneg %p510
      %p785 = pneg %p507
      %s786 = smul.u32 32, %s38
      %p787 = scmp.lt.s32.totalorder %s786, 63
      %s788 = scalar_select %p787, %s786, 63
      %s789 = smul.addr %s788, 8
      %s790 = scalar_lea.vmem %s21, %s789
      %p791 = pneg %p536
      %p792 = pneg %p533
      %s793 = smul.u32 32, %s38
      %p794 = scmp.lt.s32.totalorder %s793, 63
      %s795 = scalar_select %p794, %s793, 63
      %s796 = smul.addr %s795, 8
      %s797 = scalar_lea.vmem %s22, %s796
      %p798 = pneg %p562
      %p799 = pneg %p559
      %s800 = smul.u32 32, %s38
      %p801 = scmp.lt.s32.totalorder %s800, 63
      %s802 = scalar_select %p801, %s800, 63
      %s803 = smul.addr %s802, 8
      %s804 = scalar_lea.vmem %s23, %s803
      %p805 = pneg %p588
      %p806 = pneg %p585
      %s807 = smul.u32 32, %s38
      %p808 = scmp.lt.s32.totalorder %s807, 63
      %s809 = scalar_select %p808, %s807, 63
      %s810 = smul.addr %s809, 8
      %s811 = scalar_lea.vmem %s24, %s810
      %p812 = pneg %p614
      %p813 = pneg %p611
      %s814 = smul.u32 32, %s38
      %p815 = scmp.lt.s32.totalorder %s814, 63
      %s816 = scalar_select %p815, %s814, 63
      %s817 = smul.addr %s816, 4
      %s818 = scalar_lea.vmem %s25, %s817
      %p819 = pneg %p640
      %p820 = pneg %p637
      %s821 = smul.u32 32, %s38
      %p822 = scmp.lt.s32.totalorder %s821, 63
      %s823 = scalar_select %p822, %s821, 63
      %s824 = smul.addr %s823, 8
      %s825 = scalar_lea.vmem %s26, %s824
      %s826 = smul.u32 32, %s38
      %p827 = scmp.lt.s32.totalorder %s826, 63
      %s828 = scalar_select %p827, %s826, 63
      %s829 = smul.addr %s828, 8
      %s830 = scalar_lea.vmem %s0, %s829
      %s831 = smul.u32 32, %s38
      %s832 = smul.u32 32, %s38
      %p833 = scmp.lt.s32.totalorder %s832, 63
      %s834 = scalar_select %p833, %s832, 63
      %s835 = smul.addr %s834, 8
      %s836 = scalar_lea.vmem %s20, %s835
      %s837 = smul.u32 32, %s38
      %s838 = smul.u32 32, %s38
      %p839 = scmp.lt.s32.totalorder %s838, 63
      %s840 = scalar_select %p839, %s838, 63
      %s841 = smul.addr %s840, 8
      %s842 = scalar_lea.vmem %s21, %s841
      %s843 = smul.u32 32, %s38
      %s844 = smul.u32 32, %s38
      %p845 = scmp.lt.s32.totalorder %s844, 63
      %s846 = scalar_select %p845, %s844, 63
      %s847 = smul.addr %s846, 8
      %s848 = scalar_lea.vmem %s22, %s847
      %s849 = smul.u32 32, %s38
      %s850 = smul.u32 32, %s38
      %p851 = scmp.lt.s32.totalorder %s850, 63
      %s852 = scalar_select %p851, %s850, 63
      %s853 = smul.addr %s852, 8
      %s854 = scalar_lea.vmem %s23, %s853
      %s855 = smul.u32 32, %s38
      %s856 = smul.u32 32, %s38
      %p857 = scmp.lt.s32.totalorder %s856, 63
      %s858 = scalar_select %p857, %s856, 63
      %s859 = smul.addr %s858, 8
      %s860 = scalar_lea.vmem %s24, %s859
      %s861 = smul.u32 32, %s38
      %s862 = smul.u32 32, %s38
      %p863 = scmp.lt.s32.totalorder %s862, 63
      %s864 = scalar_select %p863, %s862, 63
      %s865 = smul.addr %s864, 4
      %s866 = scalar_lea.vmem %s25, %s865
      %s867 = smul.u32 32, %s38
      %s868 = smul.u32 32, %s38
      %p869 = scmp.lt.s32.totalorder %s868, 63
      %s870 = scalar_select %p869, %s868, 63
      %s871 = smul.addr %s870, 8
      %s872 = scalar_lea.vmem %s26, %s871
      %s873 = smul.u32 32, %s38
      %v875 = vld [vmem:[%s830] sm:$0xff]
      %v876 = vld [vmem:[%s830 + $0x8] sm:$0xff]
      %v877 = vld [vmem:[%s830 + $0x10] sm:$0xff]
      %v878 = vld [vmem:[%s830 + $0x18] sm:$0xff]
      %v879 = vld [vmem:[%s830 + $0x20] sm:$0xff]
      %v880 = vld [vmem:[%s830 + $0x28] sm:$0xff]
      %v881 = vld [vmem:[%s830 + $0x30] sm:$0xff]
      %v882 = vld [vmem:[%s830 + $0x38] sm:$0xff]
      %v883 = vld [vmem:[%s830 + $0x40] sm:$0xff]
      %v884 = vld [vmem:[%s830 + $0x48] sm:$0xff]
      %v885 = vld [vmem:[%s830 + $0x50] sm:$0xff]
      %v886 = vld [vmem:[%s830 + $0x58] sm:$0xff]
      %v887 = vld [vmem:[%s830 + $0x60] sm:$0xff]
      %v888 = vld [vmem:[%s830 + $0x68] sm:$0xff]
      %v889 = vld [vmem:[%s830 + $0x70] sm:$0xff]
      %v890 = vld [vmem:[%s830 + $0x78] sm:$0xff]
      %v891 = vld [vmem:[%s830 + $0x80] sm:$0xff]
      %v892 = vld [vmem:[%s830 + $0x88] sm:$0xff]
      %v893 = vld [vmem:[%s830 + $0x90] sm:$0xff]
      %v894 = vld [vmem:[%s830 + $0x98] sm:$0xff]
      %v895 = vld [vmem:[%s830 + $0xa0] sm:$0xff]
      %v896 = vld [vmem:[%s830 + $0xa8] sm:$0xff]
      %v897 = vld [vmem:[%s830 + $0xb0] sm:$0xff]
      %v898 = vld [vmem:[%s830 + $0xb8] sm:$0xff]
      %v899 = vld [vmem:[%s830 + $0xc0] sm:$0xff]
      %v900 = vld [vmem:[%s830 + $0xc8] sm:$0xff]
      %v901 = vld [vmem:[%s830 + $0xd0] sm:$0xff]
      %v902 = vld [vmem:[%s830 + $0xd8] sm:$0xff]
      %v903 = vld [vmem:[%s830 + $0xe0] sm:$0xff]
      %v904 = vld [vmem:[%s830 + $0xe8] sm:$0xff]
      %v905 = vld [vmem:[%s830 + $0xf0] sm:$0xff]
      %v906 = vld [vmem:[%s830 + $0xf8] sm:$0xff]
      %v907 = vpack.c.bf16 %v876, %v875
      %v908 = vpack.c.bf16 %v878, %v877
      %v909 = vpack.c.bf16 %v880, %v879
      %v910 = vpack.c.bf16 %v882, %v881
      %v911 = vpack.c.bf16 %v884, %v883
      %v912 = vpack.c.bf16 %v886, %v885
      %v913 = vpack.c.bf16 %v888, %v887
      %v914 = vpack.c.bf16 %v890, %v889
      %v915 = vpack.c.bf16 %v892, %v891
      %v916 = vpack.c.bf16 %v894, %v893
      %v917 = vpack.c.bf16 %v896, %v895
      %v918 = vpack.c.bf16 %v898, %v897
      %v919 = vpack.c.bf16 %v900, %v899
      %v920 = vpack.c.bf16 %v902, %v901
      %v921 = vpack.c.bf16 %v904, %v903
      %v922 = vpack.c.bf16 %v906, %v905
      %v923 = vld [vmem:[%s1] sm:$0xf]
      %v924 = vld [vmem:[%s1 + $0x4] sm:$0xf]
      %v925 = vld [vmem:[%s1 + $0x8] sm:$0xf]
      %v926 = vld [vmem:[%s1 + $0xc] sm:$0xf]
      %v927 = vld [vmem:[%s1 + $0x10] sm:$0xf]
      %v928 = vld [vmem:[%s1 + $0x14] sm:$0xf]
      %v929 = vld [vmem:[%s2] sm:$0x1]
      %v931 = vlaneseq
      %v932 = vshrl.u32 %v931, 7
      %v933 = vsub.s32 0, %v932
      %v934 = vrot.slane %v929, %v933
      %v942 = vunpack.c.l.b16 %v923
      %v943 = vunpack.c.l.b16 %v924
      %v944 = vunpack.c.l.b16 %v925
      %v945 = vunpack.c.l.b16 %v926
      %v946 = vunpack.c.l.b16 %v927
      %v947 = vunpack.c.l.b16 %v928
      %v948 = vpack.c.b16 %v943, %v942
      %v949 = vpack.c.b16 %v945, %v944
      %v950 = vpack.c.b16 %v947, %v946
      %vm954 = vcmask 392192
      %v956 = vsel %vm954, %v907, 0
      %v959 = vsel %vm954, %v908, 0
      %v962 = vsel %vm954, %v909, 0
      %v965 = vsel %vm954, %v910, 0
      %v968 = vsel %vm954, %v911, 0
      %v971 = vsel %vm954, %v912, 0
      %v974 = vsel %vm954, %v913, 0
      %v977 = vsel %vm954, %v914, 0
      %v980 = vsel %vm954, %v915, 0
      %v983 = vsel %vm954, %v916, 0
      %v986 = vsel %vm954, %v917, 0
      %v989 = vsel %vm954, %v918, 0
      %v992 = vsel %vm954, %v919, 0
      %v995 = vsel %vm954, %v920, 0
      %v998 = vsel %vm954, %v921, 0
      %v1001 = vsel %vm954, %v922, 0
      %1003 = vmatprep.subr.bf16.mxu0 0
      %1004 = vmatpush1.bf16.msra.mxu0 0
      %1005 = vmatprep.subr.bf16.mxu0 0
      %1006 = vmatpush1.bf16.msra.mxu0 0
      %1007 = vmatprep.subr.bf16.mxu0 0
      %1008 = vmatpush1.bf16.msra.mxu0 0
      %1009 = vmatprep.subr.bf16.mxu0 0
      %1010 = vmatpush1.bf16.msra.mxu0 0
      %1011 = vmatprep.subr.bf16.mxu0 0
      %1012 = vmatpush1.bf16.msra.mxu0 0
      %1013 = vmatprep.subr.bf16.mxu0 0
      %1014 = vmatpush1.bf16.msra.mxu0 %v950
      %1015 = vmatprep.subr.bf16.mxu0 0
      %1016 = vmatpush1.bf16.msra.mxu0 %v949
      %1017 = vmatprep.subr.bf16.mxu0 0
      %1018 = vmatpush1.bf16.msra.mxu0 %v948
      %1019 = vmatprep.subr.bf16.mxu0 0
      %1020 = vmatpush2.bf16.msra.mxu0 0
      %1021 = vmatprep.subr.bf16.mxu0 0
      %1022 = vmatpush2.bf16.msra.mxu0 0
      %1023 = vmatprep.subr.bf16.mxu0 0
      %1024 = vmatpush2.bf16.msra.mxu0 0
      %1025 = vmatprep.subr.bf16.mxu0 0
      %1026 = vmatpush2.bf16.msra.mxu0 0
      %1027 = vmatprep.subr.bf16.mxu0 0
      %1028 = vmatpush2.bf16.msra.mxu0 0
      %1029 = vmatprep.subr.bf16.mxu0 0
      %1030 = vmatpush2.bf16.msra.mxu0 0
      %1031 = vmatprep.subr.bf16.mxu0 0
      %1032 = vmatpush2.bf16.msra.mxu0 0
      %1033 = vmatprep.subr.bf16.mxu0 0
      %1034 = vmatpush2.bf16.msra.mxu0 0
      %1035 = vmatprep.mubr.bf16.mxu0 0
      %1036 = vmatmul.mubr.bf16.gmra.mxu0 %v956
      %v1037 = vpop.f32.mrf.mxu0
      %v1038 = vadd.f32 %v934, %v1037
      %v1039 = vpop.f32.mrf.mxu0
      %v1040 = vpop.f32.mrf.mxu0
      %v1041 = vadd.f32 %v934, %v1040
      %v1042 = vpop.f32.mrf.mxu0
      %1043 = vmatprep.mubr.bf16.mxu0 0
      %1044 = vmatmul.mubr.bf16.gmra.mxu0 %v959
      %v1045 = vpop.f32.mrf.mxu0
      %v1046 = vadd.f32 %v934, %v1045
      %v1047 = vpop.f32.mrf.mxu0
      %v1048 = vpop.f32.mrf.mxu0
      %v1049 = vadd.f32 %v934, %v1048
      %v1050 = vpop.f32.mrf.mxu0
      %1051 = vmatprep.mubr.bf16.mxu0 0
      %1052 = vmatmul.mubr.bf16.gmra.mxu0 %v962
      %v1053 = vpop.f32.mrf.mxu0
      %v1054 = vadd.f32 %v934, %v1053
      %v1055 = vpop.f32.mrf.mxu0
      %v1056 = vpop.f32.mrf.mxu0
      %v1057 = vadd.f32 %v934, %v1056
      %v1058 = vpop.f32.mrf.mxu0
      %1059 = vmatprep.mubr.bf16.mxu0 0
      %1060 = vmatmul.mubr.bf16.gmra.mxu0 %v965
      %v1061 = vpop.f32.mrf.mxu0
      %v1062 = vadd.f32 %v934, %v1061
      %v1063 = vpop.f32.mrf.mxu0
      %v1064 = vpop.f32.mrf.mxu0
      %v1065 = vadd.f32 %v934, %v1064
      %v1066 = vpop.f32.mrf.mxu0
      %1067 = vmatprep.mubr.bf16.mxu0 0
      %1068 = vmatmul.mubr.bf16.gmra.mxu0 %v968
      %v1069 = vpop.f32.mrf.mxu0
      %v1070 = vadd.f32 %v934, %v1069
      %v1071 = vpop.f32.mrf.mxu0
      %v1072 = vpop.f32.mrf.mxu0
      %v1073 = vadd.f32 %v934, %v1072
      %v1074 = vpop.f32.mrf.mxu0
      %1075 = vmatprep.mubr.bf16.mxu0 0
      %1076 = vmatmul.mubr.bf16.gmra.mxu0 %v971
      %v1077 = vpop.f32.mrf.mxu0
      %v1078 = vadd.f32 %v934, %v1077
      %v1079 = vpop.f32.mrf.mxu0
      %v1080 = vpop.f32.mrf.mxu0
      %v1081 = vadd.f32 %v934, %v1080
      %v1082 = vpop.f32.mrf.mxu0
      %1083 = vmatprep.mubr.bf16.mxu0 0
      %1084 = vmatmul.mubr.bf16.gmra.mxu0 %v974
      %v1085 = vpop.f32.mrf.mxu0
      %v1086 = vadd.f32 %v934, %v1085
      %v1087 = vpop.f32.mrf.mxu0
      %v1088 = vpop.f32.mrf.mxu0
      %v1089 = vadd.f32 %v934, %v1088
      %v1090 = vpop.f32.mrf.mxu0
      %1091 = vmatprep.mubr.bf16.mxu0 0
      %1092 = vmatmul.mubr.bf16.gmra.mxu0 %v977
      %v1093 = vpop.f32.mrf.mxu0
      %v1094 = vadd.f32 %v934, %v1093
      %v1095 = vpop.f32.mrf.mxu0
      %v1096 = vpop.f32.mrf.mxu0
      %v1097 = vadd.f32 %v934, %v1096
      %v1098 = vpop.f32.mrf.mxu0
      %1099 = vmatprep.mubr.bf16.mxu0 0
      %1100 = vmatmul.mubr.bf16.gmra.mxu0 %v980
      %v1101 = vpop.f32.mrf.mxu0
      %v1102 = vadd.f32 %v934, %v1101
      %v1103 = vpop.f32.mrf.mxu0
      %v1104 = vpop.f32.mrf.mxu0
      %v1105 = vadd.f32 %v934, %v1104
      %v1106 = vpop.f32.mrf.mxu0
      %1107 = vmatprep.mubr.bf16.mxu0 0
      %1108 = vmatmul.mubr.bf16.gmra.mxu0 %v983
      %v1109 = vpop.f32.mrf.mxu0
      %v1110 = vadd.f32 %v934, %v1109
      %v1111 = vpop.f32.mrf.mxu0
      %v1112 = vpop.f32.mrf.mxu0
      %v1113 = vadd.f32 %v934, %v1112
      %v1114 = vpop.f32.mrf.mxu0
      %1115 = vmatprep.mubr.bf16.mxu0 0
      %1116 = vmatmul.mubr.bf16.gmra.mxu0 %v986
      %v1117 = vpop.f32.mrf.mxu0
      %v1118 = vadd.f32 %v934, %v1117
      %v1119 = vpop.f32.mrf.mxu0
      %v1120 = vpop.f32.mrf.mxu0
      %v1121 = vadd.f32 %v934, %v1120
      %v1122 = vpop.f32.mrf.mxu0
      %1123 = vmatprep.mubr.bf16.mxu0 0
      %1124 = vmatmul.mubr.bf16.gmra.mxu0 %v989
      %v1125 = vpop.f32.mrf.mxu0
      %v1126 = vadd.f32 %v934, %v1125
      %v1127 = vpop.f32.mrf.mxu0
      %v1128 = vpop.f32.mrf.mxu0
      %v1129 = vadd.f32 %v934, %v1128
      %v1130 = vpop.f32.mrf.mxu0
      %1131 = vmatprep.mubr.bf16.mxu0 0
      %1132 = vmatmul.mubr.bf16.gmra.mxu0 %v992
      %v1133 = vpop.f32.mrf.mxu0
      %v1134 = vadd.f32 %v934, %v1133
      %v1135 = vpop.f32.mrf.mxu0
      %v1136 = vpop.f32.mrf.mxu0
      %v1137 = vadd.f32 %v934, %v1136
      %v1138 = vpop.f32.mrf.mxu0
      %1139 = vmatprep.mubr.bf16.mxu0 0
      %1140 = vmatmul.mubr.bf16.gmra.mxu0 %v995
      %v1141 = vpop.f32.mrf.mxu0
      %v1142 = vadd.f32 %v934, %v1141
      %v1143 = vpop.f32.mrf.mxu0
      %v1144 = vpop.f32.mrf.mxu0
      %v1145 = vadd.f32 %v934, %v1144
      %v1146 = vpop.f32.mrf.mxu0
      %1147 = vmatprep.mubr.bf16.mxu0 0
      %1148 = vmatmul.mubr.bf16.gmra.mxu0 %v998
      %v1149 = vpop.f32.mrf.mxu0
      %v1150 = vadd.f32 %v934, %v1149
      %v1151 = vpop.f32.mrf.mxu0
      %v1152 = vpop.f32.mrf.mxu0
      %v1153 = vadd.f32 %v934, %v1152
      %v1154 = vpop.f32.mrf.mxu0
      %1155 = vmatprep.mubr.bf16.mxu0 0
      %1156 = vmatmul.mubr.bf16.gmra.mxu0 %v1001
      %v1157 = vpop.f32.mrf.mxu0
      %v1158 = vadd.f32 %v934, %v1157
      %v1159 = vpop.f32.mrf.mxu0
      %v1160 = vpop.f32.mrf.mxu0
      %v1161 = vadd.f32 %v934, %v1160
      %v1162 = vpop.f32.mrf.mxu0
      %1163 = vdwg.mxu0
      %v1164 = vmax.f32 %v1038, 0.0
      %v1165 = vmax.f32 %v1041, 0.0
      %v1166 = vmax.f32 %v1046, 0.0
      %v1167 = vmax.f32 %v1049, 0.0
      %v1168 = vmax.f32 %v1054, 0.0
      %v1169 = vmax.f32 %v1057, 0.0
      %v1170 = vmax.f32 %v1062, 0.0
      %v1171 = vmax.f32 %v1065, 0.0
      %v1172 = vmax.f32 %v1070, 0.0
      %v1173 = vmax.f32 %v1073, 0.0
      %v1174 = vmax.f32 %v1078, 0.0
      %v1175 = vmax.f32 %v1081, 0.0
      %v1176 = vmax.f32 %v1086, 0.0
      %v1177 = vmax.f32 %v1089, 0.0
      %v1178 = vmax.f32 %v1094, 0.0
      %v1179 = vmax.f32 %v1097, 0.0
      %v1180 = vmax.f32 %v1102, 0.0
      %v1181 = vmax.f32 %v1105, 0.0
      %v1182 = vmax.f32 %v1110, 0.0
      %v1183 = vmax.f32 %v1113, 0.0
      %v1184 = vmax.f32 %v1118, 0.0
      %v1185 = vmax.f32 %v1121, 0.0
      %v1186 = vmax.f32 %v1126, 0.0
      %v1187 = vmax.f32 %v1129, 0.0
      %v1188 = vmax.f32 %v1134, 0.0
      %v1189 = vmax.f32 %v1137, 0.0
      %v1190 = vmax.f32 %v1142, 0.0
      %v1191 = vmax.f32 %v1145, 0.0
      %v1192 = vmax.f32 %v1150, 0.0
      %v1193 = vmax.f32 %v1153, 0.0
      %v1194 = vmax.f32 %v1158, 0.0
      %v1195 = vmax.f32 %v1161, 0.0
      %v1196 = vpack.c.bf16 %v1165, %v1164
      %v1197 = vpack.c.bf16 %v1167, %v1166
      %v1198 = vpack.c.bf16 %v1169, %v1168
      %v1199 = vpack.c.bf16 %v1171, %v1170
      %v1200 = vpack.c.bf16 %v1173, %v1172
      %v1201 = vpack.c.bf16 %v1175, %v1174
      %v1202 = vpack.c.bf16 %v1177, %v1176
      %v1203 = vpack.c.bf16 %v1179, %v1178
      %v1204 = vpack.c.bf16 %v1181, %v1180
      %v1205 = vpack.c.bf16 %v1183, %v1182
      %v1206 = vpack.c.bf16 %v1185, %v1184
      %v1207 = vpack.c.bf16 %v1187, %v1186
      %v1208 = vpack.c.bf16 %v1189, %v1188
      %v1209 = vpack.c.bf16 %v1191, %v1190
      %v1210 = vpack.c.bf16 %v1193, %v1192
      %v1211 = vpack.c.bf16 %v1195, %v1194
      %v1212 = vld [vmem:[%s3] sm:$0xf]
      %v1213 = vld [vmem:[%s3 + $0x4] sm:$0xf]
      %v1214 = vld [vmem:[%s3 + $0x8] sm:$0xf]
      %v1215 = vld [vmem:[%s3 + $0xc] sm:$0xf]
      %v1216 = vld [vmem:[%s4] sm:$0x1]
      %v1218 = vlaneseq
      %v1219 = vshrl.u32 %v1218, 7
      %v1220 = vsub.s32 0, %v1219
      %v1221 = vrot.slane %v1216, %v1220
      %v1227 = vunpack.c.l.b16 %v1212
      %v1228 = vunpack.c.l.b16 %v1213
      %v1229 = vunpack.c.l.b16 %v1214
      %v1230 = vunpack.c.l.b16 %v1215
      %v1231 = vpack.c.b16 %v1228, %v1227
      %v1232 = vpack.c.b16 %v1230, %v1229
      %vm1235 = vcmask 261120
      %v1237 = vsel %vm1235, %v1196, 0
      %v1240 = vsel %vm1235, %v1197, 0
      %v1243 = vsel %vm1235, %v1198, 0
      %v1246 = vsel %vm1235, %v1199, 0
      %v1249 = vsel %vm1235, %v1200, 0
      %v1252 = vsel %vm1235, %v1201, 0
      %v1255 = vsel %vm1235, %v1202, 0
      %v1258 = vsel %vm1235, %v1203, 0
      %v1261 = vsel %vm1235, %v1204, 0
      %v1264 = vsel %vm1235, %v1205, 0
      %v1267 = vsel %vm1235, %v1206, 0
      %v1270 = vsel %vm1235, %v1207, 0
      %v1273 = vsel %vm1235, %v1208, 0
      %v1276 = vsel %vm1235, %v1209, 0
      %v1279 = vsel %vm1235, %v1210, 0
      %v1282 = vsel %vm1235, %v1211, 0
      %1284 = vmatprep.subr.bf16.mxu0 0
      %1285 = vmatpush1.bf16.msra.mxu0 0
      %1286 = vmatprep.subr.bf16.mxu0 0
      %1287 = vmatpush1.bf16.msra.mxu0 0
      %1288 = vmatprep.subr.bf16.mxu0 0
      %1289 = vmatpush1.bf16.msra.mxu0 0
      %1290 = vmatprep.subr.bf16.mxu0 0
      %1291 = vmatpush1.bf16.msra.mxu0 0
      %1292 = vmatprep.subr.bf16.mxu0 0
      %1293 = vmatpush1.bf16.msra.mxu0 0
      %1294 = vmatprep.subr.bf16.mxu0 0
      %1295 = vmatpush1.bf16.msra.mxu0 0
      %1296 = vmatprep.subr.bf16.mxu0 0
      %1297 = vmatpush1.bf16.msra.mxu0 %v1232
      %1298 = vmatprep.subr.bf16.mxu0 0
      %1299 = vmatpush1.bf16.msra.mxu0 %v1231
      %1300 = vmatprep.subr.bf16.mxu0 0
      %1301 = vmatpush2.bf16.msra.mxu0 0
      %1302 = vmatprep.subr.bf16.mxu0 0
      %1303 = vmatpush2.bf16.msra.mxu0 0
      %1304 = vmatprep.subr.bf16.mxu0 0
      %1305 = vmatpush2.bf16.msra.mxu0 0
      %1306 = vmatprep.subr.bf16.mxu0 0
      %1307 = vmatpush2.bf16.msra.mxu0 0
      %1308 = vmatprep.subr.bf16.mxu0 0
      %1309 = vmatpush2.bf16.msra.mxu0 0
      %1310 = vmatprep.subr.bf16.mxu0 0
      %1311 = vmatpush2.bf16.msra.mxu0 0
      %1312 = vmatprep.subr.bf16.mxu0 0
      %1313 = vmatpush2.bf16.msra.mxu0 0
      %1314 = vmatprep.subr.bf16.mxu0 0
      %1315 = vmatpush2.bf16.msra.mxu0 0
      %1316 = vmatprep.mubr.bf16.mxu0 0
      %1317 = vmatmul.mubr.bf16.gmra.mxu0 %v1237
      %v1318 = vpop.f32.mrf.mxu0
      %v1319 = vadd.f32 %v1221, %v1318
      %v1320 = vpop.f32.mrf.mxu0
      %v1321 = vpop.f32.mrf.mxu0
      %v1322 = vadd.f32 %v1221, %v1321
      %v1323 = vpop.f32.mrf.mxu0
      %1324 = vmatprep.mubr.bf16.mxu0 0
      %1325 = vmatmul.mubr.bf16.gmra.mxu0 %v1240
      %v1326 = vpop.f32.mrf.mxu0
      %v1327 = vadd.f32 %v1221, %v1326
      %v1328 = vpop.f32.mrf.mxu0
      %v1329 = vpop.f32.mrf.mxu0
      %v1330 = vadd.f32 %v1221, %v1329
      %v1331 = vpop.f32.mrf.mxu0
      %1332 = vmatprep.mubr.bf16.mxu0 0
      %1333 = vmatmul.mubr.bf16.gmra.mxu0 %v1243
      %v1334 = vpop.f32.mrf.mxu0
      %v1335 = vadd.f32 %v1221, %v1334
      %v1336 = vpop.f32.mrf.mxu0
      %v1337 = vpop.f32.mrf.mxu0
      %v1338 = vadd.f32 %v1221, %v1337
      %v1339 = vpop.f32.mrf.mxu0
      %1340 = vmatprep.mubr.bf16.mxu0 0
      %1341 = vmatmul.mubr.bf16.gmra.mxu0 %v1246
      %v1342 = vpop.f32.mrf.mxu0
      %v1343 = vadd.f32 %v1221, %v1342
      %v1344 = vpop.f32.mrf.mxu0
      %v1345 = vpop.f32.mrf.mxu0
      %v1346 = vadd.f32 %v1221, %v1345
      %v1347 = vpop.f32.mrf.mxu0
      %1348 = vmatprep.mubr.bf16.mxu0 0
      %1349 = vmatmul.mubr.bf16.gmra.mxu0 %v1249
      %v1350 = vpop.f32.mrf.mxu0
      %v1351 = vadd.f32 %v1221, %v1350
      %v1352 = vpop.f32.mrf.mxu0
      %v1353 = vpop.f32.mrf.mxu0
      %v1354 = vadd.f32 %v1221, %v1353
      %v1355 = vpop.f32.mrf.mxu0
      %1356 = vmatprep.mubr.bf16.mxu0 0
      %1357 = vmatmul.mubr.bf16.gmra.mxu0 %v1252
      %v1358 = vpop.f32.mrf.mxu0
      %v1359 = vadd.f32 %v1221, %v1358
      %v1360 = vpop.f32.mrf.mxu0
      %v1361 = vpop.f32.mrf.mxu0
      %v1362 = vadd.f32 %v1221, %v1361
      %v1363 = vpop.f32.mrf.mxu0
      %1364 = vmatprep.mubr.bf16.mxu0 0
      %1365 = vmatmul.mubr.bf16.gmra.mxu0 %v1255
      %v1366 = vpop.f32.mrf.mxu0
      %v1367 = vadd.f32 %v1221, %v1366
      %v1368 = vpop.f32.mrf.mxu0
      %v1369 = vpop.f32.mrf.mxu0
      %v1370 = vadd.f32 %v1221, %v1369
      %v1371 = vpop.f32.mrf.mxu0
      %1372 = vmatprep.mubr.bf16.mxu0 0
      %1373 = vmatmul.mubr.bf16.gmra.mxu0 %v1258
      %v1374 = vpop.f32.mrf.mxu0
      %v1375 = vadd.f32 %v1221, %v1374
      %v1376 = vpop.f32.mrf.mxu0
      %v1377 = vpop.f32.mrf.mxu0
      %v1378 = vadd.f32 %v1221, %v1377
      %v1379 = vpop.f32.mrf.mxu0
      %1380 = vmatprep.mubr.bf16.mxu0 0
      %1381 = vmatmul.mubr.bf16.gmra.mxu0 %v1261
      %v1382 = vpop.f32.mrf.mxu0
      %v1383 = vadd.f32 %v1221, %v1382
      %v1384 = vpop.f32.mrf.mxu0
      %v1385 = vpop.f32.mrf.mxu0
      %v1386 = vadd.f32 %v1221, %v1385
      %v1387 = vpop.f32.mrf.mxu0
      %1388 = vmatprep.mubr.bf16.mxu0 0
      %1389 = vmatmul.mubr.bf16.gmra.mxu0 %v1264
      %v1390 = vpop.f32.mrf.mxu0
      %v1391 = vadd.f32 %v1221, %v1390
      %v1392 = vpop.f32.mrf.mxu0
      %v1393 = vpop.f32.mrf.mxu0
      %v1394 = vadd.f32 %v1221, %v1393
      %v1395 = vpop.f32.mrf.mxu0
      %1396 = vmatprep.mubr.bf16.mxu0 0
      %1397 = vmatmul.mubr.bf16.gmra.mxu0 %v1267
      %v1398 = vpop.f32.mrf.mxu0
      %v1399 = vadd.f32 %v1221, %v1398
      %v1400 = vpop.f32.mrf.mxu0
      %v1401 = vpop.f32.mrf.mxu0
      %v1402 = vadd.f32 %v1221, %v1401
      %v1403 = vpop.f32.mrf.mxu0
      %1404 = vmatprep.mubr.bf16.mxu0 0
      %1405 = vmatmul.mubr.bf16.gmra.mxu0 %v1270
      %v1406 = vpop.f32.mrf.mxu0
      %v1407 = vadd.f32 %v1221, %v1406
      %v1408 = vpop.f32.mrf.mxu0
      %v1409 = vpop.f32.mrf.mxu0
      %v1410 = vadd.f32 %v1221, %v1409
      %v1411 = vpop.f32.mrf.mxu0
      %1412 = vmatprep.mubr.bf16.mxu0 0
      %1413 = vmatmul.mubr.bf16.gmra.mxu0 %v1273
      %v1414 = vpop.f32.mrf.mxu0
      %v1415 = vadd.f32 %v1221, %v1414
      %v1416 = vpop.f32.mrf.mxu0
      %v1417 = vpop.f32.mrf.mxu0
      %v1418 = vadd.f32 %v1221, %v1417
      %v1419 = vpop.f32.mrf.mxu0
      %1420 = vmatprep.mubr.bf16.mxu0 0
      %1421 = vmatmul.mubr.bf16.gmra.mxu0 %v1276
      %v1422 = vpop.f32.mrf.mxu0
      %v1423 = vadd.f32 %v1221, %v1422
      %v1424 = vpop.f32.mrf.mxu0
      %v1425 = vpop.f32.mrf.mxu0
      %v1426 = vadd.f32 %v1221, %v1425
      %v1427 = vpop.f32.mrf.mxu0
      %1428 = vmatprep.mubr.bf16.mxu0 0
      %1429 = vmatmul.mubr.bf16.gmra.mxu0 %v1279
      %v1430 = vpop.f32.mrf.mxu0
      %v1431 = vadd.f32 %v1221, %v1430
      %v1432 = vpop.f32.mrf.mxu0
      %v1433 = vpop.f32.mrf.mxu0
      %v1434 = vadd.f32 %v1221, %v1433
      %v1435 = vpop.f32.mrf.mxu0
      %1436 = vmatprep.mubr.bf16.mxu0 0
      %1437 = vmatmul.mubr.bf16.gmra.mxu0 %v1282
      %v1438 = vpop.f32.mrf.mxu0
      %v1439 = vadd.f32 %v1221, %v1438
      %v1440 = vpop.f32.mrf.mxu0
      %v1441 = vpop.f32.mrf.mxu0
      %v1442 = vadd.f32 %v1221, %v1441
      %v1443 = vpop.f32.mrf.mxu0
      %1444 = vdwg.mxu0
      %v1445 = vmax.f32 %v1319, 0.0
      %v1446 = vmax.f32 %v1322, 0.0
      %v1447 = vmax.f32 %v1327, 0.0
      %v1448 = vmax.f32 %v1330, 0.0
      %v1449 = vmax.f32 %v1335, 0.0
      %v1450 = vmax.f32 %v1338, 0.0
      %v1451 = vmax.f32 %v1343, 0.0
      %v1452 = vmax.f32 %v1346, 0.0
      %v1453 = vmax.f32 %v1351, 0.0
      %v1454 = vmax.f32 %v1354, 0.0
      %v1455 = vmax.f32 %v1359, 0.0
      %v1456 = vmax.f32 %v1362, 0.0
      %v1457 = vmax.f32 %v1367, 0.0
      %v1458 = vmax.f32 %v1370, 0.0
      %v1459 = vmax.f32 %v1375, 0.0
      %v1460 = vmax.f32 %v1378, 0.0
      %v1461 = vmax.f32 %v1383, 0.0
      %v1462 = vmax.f32 %v1386, 0.0
      %v1463 = vmax.f32 %v1391, 0.0
      %v1464 = vmax.f32 %v1394, 0.0
      %v1465 = vmax.f32 %v1399, 0.0
      %v1466 = vmax.f32 %v1402, 0.0
      %v1467 = vmax.f32 %v1407, 0.0
      %v1468 = vmax.f32 %v1410, 0.0
      %v1469 = vmax.f32 %v1415, 0.0
      %v1470 = vmax.f32 %v1418, 0.0
      %v1471 = vmax.f32 %v1423, 0.0
      %v1472 = vmax.f32 %v1426, 0.0
      %v1473 = vmax.f32 %v1431, 0.0
      %v1474 = vmax.f32 %v1434, 0.0
      %v1475 = vmax.f32 %v1439, 0.0
      %v1476 = vmax.f32 %v1442, 0.0
      %v1477 = vpack.c.bf16 %v1446, %v1445
      %v1478 = vpack.c.bf16 %v1448, %v1447
      %v1479 = vpack.c.bf16 %v1450, %v1449
      %v1480 = vpack.c.bf16 %v1452, %v1451
      %v1481 = vpack.c.bf16 %v1454, %v1453
      %v1482 = vpack.c.bf16 %v1456, %v1455
      %v1483 = vpack.c.bf16 %v1458, %v1457
      %v1484 = vpack.c.bf16 %v1460, %v1459
      %v1485 = vpack.c.bf16 %v1462, %v1461
      %v1486 = vpack.c.bf16 %v1464, %v1463
      %v1487 = vpack.c.bf16 %v1466, %v1465
      %v1488 = vpack.c.bf16 %v1468, %v1467
      %v1489 = vpack.c.bf16 %v1470, %v1469
      %v1490 = vpack.c.bf16 %v1472, %v1471
      %v1491 = vpack.c.bf16 %v1474, %v1473
      %v1492 = vpack.c.bf16 %v1476, %v1475
      %v1493 = vld [vmem:[%s5] sm:$0xf]
      %v1494 = vld [vmem:[%s5 + $0x4] sm:$0xf]
      %v1495 = vld [vmem:[%s5 + $0x8] sm:$0xf]
      %v1496 = vld [vmem:[%s5 + $0xc] sm:$0xf]
      %v1497 = vld [vmem:[%s6] sm:$0x1]
      %v1499 = vlaneseq
      %v1500 = vshrl.u32 %v1499, 7
      %v1501 = vsub.s32 0, %v1500
      %v1502 = vrot.slane %v1497, %v1501
      %v1508 = vunpack.c.l.b16 %v1493
      %v1509 = vunpack.c.l.b16 %v1494
      %v1510 = vunpack.c.l.b16 %v1495
      %v1511 = vunpack.c.l.b16 %v1496
      %v1512 = vpack.c.b16 %v1509, %v1508
      %v1513 = vpack.c.b16 %v1511, %v1510
      %v1517 = vsel %vm1235, %v1477, 0
      %v1520 = vsel %vm1235, %v1478, 0
      %v1523 = vsel %vm1235, %v1479, 0
      %v1526 = vsel %vm1235, %v1480, 0
      %v1529 = vsel %vm1235, %v1481, 0
      %v1532 = vsel %vm1235, %v1482, 0
      %v1535 = vsel %vm1235, %v1483, 0
      %v1538 = vsel %vm1235, %v1484, 0
      %v1541 = vsel %vm1235, %v1485, 0
      %v1544 = vsel %vm1235, %v1486, 0
      %v1547 = vsel %vm1235, %v1487, 0
      %v1550 = vsel %vm1235, %v1488, 0
      %v1553 = vsel %vm1235, %v1489, 0
      %v1556 = vsel %vm1235, %v1490, 0
      %v1559 = vsel %vm1235, %v1491, 0
      %v1562 = vsel %vm1235, %v1492, 0
      %1564 = vmatprep.subr.bf16.mxu0 0
      %1565 = vmatpush1.bf16.msra.mxu0 0
      %1566 = vmatprep.subr.bf16.mxu0 0
      %1567 = vmatpush1.bf16.msra.mxu0 0
      %1568 = vmatprep.subr.bf16.mxu0 0
      %1569 = vmatpush1.bf16.msra.mxu0 0
      %1570 = vmatprep.subr.bf16.mxu0 0
      %1571 = vmatpush1.bf16.msra.mxu0 0
      %1572 = vmatprep.subr.bf16.mxu0 0
      %1573 = vmatpush1.bf16.msra.mxu0 0
      %1574 = vmatprep.subr.bf16.mxu0 0
      %1575 = vmatpush1.bf16.msra.mxu0 0
      %1576 = vmatprep.subr.bf16.mxu0 0
      %1577 = vmatpush1.bf16.msra.mxu0 %v1513
      %1578 = vmatprep.subr.bf16.mxu0 0
      %1579 = vmatpush1.bf16.msra.mxu0 %v1512
      %1580 = vmatprep.subr.bf16.mxu0 0
      %1581 = vmatpush2.bf16.msra.mxu0 0
      %1582 = vmatprep.subr.bf16.mxu0 0
      %1583 = vmatpush2.bf16.msra.mxu0 0
      %1584 = vmatprep.subr.bf16.mxu0 0
      %1585 = vmatpush2.bf16.msra.mxu0 0
      %1586 = vmatprep.subr.bf16.mxu0 0
      %1587 = vmatpush2.bf16.msra.mxu0 0
      %1588 = vmatprep.subr.bf16.mxu0 0
      %1589 = vmatpush2.bf16.msra.mxu0 0
      %1590 = vmatprep.subr.bf16.mxu0 0
      %1591 = vmatpush2.bf16.msra.mxu0 0
      %1592 = vmatprep.subr.bf16.mxu0 0
      %1593 = vmatpush2.bf16.msra.mxu0 0
      %1594 = vmatprep.subr.bf16.mxu0 0
      %1595 = vmatpush2.bf16.msra.mxu0 0
      %1596 = vmatprep.mubr.bf16.mxu0 0
      %1597 = vmatmul.mubr.bf16.gmra.mxu0 %v1517
      %v1598 = vpop.f32.mrf.mxu0
      %v1599 = vadd.f32 %v1502, %v1598
      %v1600 = vpop.f32.mrf.mxu0
      %v1601 = vpop.f32.mrf.mxu0
      %v1602 = vadd.f32 %v1502, %v1601
      %v1603 = vpop.f32.mrf.mxu0
      %1604 = vmatprep.mubr.bf16.mxu0 0
      %1605 = vmatmul.mubr.bf16.gmra.mxu0 %v1520
      %v1606 = vpop.f32.mrf.mxu0
      %v1607 = vadd.f32 %v1502, %v1606
      %v1608 = vpop.f32.mrf.mxu0
      %v1609 = vpop.f32.mrf.mxu0
      %v1610 = vadd.f32 %v1502, %v1609
      %v1611 = vpop.f32.mrf.mxu0
      %1612 = vmatprep.mubr.bf16.mxu0 0
      %1613 = vmatmul.mubr.bf16.gmra.mxu0 %v1523
      %v1614 = vpop.f32.mrf.mxu0
      %v1615 = vadd.f32 %v1502, %v1614
      %v1616 = vpop.f32.mrf.mxu0
      %v1617 = vpop.f32.mrf.mxu0
      %v1618 = vadd.f32 %v1502, %v1617
      %v1619 = vpop.f32.mrf.mxu0
      %1620 = vmatprep.mubr.bf16.mxu0 0
      %1621 = vmatmul.mubr.bf16.gmra.mxu0 %v1526
      %v1622 = vpop.f32.mrf.mxu0
      %v1623 = vadd.f32 %v1502, %v1622
      %v1624 = vpop.f32.mrf.mxu0
      %v1625 = vpop.f32.mrf.mxu0
      %v1626 = vadd.f32 %v1502, %v1625
      %v1627 = vpop.f32.mrf.mxu0
      %1628 = vmatprep.mubr.bf16.mxu0 0
      %1629 = vmatmul.mubr.bf16.gmra.mxu0 %v1529
      %v1630 = vpop.f32.mrf.mxu0
      %v1631 = vadd.f32 %v1502, %v1630
      %v1632 = vpop.f32.mrf.mxu0
      %v1633 = vpop.f32.mrf.mxu0
      %v1634 = vadd.f32 %v1502, %v1633
      %v1635 = vpop.f32.mrf.mxu0
      %1636 = vmatprep.mubr.bf16.mxu0 0
      %1637 = vmatmul.mubr.bf16.gmra.mxu0 %v1532
      %v1638 = vpop.f32.mrf.mxu0
      %v1639 = vadd.f32 %v1502, %v1638
      %v1640 = vpop.f32.mrf.mxu0
      %v1641 = vpop.f32.mrf.mxu0
      %v1642 = vadd.f32 %v1502, %v1641
      %v1643 = vpop.f32.mrf.mxu0
      %1644 = vmatprep.mubr.bf16.mxu0 0
      %1645 = vmatmul.mubr.bf16.gmra.mxu0 %v1535
      %v1646 = vpop.f32.mrf.mxu0
      %v1647 = vadd.f32 %v1502, %v1646
      %v1648 = vpop.f32.mrf.mxu0
      %v1649 = vpop.f32.mrf.mxu0
      %v1650 = vadd.f32 %v1502, %v1649
      %v1651 = vpop.f32.mrf.mxu0
      %1652 = vmatprep.mubr.bf16.mxu0 0
      %1653 = vmatmul.mubr.bf16.gmra.mxu0 %v1538
      %v1654 = vpop.f32.mrf.mxu0
      %v1655 = vadd.f32 %v1502, %v1654
      %v1656 = vpop.f32.mrf.mxu0
      %v1657 = vpop.f32.mrf.mxu0
      %v1658 = vadd.f32 %v1502, %v1657
      %v1659 = vpop.f32.mrf.mxu0
      %1660 = vmatprep.mubr.bf16.mxu0 0
      %1661 = vmatmul.mubr.bf16.gmra.mxu0 %v1541
      %v1662 = vpop.f32.mrf.mxu0
      %v1663 = vadd.f32 %v1502, %v1662
      %v1664 = vpop.f32.mrf.mxu0
      %v1665 = vpop.f32.mrf.mxu0
      %v1666 = vadd.f32 %v1502, %v1665
      %v1667 = vpop.f32.mrf.mxu0
      %1668 = vmatprep.mubr.bf16.mxu0 0
      %1669 = vmatmul.mubr.bf16.gmra.mxu0 %v1544
      %v1670 = vpop.f32.mrf.mxu0
      %v1671 = vadd.f32 %v1502, %v1670
      %v1672 = vpop.f32.mrf.mxu0
      %v1673 = vpop.f32.mrf.mxu0
      %v1674 = vadd.f32 %v1502, %v1673
      %v1675 = vpop.f32.mrf.mxu0
      %1676 = vmatprep.mubr.bf16.mxu0 0
      %1677 = vmatmul.mubr.bf16.gmra.mxu0 %v1547
      %v1678 = vpop.f32.mrf.mxu0
      %v1679 = vadd.f32 %v1502, %v1678
      %v1680 = vpop.f32.mrf.mxu0
      %v1681 = vpop.f32.mrf.mxu0
      %v1682 = vadd.f32 %v1502, %v1681
      %v1683 = vpop.f32.mrf.mxu0
      %1684 = vmatprep.mubr.bf16.mxu0 0
      %1685 = vmatmul.mubr.bf16.gmra.mxu0 %v1550
      %v1686 = vpop.f32.mrf.mxu0
      %v1687 = vadd.f32 %v1502, %v1686
      %v1688 = vpop.f32.mrf.mxu0
      %v1689 = vpop.f32.mrf.mxu0
      %v1690 = vadd.f32 %v1502, %v1689
      %v1691 = vpop.f32.mrf.mxu0
      %1692 = vmatprep.mubr.bf16.mxu0 0
      %1693 = vmatmul.mubr.bf16.gmra.mxu0 %v1553
      %v1694 = vpop.f32.mrf.mxu0
      %v1695 = vadd.f32 %v1502, %v1694
      %v1696 = vpop.f32.mrf.mxu0
      %v1697 = vpop.f32.mrf.mxu0
      %v1698 = vadd.f32 %v1502, %v1697
      %v1699 = vpop.f32.mrf.mxu0
      %1700 = vmatprep.mubr.bf16.mxu0 0
      %1701 = vmatmul.mubr.bf16.gmra.mxu0 %v1556
      %v1702 = vpop.f32.mrf.mxu0
      %v1703 = vadd.f32 %v1502, %v1702
      %v1704 = vpop.f32.mrf.mxu0
      %v1705 = vpop.f32.mrf.mxu0
      %v1706 = vadd.f32 %v1502, %v1705
      %v1707 = vpop.f32.mrf.mxu0
      %1708 = vmatprep.mubr.bf16.mxu0 0
      %1709 = vmatmul.mubr.bf16.gmra.mxu0 %v1559
      %v1710 = vpop.f32.mrf.mxu0
      %v1711 = vadd.f32 %v1502, %v1710
      %v1712 = vpop.f32.mrf.mxu0
      %v1713 = vpop.f32.mrf.mxu0
      %v1714 = vadd.f32 %v1502, %v1713
      %v1715 = vpop.f32.mrf.mxu0
      %1716 = vmatprep.mubr.bf16.mxu0 0
      %1717 = vmatmul.mubr.bf16.gmra.mxu0 %v1562
      %v1718 = vpop.f32.mrf.mxu0
      %v1719 = vadd.f32 %v1502, %v1718
      %v1720 = vpop.f32.mrf.mxu0
      %v1721 = vpop.f32.mrf.mxu0
      %v1722 = vadd.f32 %v1502, %v1721
      %v1723 = vpop.f32.mrf.mxu0
      %1724 = vdwg.mxu0
      %v1725 = vmax.f32 %v1599, 0.0
      %v1726 = vmax.f32 %v1602, 0.0
      %v1727 = vmax.f32 %v1607, 0.0
      %v1728 = vmax.f32 %v1610, 0.0
      %v1729 = vmax.f32 %v1615, 0.0
      %v1730 = vmax.f32 %v1618, 0.0
      %v1731 = vmax.f32 %v1623, 0.0
      %v1732 = vmax.f32 %v1626, 0.0
      %v1733 = vmax.f32 %v1631, 0.0
      %v1734 = vmax.f32 %v1634, 0.0
      %v1735 = vmax.f32 %v1639, 0.0
      %v1736 = vmax.f32 %v1642, 0.0
      %v1737 = vmax.f32 %v1647, 0.0
      %v1738 = vmax.f32 %v1650, 0.0
      %v1739 = vmax.f32 %v1655, 0.0
      %v1740 = vmax.f32 %v1658, 0.0
      %v1741 = vmax.f32 %v1663, 0.0
      %v1742 = vmax.f32 %v1666, 0.0
      %v1743 = vmax.f32 %v1671, 0.0
      %v1744 = vmax.f32 %v1674, 0.0
      %v1745 = vmax.f32 %v1679, 0.0
      %v1746 = vmax.f32 %v1682, 0.0
      %v1747 = vmax.f32 %v1687, 0.0
      %v1748 = vmax.f32 %v1690, 0.0
      %v1749 = vmax.f32 %v1695, 0.0
      %v1750 = vmax.f32 %v1698, 0.0
      %v1751 = vmax.f32 %v1703, 0.0
      %v1752 = vmax.f32 %v1706, 0.0
      %v1753 = vmax.f32 %v1711, 0.0
      %v1754 = vmax.f32 %v1714, 0.0
      %v1755 = vmax.f32 %v1719, 0.0
      %v1756 = vmax.f32 %v1722, 0.0
      %v1757 = vpack.c.bf16 %v1726, %v1725
      %v1758 = vpack.c.bf16 %v1728, %v1727
      %v1759 = vpack.c.bf16 %v1730, %v1729
      %v1760 = vpack.c.bf16 %v1732, %v1731
      %v1761 = vpack.c.bf16 %v1734, %v1733
      %v1762 = vpack.c.bf16 %v1736, %v1735
      %v1763 = vpack.c.bf16 %v1738, %v1737
      %v1764 = vpack.c.bf16 %v1740, %v1739
      %v1765 = vpack.c.bf16 %v1742, %v1741
      %v1766 = vpack.c.bf16 %v1744, %v1743
      %v1767 = vpack.c.bf16 %v1746, %v1745
      %v1768 = vpack.c.bf16 %v1748, %v1747
      %v1769 = vpack.c.bf16 %v1750, %v1749
      %v1770 = vpack.c.bf16 %v1752, %v1751
      %v1771 = vpack.c.bf16 %v1754, %v1753
      %v1772 = vpack.c.bf16 %v1756, %v1755
      %v1773 = vld [vmem:[%s7] sm:$0xf]
      %v1774 = vld [vmem:[%s7 + $0x4] sm:$0xf]
      %v1775 = vld [vmem:[%s7 + $0x8] sm:$0xf]
      %v1776 = vld [vmem:[%s7 + $0xc] sm:$0xf]
      %v1777 = vld [vmem:[%s7 + $0x10] sm:$0xf]
      %v1778 = vld [vmem:[%s7 + $0x14] sm:$0xf]
      %v1779 = vld [vmem:[%s7 + $0x18] sm:$0xf]
      %v1780 = vld [vmem:[%s7 + $0x1c] sm:$0xf]
      %v1781 = vld [vmem:[%s8] sm:$0x1]
      %v1783 = vlaneseq
      %v1784 = vshrl.u32 %v1783, 7
      %v1785 = vsub.s32 0, %v1784
      %v1786 = vrot.slane %v1781, %v1785
      %v1796 = vunpack.c.l.b16 %v1773
      %v1797 = vunpack.c.l.b16 %v1774
      %v1798 = vunpack.c.l.b16 %v1775
      %v1799 = vunpack.c.l.b16 %v1776
      %v1800 = vunpack.c.l.b16 %v1777
      %v1801 = vunpack.c.l.b16 %v1778
      %v1802 = vunpack.c.l.b16 %v1779
      %v1803 = vunpack.c.l.b16 %v1780
      %v1804 = vpack.c.b16 %v1797, %v1796
      %v1805 = vpack.c.b16 %v1799, %v1798
      %v1806 = vpack.c.b16 %v1801, %v1800
      %v1807 = vpack.c.b16 %v1803, %v1802
      %vm1812 = vcmask 523264
      %v1814 = vsel %vm1812, %v1757, 0
      %v1817 = vsel %vm1812, %v1758, 0
      %v1820 = vsel %vm1812, %v1759, 0
      %v1823 = vsel %vm1812, %v1760, 0
      %v1826 = vsel %vm1812, %v1761, 0
      %v1829 = vsel %vm1812, %v1762, 0
      %v1832 = vsel %vm1812, %v1763, 0
      %v1835 = vsel %vm1812, %v1764, 0
      %v1838 = vsel %vm1812, %v1765, 0
      %v1841 = vsel %vm1812, %v1766, 0
      %v1844 = vsel %vm1812, %v1767, 0
      %v1847 = vsel %vm1812, %v1768, 0
      %v1850 = vsel %vm1812, %v1769, 0
      %v1853 = vsel %vm1812, %v1770, 0
      %v1856 = vsel %vm1812, %v1771, 0
      %v1859 = vsel %vm1812, %v1772, 0
      %1861 = vmatprep.subr.bf16.mxu0 0
      %1862 = vmatpush1.bf16.msra.mxu0 0
      %1863 = vmatprep.subr.bf16.mxu0 0
      %1864 = vmatpush1.bf16.msra.mxu0 0
      %1865 = vmatprep.subr.bf16.mxu0 0
      %1866 = vmatpush1.bf16.msra.mxu0 0
      %1867 = vmatprep.subr.bf16.mxu0 0
      %1868 = vmatpush1.bf16.msra.mxu0 0
      %1869 = vmatprep.subr.bf16.mxu0 0
      %1870 = vmatpush1.bf16.msra.mxu0 %v1807
      %1871 = vmatprep.subr.bf16.mxu0 0
      %1872 = vmatpush1.bf16.msra.mxu0 %v1806
      %1873 = vmatprep.subr.bf16.mxu0 0
      %1874 = vmatpush1.bf16.msra.mxu0 %v1805
      %1875 = vmatprep.subr.bf16.mxu0 0
      %1876 = vmatpush1.bf16.msra.mxu0 %v1804
      %1877 = vmatprep.subr.bf16.mxu0 0
      %1878 = vmatpush2.bf16.msra.mxu0 0
      %1879 = vmatprep.subr.bf16.mxu0 0
      %1880 = vmatpush2.bf16.msra.mxu0 0
      %1881 = vmatprep.subr.bf16.mxu0 0
      %1882 = vmatpush2.bf16.msra.mxu0 0
      %1883 = vmatprep.subr.bf16.mxu0 0
      %1884 = vmatpush2.bf16.msra.mxu0 0
      %1885 = vmatprep.subr.bf16.mxu0 0
      %1886 = vmatpush2.bf16.msra.mxu0 0
      %1887 = vmatprep.subr.bf16.mxu0 0
      %1888 = vmatpush2.bf16.msra.mxu0 0
      %1889 = vmatprep.subr.bf16.mxu0 0
      %1890 = vmatpush2.bf16.msra.mxu0 0
      %1891 = vmatprep.subr.bf16.mxu0 0
      %1892 = vmatpush2.bf16.msra.mxu0 0
      %1893 = vmatprep.mubr.bf16.mxu0 0
      %1894 = vmatmul.mubr.bf16.gmra.mxu0 %v1814
      %v1895 = vpop.f32.mrf.mxu0
      %v1896 = vadd.f32 %v1786, %v1895
      %v1897 = vpop.f32.mrf.mxu0
      %v1898 = vpop.f32.mrf.mxu0
      %v1899 = vadd.f32 %v1786, %v1898
      %v1900 = vpop.f32.mrf.mxu0
      %1901 = vmatprep.mubr.bf16.mxu0 0
      %1902 = vmatmul.mubr.bf16.gmra.mxu0 %v1817
      %v1903 = vpop.f32.mrf.mxu0
      %v1904 = vadd.f32 %v1786, %v1903
      %v1905 = vpop.f32.mrf.mxu0
      %v1906 = vpop.f32.mrf.mxu0
      %v1907 = vadd.f32 %v1786, %v1906
      %v1908 = vpop.f32.mrf.mxu0
      %1909 = vmatprep.mubr.bf16.mxu0 0
      %1910 = vmatmul.mubr.bf16.gmra.mxu0 %v1820
      %v1911 = vpop.f32.mrf.mxu0
      %v1912 = vadd.f32 %v1786, %v1911
      %v1913 = vpop.f32.mrf.mxu0
      %v1914 = vpop.f32.mrf.mxu0
      %v1915 = vadd.f32 %v1786, %v1914
      %v1916 = vpop.f32.mrf.mxu0
      %1917 = vmatprep.mubr.bf16.mxu0 0
      %1918 = vmatmul.mubr.bf16.gmra.mxu0 %v1823
      %v1919 = vpop.f32.mrf.mxu0
      %v1920 = vadd.f32 %v1786, %v1919
      %v1921 = vpop.f32.mrf.mxu0
      %v1922 = vpop.f32.mrf.mxu0
      %v1923 = vadd.f32 %v1786, %v1922
      %v1924 = vpop.f32.mrf.mxu0
      %1925 = vmatprep.mubr.bf16.mxu0 0
      %1926 = vmatmul.mubr.bf16.gmra.mxu0 %v1826
      %v1927 = vpop.f32.mrf.mxu0
      %v1928 = vadd.f32 %v1786, %v1927
      %v1929 = vpop.f32.mrf.mxu0
      %v1930 = vpop.f32.mrf.mxu0
      %v1931 = vadd.f32 %v1786, %v1930
      %v1932 = vpop.f32.mrf.mxu0
      %1933 = vmatprep.mubr.bf16.mxu0 0
      %1934 = vmatmul.mubr.bf16.gmra.mxu0 %v1829
      %v1935 = vpop.f32.mrf.mxu0
      %v1936 = vadd.f32 %v1786, %v1935
      %v1937 = vpop.f32.mrf.mxu0
      %v1938 = vpop.f32.mrf.mxu0
      %v1939 = vadd.f32 %v1786, %v1938
      %v1940 = vpop.f32.mrf.mxu0
      %1941 = vmatprep.mubr.bf16.mxu0 0
      %1942 = vmatmul.mubr.bf16.gmra.mxu0 %v1832
      %v1943 = vpop.f32.mrf.mxu0
      %v1944 = vadd.f32 %v1786, %v1943
      %v1945 = vpop.f32.mrf.mxu0
      %v1946 = vpop.f32.mrf.mxu0
      %v1947 = vadd.f32 %v1786, %v1946
      %v1948 = vpop.f32.mrf.mxu0
      %1949 = vmatprep.mubr.bf16.mxu0 0
      %1950 = vmatmul.mubr.bf16.gmra.mxu0 %v1835
      %v1951 = vpop.f32.mrf.mxu0
      %v1952 = vadd.f32 %v1786, %v1951
      %v1953 = vpop.f32.mrf.mxu0
      %v1954 = vpop.f32.mrf.mxu0
      %v1955 = vadd.f32 %v1786, %v1954
      %v1956 = vpop.f32.mrf.mxu0
      %1957 = vmatprep.mubr.bf16.mxu0 0
      %1958 = vmatmul.mubr.bf16.gmra.mxu0 %v1838
      %v1959 = vpop.f32.mrf.mxu0
      %v1960 = vadd.f32 %v1786, %v1959
      %v1961 = vpop.f32.mrf.mxu0
      %v1962 = vpop.f32.mrf.mxu0
      %v1963 = vadd.f32 %v1786, %v1962
      %v1964 = vpop.f32.mrf.mxu0
      %1965 = vmatprep.mubr.bf16.mxu0 0
      %1966 = vmatmul.mubr.bf16.gmra.mxu0 %v1841
      %v1967 = vpop.f32.mrf.mxu0
      %v1968 = vadd.f32 %v1786, %v1967
      %v1969 = vpop.f32.mrf.mxu0
      %v1970 = vpop.f32.mrf.mxu0
      %v1971 = vadd.f32 %v1786, %v1970
      %v1972 = vpop.f32.mrf.mxu0
      %1973 = vmatprep.mubr.bf16.mxu0 0
      %1974 = vmatmul.mubr.bf16.gmra.mxu0 %v1844
      %v1975 = vpop.f32.mrf.mxu0
      %v1976 = vadd.f32 %v1786, %v1975
      %v1977 = vpop.f32.mrf.mxu0
      %v1978 = vpop.f32.mrf.mxu0
      %v1979 = vadd.f32 %v1786, %v1978
      %v1980 = vpop.f32.mrf.mxu0
      %1981 = vmatprep.mubr.bf16.mxu0 0
      %1982 = vmatmul.mubr.bf16.gmra.mxu0 %v1847
      %v1983 = vpop.f32.mrf.mxu0
      %v1984 = vadd.f32 %v1786, %v1983
      %v1985 = vpop.f32.mrf.mxu0
      %v1986 = vpop.f32.mrf.mxu0
      %v1987 = vadd.f32 %v1786, %v1986
      %v1988 = vpop.f32.mrf.mxu0
      %1989 = vmatprep.mubr.bf16.mxu0 0
      %1990 = vmatmul.mubr.bf16.gmra.mxu0 %v1850
      %v1991 = vpop.f32.mrf.mxu0
      %v1992 = vadd.f32 %v1786, %v1991
      %v1993 = vpop.f32.mrf.mxu0
      %v1994 = vpop.f32.mrf.mxu0
      %v1995 = vadd.f32 %v1786, %v1994
      %v1996 = vpop.f32.mrf.mxu0
      %1997 = vmatprep.mubr.bf16.mxu0 0
      %1998 = vmatmul.mubr.bf16.gmra.mxu0 %v1853
      %v1999 = vpop.f32.mrf.mxu0
      %v2000 = vadd.f32 %v1786, %v1999
      %v2001 = vpop.f32.mrf.mxu0
      %v2002 = vpop.f32.mrf.mxu0
      %v2003 = vadd.f32 %v1786, %v2002
      %v2004 = vpop.f32.mrf.mxu0
      %2005 = vmatprep.mubr.bf16.mxu0 0
      %2006 = vmatmul.mubr.bf16.gmra.mxu0 %v1856
      %v2007 = vpop.f32.mrf.mxu0
      %v2008 = vadd.f32 %v1786, %v2007
      %v2009 = vpop.f32.mrf.mxu0
      %v2010 = vpop.f32.mrf.mxu0
      %v2011 = vadd.f32 %v1786, %v2010
      %v2012 = vpop.f32.mrf.mxu0
      %2013 = vmatprep.mubr.bf16.mxu0 0
      %2014 = vmatmul.mubr.bf16.gmra.mxu0 %v1859
      %v2015 = vpop.f32.mrf.mxu0
      %v2016 = vadd.f32 %v1786, %v2015
      %v2017 = vpop.f32.mrf.mxu0
      %v2018 = vpop.f32.mrf.mxu0
      %v2019 = vadd.f32 %v1786, %v2018
      %v2020 = vpop.f32.mrf.mxu0
      %2021 = vdwg.mxu0
      %v2022 = vpack.c.bf16 %v1899, %v1896
      %v2023 = vpack.c.bf16 %v1907, %v1904
      %v2024 = vpack.c.bf16 %v1915, %v1912
      %v2025 = vpack.c.bf16 %v1923, %v1920
      %v2026 = vpack.c.bf16 %v1931, %v1928
      %v2027 = vpack.c.bf16 %v1939, %v1936
      %v2028 = vpack.c.bf16 %v1947, %v1944
      %v2029 = vpack.c.bf16 %v1955, %v1952
      %v2030 = vpack.c.bf16 %v1963, %v1960
      %v2031 = vpack.c.bf16 %v1971, %v1968
      %v2032 = vpack.c.bf16 %v1979, %v1976
      %v2033 = vpack.c.bf16 %v1987, %v1984
      %v2034 = vpack.c.bf16 %v1995, %v1992
      %v2035 = vpack.c.bf16 %v2003, %v2000
      %v2036 = vpack.c.bf16 %v2011, %v2008
      %v2037 = vpack.c.bf16 %v2019, %v2016
      %v2038 = vld [vmem:[%s9] sm:$0xf]
      %v2039 = vld [vmem:[%s9 + $0x4] sm:$0xf]
      %v2040 = vld [vmem:[%s10] sm:$0x1]
      %v2042 = vlaneseq
      %v2043 = vshrl.u32 %v2042, 7
      %v2044 = vsub.s32 0, %v2043
      %v2045 = vrot.slane %v2040, %v2044
      %v2049 = vunpack.c.l.b16 %v2038
      %v2050 = vunpack.c.l.b16 %v2039
      %v2051 = vpack.c.b16 %v2050, %v2049
      %vm2053 = vcmask 130048
      %v2055 = vsel %vm2053, %v2022, 0
      %v2058 = vsel %vm2053, %v2023, 0
      %v2061 = vsel %vm2053, %v2024, 0
      %v2064 = vsel %vm2053, %v2025, 0
      %v2067 = vsel %vm2053, %v2026, 0
      %v2070 = vsel %vm2053, %v2027, 0
      %v2073 = vsel %vm2053, %v2028, 0
      %v2076 = vsel %vm2053, %v2029, 0
      %v2079 = vsel %vm2053, %v2030, 0
      %v2082 = vsel %vm2053, %v2031, 0
      %v2085 = vsel %vm2053, %v2032, 0
      %v2088 = vsel %vm2053, %v2033, 0
      %v2091 = vsel %vm2053, %v2034, 0
      %v2094 = vsel %vm2053, %v2035, 0
      %v2097 = vsel %vm2053, %v2036, 0
      %v2100 = vsel %vm2053, %v2037, 0
      %2102 = vmatprep.subr.bf16.mxu0 0
      %2103 = vmatpush1.bf16.msra.mxu0 0
      %2104 = vmatprep.subr.bf16.mxu0 0
      %2105 = vmatpush1.bf16.msra.mxu0 0
      %2106 = vmatprep.subr.bf16.mxu0 0
      %2107 = vmatpush1.bf16.msra.mxu0 0
      %2108 = vmatprep.subr.bf16.mxu0 0
      %2109 = vmatpush1.bf16.msra.mxu0 0
      %2110 = vmatprep.subr.bf16.mxu0 0
      %2111 = vmatpush1.bf16.msra.mxu0 0
      %2112 = vmatprep.subr.bf16.mxu0 0
      %2113 = vmatpush1.bf16.msra.mxu0 0
      %2114 = vmatprep.subr.bf16.mxu0 0
      %2115 = vmatpush1.bf16.msra.mxu0 0
      %2116 = vmatprep.subr.bf16.mxu0 0
      %2117 = vmatpush1.bf16.msra.mxu0 %v2051
      %2118 = vmatprep.subr.bf16.mxu0 0
      %2119 = vmatpush2.bf16.msra.mxu0 0
      %2120 = vmatprep.subr.bf16.mxu0 0
      %2121 = vmatpush2.bf16.msra.mxu0 0
      %2122 = vmatprep.subr.bf16.mxu0 0
      %2123 = vmatpush2.bf16.msra.mxu0 0
      %2124 = vmatprep.subr.bf16.mxu0 0
      %2125 = vmatpush2.bf16.msra.mxu0 0
      %2126 = vmatprep.subr.bf16.mxu0 0
      %2127 = vmatpush2.bf16.msra.mxu0 0
      %2128 = vmatprep.subr.bf16.mxu0 0
      %2129 = vmatpush2.bf16.msra.mxu0 0
      %2130 = vmatprep.subr.bf16.mxu0 0
      %2131 = vmatpush2.bf16.msra.mxu0 0
      %2132 = vmatprep.subr.bf16.mxu0 0
      %2133 = vmatpush2.bf16.msra.mxu0 0
      %2134 = vmatprep.mubr.bf16.mxu0 0
      %2135 = vmatmul.mubr.bf16.gmra.mxu0 %v2055
      %v2136 = vpop.f32.mrf.mxu0
      %v2137 = vadd.f32 %v2045, %v2136
      %v2138 = vpop.f32.mrf.mxu0
      %v2139 = vpop.f32.mrf.mxu0
      %v2140 = vadd.f32 %v2045, %v2139
      %v2141 = vpop.f32.mrf.mxu0
      %2142 = vmatprep.mubr.bf16.mxu0 0
      %2143 = vmatmul.mubr.bf16.gmra.mxu0 %v2058
      %v2144 = vpop.f32.mrf.mxu0
      %v2145 = vadd.f32 %v2045, %v2144
      %v2146 = vpop.f32.mrf.mxu0
      %v2147 = vpop.f32.mrf.mxu0
      %v2148 = vadd.f32 %v2045, %v2147
      %v2149 = vpop.f32.mrf.mxu0
      %2150 = vmatprep.mubr.bf16.mxu0 0
      %2151 = vmatmul.mubr.bf16.gmra.mxu0 %v2061
      %v2152 = vpop.f32.mrf.mxu0
      %v2153 = vadd.f32 %v2045, %v2152
      %v2154 = vpop.f32.mrf.mxu0
      %v2155 = vpop.f32.mrf.mxu0
      %v2156 = vadd.f32 %v2045, %v2155
      %v2157 = vpop.f32.mrf.mxu0
      %2158 = vmatprep.mubr.bf16.mxu0 0
      %2159 = vmatmul.mubr.bf16.gmra.mxu0 %v2064
      %v2160 = vpop.f32.mrf.mxu0
      %v2161 = vadd.f32 %v2045, %v2160
      %v2162 = vpop.f32.mrf.mxu0
      %v2163 = vpop.f32.mrf.mxu0
      %v2164 = vadd.f32 %v2045, %v2163
      %v2165 = vpop.f32.mrf.mxu0
      %2166 = vmatprep.mubr.bf16.mxu0 0
      %2167 = vmatmul.mubr.bf16.gmra.mxu0 %v2067
      %v2168 = vpop.f32.mrf.mxu0
      %v2169 = vadd.f32 %v2045, %v2168
      %v2170 = vpop.f32.mrf.mxu0
      %v2171 = vpop.f32.mrf.mxu0
      %v2172 = vadd.f32 %v2045, %v2171
      %v2173 = vpop.f32.mrf.mxu0
      %2174 = vmatprep.mubr.bf16.mxu0 0
      %2175 = vmatmul.mubr.bf16.gmra.mxu0 %v2070
      %v2176 = vpop.f32.mrf.mxu0
      %v2177 = vadd.f32 %v2045, %v2176
      %v2178 = vpop.f32.mrf.mxu0
      %v2179 = vpop.f32.mrf.mxu0
      %v2180 = vadd.f32 %v2045, %v2179
      %v2181 = vpop.f32.mrf.mxu0
      %2182 = vmatprep.mubr.bf16.mxu0 0
      %2183 = vmatmul.mubr.bf16.gmra.mxu0 %v2073
      %v2184 = vpop.f32.mrf.mxu0
      %v2185 = vadd.f32 %v2045, %v2184
      %v2186 = vpop.f32.mrf.mxu0
      %v2187 = vpop.f32.mrf.mxu0
      %v2188 = vadd.f32 %v2045, %v2187
      %v2189 = vpop.f32.mrf.mxu0
      %2190 = vmatprep.mubr.bf16.mxu0 0
      %2191 = vmatmul.mubr.bf16.gmra.mxu0 %v2076
      %v2192 = vpop.f32.mrf.mxu0
      %v2193 = vadd.f32 %v2045, %v2192
      %v2194 = vpop.f32.mrf.mxu0
      %v2195 = vpop.f32.mrf.mxu0
      %v2196 = vadd.f32 %v2045, %v2195
      %v2197 = vpop.f32.mrf.mxu0
      %2198 = vmatprep.mubr.bf16.mxu0 0
      %2199 = vmatmul.mubr.bf16.gmra.mxu0 %v2079
      %v2200 = vpop.f32.mrf.mxu0
      %v2201 = vadd.f32 %v2045, %v2200
      %v2202 = vpop.f32.mrf.mxu0
      %v2203 = vpop.f32.mrf.mxu0
      %v2204 = vadd.f32 %v2045, %v2203
      %v2205 = vpop.f32.mrf.mxu0
      %2206 = vmatprep.mubr.bf16.mxu0 0
      %2207 = vmatmul.mubr.bf16.gmra.mxu0 %v2082
      %v2208 = vpop.f32.mrf.mxu0
      %v2209 = vadd.f32 %v2045, %v2208
      %v2210 = vpop.f32.mrf.mxu0
      %v2211 = vpop.f32.mrf.mxu0
      %v2212 = vadd.f32 %v2045, %v2211
      %v2213 = vpop.f32.mrf.mxu0
      %2214 = vmatprep.mubr.bf16.mxu0 0
      %2215 = vmatmul.mubr.bf16.gmra.mxu0 %v2085
      %v2216 = vpop.f32.mrf.mxu0
      %v2217 = vadd.f32 %v2045, %v2216
      %v2218 = vpop.f32.mrf.mxu0
      %v2219 = vpop.f32.mrf.mxu0
      %v2220 = vadd.f32 %v2045, %v2219
      %v2221 = vpop.f32.mrf.mxu0
      %2222 = vmatprep.mubr.bf16.mxu0 0
      %2223 = vmatmul.mubr.bf16.gmra.mxu0 %v2088
      %v2224 = vpop.f32.mrf.mxu0
      %v2225 = vadd.f32 %v2045, %v2224
      %v2226 = vpop.f32.mrf.mxu0
      %v2227 = vpop.f32.mrf.mxu0
      %v2228 = vadd.f32 %v2045, %v2227
      %v2229 = vpop.f32.mrf.mxu0
      %2230 = vmatprep.mubr.bf16.mxu0 0
      %2231 = vmatmul.mubr.bf16.gmra.mxu0 %v2091
      %v2232 = vpop.f32.mrf.mxu0
      %v2233 = vadd.f32 %v2045, %v2232
      %v2234 = vpop.f32.mrf.mxu0
      %v2235 = vpop.f32.mrf.mxu0
      %v2236 = vadd.f32 %v2045, %v2235
      %v2237 = vpop.f32.mrf.mxu0
      %2238 = vmatprep.mubr.bf16.mxu0 0
      %2239 = vmatmul.mubr.bf16.gmra.mxu0 %v2094
      %v2240 = vpop.f32.mrf.mxu0
      %v2241 = vadd.f32 %v2045, %v2240
      %v2242 = vpop.f32.mrf.mxu0
      %v2243 = vpop.f32.mrf.mxu0
      %v2244 = vadd.f32 %v2045, %v2243
      %v2245 = vpop.f32.mrf.mxu0
      %2246 = vmatprep.mubr.bf16.mxu0 0
      %2247 = vmatmul.mubr.bf16.gmra.mxu0 %v2097
      %v2248 = vpop.f32.mrf.mxu0
      %v2249 = vadd.f32 %v2045, %v2248
      %v2250 = vpop.f32.mrf.mxu0
      %v2251 = vpop.f32.mrf.mxu0
      %v2252 = vadd.f32 %v2045, %v2251
      %v2253 = vpop.f32.mrf.mxu0
      %2254 = vmatprep.mubr.bf16.mxu0 0
      %2255 = vmatmul.mubr.bf16.gmra.mxu0 %v2100
      %v2256 = vpop.f32.mrf.mxu0
      %v2257 = vadd.f32 %v2045, %v2256
      %v2258 = vpop.f32.mrf.mxu0
      %v2259 = vpop.f32.mrf.mxu0
      %v2260 = vadd.f32 %v2045, %v2259
      %v2261 = vpop.f32.mrf.mxu0
      %2262 = vdwg.mxu0
      %v2263 = vmax.f32 %v2137, 0.0
      %v2264 = vmax.f32 %v2140, 0.0
      %v2265 = vmax.f32 %v2145, 0.0
      %v2266 = vmax.f32 %v2148, 0.0
      %v2267 = vmax.f32 %v2153, 0.0
      %v2268 = vmax.f32 %v2156, 0.0
      %v2269 = vmax.f32 %v2161, 0.0
      %v2270 = vmax.f32 %v2164, 0.0
      %v2271 = vmax.f32 %v2169, 0.0
      %v2272 = vmax.f32 %v2172, 0.0
      %v2273 = vmax.f32 %v2177, 0.0
      %v2274 = vmax.f32 %v2180, 0.0
      %v2275 = vmax.f32 %v2185, 0.0
      %v2276 = vmax.f32 %v2188, 0.0
      %v2277 = vmax.f32 %v2193, 0.0
      %v2278 = vmax.f32 %v2196, 0.0
      %v2279 = vmax.f32 %v2201, 0.0
      %v2280 = vmax.f32 %v2204, 0.0
      %v2281 = vmax.f32 %v2209, 0.0
      %v2282 = vmax.f32 %v2212, 0.0
      %v2283 = vmax.f32 %v2217, 0.0
      %v2284 = vmax.f32 %v2220, 0.0
      %v2285 = vmax.f32 %v2225, 0.0
      %v2286 = vmax.f32 %v2228, 0.0
      %v2287 = vmax.f32 %v2233, 0.0
      %v2288 = vmax.f32 %v2236, 0.0
      %v2289 = vmax.f32 %v2241, 0.0
      %v2290 = vmax.f32 %v2244, 0.0
      %v2291 = vmax.f32 %v2249, 0.0
      %v2292 = vmax.f32 %v2252, 0.0
      %v2293 = vmax.f32 %v2257, 0.0
      %v2294 = vmax.f32 %v2260, 0.0
      %v2295 = vpack.c.bf16 %v2264, %v2263
      %v2296 = vpack.c.bf16 %v2266, %v2265
      %v2297 = vpack.c.bf16 %v2268, %v2267
      %v2298 = vpack.c.bf16 %v2270, %v2269
      %v2299 = vpack.c.bf16 %v2272, %v2271
      %v2300 = vpack.c.bf16 %v2274, %v2273
      %v2301 = vpack.c.bf16 %v2276, %v2275
      %v2302 = vpack.c.bf16 %v2278, %v2277
      %v2303 = vpack.c.bf16 %v2280, %v2279
      %v2304 = vpack.c.bf16 %v2282, %v2281
      %v2305 = vpack.c.bf16 %v2284, %v2283
      %v2306 = vpack.c.bf16 %v2286, %v2285
      %v2307 = vpack.c.bf16 %v2288, %v2287
      %v2308 = vpack.c.bf16 %v2290, %v2289
      %v2309 = vpack.c.bf16 %v2292, %v2291
      %v2310 = vpack.c.bf16 %v2294, %v2293
      %v2311 = vld [vmem:[%s11] sm:$0xf]
      %v2312 = vld [vmem:[%s11 + $0x4] sm:$0xf]
      %v2313 = vld [vmem:[%s11 + $0x8] sm:$0xf]
      %v2314 = vld [vmem:[%s11 + $0xc] sm:$0xf]
      %v2315 = vld [vmem:[%s11 + $0x10] sm:$0xf]
      %v2316 = vld [vmem:[%s11 + $0x14] sm:$0xf]
      %v2317 = vld [vmem:[%s11 + $0x18] sm:$0xf]
      %v2318 = vld [vmem:[%s11 + $0x1c] sm:$0xf]
      %v2319 = vld [vmem:[%s12] sm:$0x1]
      %v2321 = vlaneseq
      %v2322 = vshrl.u32 %v2321, 7
      %v2323 = vsub.s32 0, %v2322
      %v2324 = vrot.slane %v2319, %v2323
      %v2334 = vunpack.c.l.b16 %v2311
      %v2335 = vunpack.c.l.b16 %v2312
      %v2336 = vunpack.c.l.b16 %v2313
      %v2337 = vunpack.c.l.b16 %v2314
      %v2338 = vunpack.c.l.b16 %v2315
      %v2339 = vunpack.c.l.b16 %v2316
      %v2340 = vunpack.c.l.b16 %v2317
      %v2341 = vunpack.c.l.b16 %v2318
      %v2342 = vpack.c.b16 %v2335, %v2334
      %v2343 = vpack.c.b16 %v2337, %v2336
      %v2344 = vpack.c.b16 %v2339, %v2338
      %v2345 = vpack.c.b16 %v2341, %v2340
      %v2351 = vsel %vm1812, %v2295, 0
      %v2354 = vsel %vm1812, %v2296, 0
      %v2357 = vsel %vm1812, %v2297, 0
      %v2360 = vsel %vm1812, %v2298, 0
      %v2363 = vsel %vm1812, %v2299, 0
      %v2366 = vsel %vm1812, %v2300, 0
      %v2369 = vsel %vm1812, %v2301, 0
      %v2372 = vsel %vm1812, %v2302, 0
      %v2375 = vsel %vm1812, %v2303, 0
      %v2378 = vsel %vm1812, %v2304, 0
      %v2381 = vsel %vm1812, %v2305, 0
      %v2384 = vsel %vm1812, %v2306, 0
      %v2387 = vsel %vm1812, %v2307, 0
      %v2390 = vsel %vm1812, %v2308, 0
      %v2393 = vsel %vm1812, %v2309, 0
      %v2396 = vsel %vm1812, %v2310, 0
      %2398 = vmatprep.subr.bf16.mxu0 0
      %2399 = vmatpush1.bf16.msra.mxu0 0
      %2400 = vmatprep.subr.bf16.mxu0 0
      %2401 = vmatpush1.bf16.msra.mxu0 0
      %2402 = vmatprep.subr.bf16.mxu0 0
      %2403 = vmatpush1.bf16.msra.mxu0 0
      %2404 = vmatprep.subr.bf16.mxu0 0
      %2405 = vmatpush1.bf16.msra.mxu0 0
      %2406 = vmatprep.subr.bf16.mxu0 0
      %2407 = vmatpush1.bf16.msra.mxu0 %v2345
      %2408 = vmatprep.subr.bf16.mxu0 0
      %2409 = vmatpush1.bf16.msra.mxu0 %v2344
      %2410 = vmatprep.subr.bf16.mxu0 0
      %2411 = vmatpush1.bf16.msra.mxu0 %v2343
      %2412 = vmatprep.subr.bf16.mxu0 0
      %2413 = vmatpush1.bf16.msra.mxu0 %v2342
      %2414 = vmatprep.subr.bf16.mxu0 0
      %2415 = vmatpush2.bf16.msra.mxu0 0
      %2416 = vmatprep.subr.bf16.mxu0 0
      %2417 = vmatpush2.bf16.msra.mxu0 0
      %2418 = vmatprep.subr.bf16.mxu0 0
      %2419 = vmatpush2.bf16.msra.mxu0 0
      %2420 = vmatprep.subr.bf16.mxu0 0
      %2421 = vmatpush2.bf16.msra.mxu0 0
      %2422 = vmatprep.subr.bf16.mxu0 0
      %2423 = vmatpush2.bf16.msra.mxu0 0
      %2424 = vmatprep.subr.bf16.mxu0 0
      %2425 = vmatpush2.bf16.msra.mxu0 0
      %2426 = vmatprep.subr.bf16.mxu0 0
      %2427 = vmatpush2.bf16.msra.mxu0 0
      %2428 = vmatprep.subr.bf16.mxu0 0
      %2429 = vmatpush2.bf16.msra.mxu0 0
      %2430 = vmatprep.mubr.bf16.mxu0 0
      %2431 = vmatmul.mubr.bf16.gmra.mxu0 %v2351
      %v2432 = vpop.f32.mrf.mxu0
      %v2433 = vadd.f32 %v2324, %v2432
      %v2434 = vpop.f32.mrf.mxu0
      %v2435 = vpop.f32.mrf.mxu0
      %v2436 = vadd.f32 %v2324, %v2435
      %v2437 = vpop.f32.mrf.mxu0
      %2438 = vmatprep.mubr.bf16.mxu0 0
      %2439 = vmatmul.mubr.bf16.gmra.mxu0 %v2354
      %v2440 = vpop.f32.mrf.mxu0
      %v2441 = vadd.f32 %v2324, %v2440
      %v2442 = vpop.f32.mrf.mxu0
      %v2443 = vpop.f32.mrf.mxu0
      %v2444 = vadd.f32 %v2324, %v2443
      %v2445 = vpop.f32.mrf.mxu0
      %2446 = vmatprep.mubr.bf16.mxu0 0
      %2447 = vmatmul.mubr.bf16.gmra.mxu0 %v2357
      %v2448 = vpop.f32.mrf.mxu0
      %v2449 = vadd.f32 %v2324, %v2448
      %v2450 = vpop.f32.mrf.mxu0
      %v2451 = vpop.f32.mrf.mxu0
      %v2452 = vadd.f32 %v2324, %v2451
      %v2453 = vpop.f32.mrf.mxu0
      %2454 = vmatprep.mubr.bf16.mxu0 0
      %2455 = vmatmul.mubr.bf16.gmra.mxu0 %v2360
      %v2456 = vpop.f32.mrf.mxu0
      %v2457 = vadd.f32 %v2324, %v2456
      %v2458 = vpop.f32.mrf.mxu0
      %v2459 = vpop.f32.mrf.mxu0
      %v2460 = vadd.f32 %v2324, %v2459
      %v2461 = vpop.f32.mrf.mxu0
      %2462 = vmatprep.mubr.bf16.mxu0 0
      %2463 = vmatmul.mubr.bf16.gmra.mxu0 %v2363
      %v2464 = vpop.f32.mrf.mxu0
      %v2465 = vadd.f32 %v2324, %v2464
      %v2466 = vpop.f32.mrf.mxu0
      %v2467 = vpop.f32.mrf.mxu0
      %v2468 = vadd.f32 %v2324, %v2467
      %v2469 = vpop.f32.mrf.mxu0
      %2470 = vmatprep.mubr.bf16.mxu0 0
      %2471 = vmatmul.mubr.bf16.gmra.mxu0 %v2366
      %v2472 = vpop.f32.mrf.mxu0
      %v2473 = vadd.f32 %v2324, %v2472
      %v2474 = vpop.f32.mrf.mxu0
      %v2475 = vpop.f32.mrf.mxu0
      %v2476 = vadd.f32 %v2324, %v2475
      %v2477 = vpop.f32.mrf.mxu0
      %2478 = vmatprep.mubr.bf16.mxu0 0
      %2479 = vmatmul.mubr.bf16.gmra.mxu0 %v2369
      %v2480 = vpop.f32.mrf.mxu0
      %v2481 = vadd.f32 %v2324, %v2480
      %v2482 = vpop.f32.mrf.mxu0
      %v2483 = vpop.f32.mrf.mxu0
      %v2484 = vadd.f32 %v2324, %v2483
      %v2485 = vpop.f32.mrf.mxu0
      %2486 = vmatprep.mubr.bf16.mxu0 0
      %2487 = vmatmul.mubr.bf16.gmra.mxu0 %v2372
      %v2488 = vpop.f32.mrf.mxu0
      %v2489 = vadd.f32 %v2324, %v2488
      %v2490 = vpop.f32.mrf.mxu0
      %v2491 = vpop.f32.mrf.mxu0
      %v2492 = vadd.f32 %v2324, %v2491
      %v2493 = vpop.f32.mrf.mxu0
      %2494 = vmatprep.mubr.bf16.mxu0 0
      %2495 = vmatmul.mubr.bf16.gmra.mxu0 %v2375
      %v2496 = vpop.f32.mrf.mxu0
      %v2497 = vadd.f32 %v2324, %v2496
      %v2498 = vpop.f32.mrf.mxu0
      %v2499 = vpop.f32.mrf.mxu0
      %v2500 = vadd.f32 %v2324, %v2499
      %v2501 = vpop.f32.mrf.mxu0
      %2502 = vmatprep.mubr.bf16.mxu0 0
      %2503 = vmatmul.mubr.bf16.gmra.mxu0 %v2378
      %v2504 = vpop.f32.mrf.mxu0
      %v2505 = vadd.f32 %v2324, %v2504
      %v2506 = vpop.f32.mrf.mxu0
      %v2507 = vpop.f32.mrf.mxu0
      %v2508 = vadd.f32 %v2324, %v2507
      %v2509 = vpop.f32.mrf.mxu0
      %2510 = vmatprep.mubr.bf16.mxu0 0
      %2511 = vmatmul.mubr.bf16.gmra.mxu0 %v2381
      %v2512 = vpop.f32.mrf.mxu0
      %v2513 = vadd.f32 %v2324, %v2512
      %v2514 = vpop.f32.mrf.mxu0
      %v2515 = vpop.f32.mrf.mxu0
      %v2516 = vadd.f32 %v2324, %v2515
      %v2517 = vpop.f32.mrf.mxu0
      %2518 = vmatprep.mubr.bf16.mxu0 0
      %2519 = vmatmul.mubr.bf16.gmra.mxu0 %v2384
      %v2520 = vpop.f32.mrf.mxu0
      %v2521 = vadd.f32 %v2324, %v2520
      %v2522 = vpop.f32.mrf.mxu0
      %v2523 = vpop.f32.mrf.mxu0
      %v2524 = vadd.f32 %v2324, %v2523
      %v2525 = vpop.f32.mrf.mxu0
      %2526 = vmatprep.mubr.bf16.mxu0 0
      %2527 = vmatmul.mubr.bf16.gmra.mxu0 %v2387
      %v2528 = vpop.f32.mrf.mxu0
      %v2529 = vadd.f32 %v2324, %v2528
      %v2530 = vpop.f32.mrf.mxu0
      %v2531 = vpop.f32.mrf.mxu0
      %v2532 = vadd.f32 %v2324, %v2531
      %v2533 = vpop.f32.mrf.mxu0
      %2534 = vmatprep.mubr.bf16.mxu0 0
      %2535 = vmatmul.mubr.bf16.gmra.mxu0 %v2390
      %v2536 = vpop.f32.mrf.mxu0
      %v2537 = vadd.f32 %v2324, %v2536
      %v2538 = vpop.f32.mrf.mxu0
      %v2539 = vpop.f32.mrf.mxu0
      %v2540 = vadd.f32 %v2324, %v2539
      %v2541 = vpop.f32.mrf.mxu0
      %2542 = vmatprep.mubr.bf16.mxu0 0
      %2543 = vmatmul.mubr.bf16.gmra.mxu0 %v2393
      %v2544 = vpop.f32.mrf.mxu0
      %v2545 = vadd.f32 %v2324, %v2544
      %v2546 = vpop.f32.mrf.mxu0
      %v2547 = vpop.f32.mrf.mxu0
      %v2548 = vadd.f32 %v2324, %v2547
      %v2549 = vpop.f32.mrf.mxu0
      %2550 = vmatprep.mubr.bf16.mxu0 0
      %2551 = vmatmul.mubr.bf16.gmra.mxu0 %v2396
      %v2552 = vpop.f32.mrf.mxu0
      %v2553 = vadd.f32 %v2324, %v2552
      %v2554 = vpop.f32.mrf.mxu0
      %v2555 = vpop.f32.mrf.mxu0
      %v2556 = vadd.f32 %v2324, %v2555
      %v2557 = vpop.f32.mrf.mxu0
      %2558 = vdwg.mxu0
      %v2559 = vmax.f32 %v2433, 0.0
      %v2560 = vmax.f32 %v2436, 0.0
      %v2561 = vmax.f32 %v2441, 0.0
      %v2562 = vmax.f32 %v2444, 0.0
      %v2563 = vmax.f32 %v2449, 0.0
      %v2564 = vmax.f32 %v2452, 0.0
      %v2565 = vmax.f32 %v2457, 0.0
      %v2566 = vmax.f32 %v2460, 0.0
      %v2567 = vmax.f32 %v2465, 0.0
      %v2568 = vmax.f32 %v2468, 0.0
      %v2569 = vmax.f32 %v2473, 0.0
      %v2570 = vmax.f32 %v2476, 0.0
      %v2571 = vmax.f32 %v2481, 0.0
      %v2572 = vmax.f32 %v2484, 0.0
      %v2573 = vmax.f32 %v2489, 0.0
      %v2574 = vmax.f32 %v2492, 0.0
      %v2575 = vmax.f32 %v2497, 0.0
      %v2576 = vmax.f32 %v2500, 0.0
      %v2577 = vmax.f32 %v2505, 0.0
      %v2578 = vmax.f32 %v2508, 0.0
      %v2579 = vmax.f32 %v2513, 0.0
      %v2580 = vmax.f32 %v2516, 0.0
      %v2581 = vmax.f32 %v2521, 0.0
      %v2582 = vmax.f32 %v2524, 0.0
      %v2583 = vmax.f32 %v2529, 0.0
      %v2584 = vmax.f32 %v2532, 0.0
      %v2585 = vmax.f32 %v2537, 0.0
      %v2586 = vmax.f32 %v2540, 0.0
      %v2587 = vmax.f32 %v2545, 0.0
      %v2588 = vmax.f32 %v2548, 0.0
      %v2589 = vmax.f32 %v2553, 0.0
      %v2590 = vmax.f32 %v2556, 0.0
      %v2591 = vpack.c.bf16 %v2560, %v2559
      %v2592 = vpack.c.bf16 %v2562, %v2561
      %v2593 = vpack.c.bf16 %v2564, %v2563
      %v2594 = vpack.c.bf16 %v2566, %v2565
      %v2595 = vpack.c.bf16 %v2568, %v2567
      %v2596 = vpack.c.bf16 %v2570, %v2569
      %v2597 = vpack.c.bf16 %v2572, %v2571
      %v2598 = vpack.c.bf16 %v2574, %v2573
      %v2599 = vpack.c.bf16 %v2576, %v2575
      %v2600 = vpack.c.bf16 %v2578, %v2577
      %v2601 = vpack.c.bf16 %v2580, %v2579
      %v2602 = vpack.c.bf16 %v2582, %v2581
      %v2603 = vpack.c.bf16 %v2584, %v2583
      %v2604 = vpack.c.bf16 %v2586, %v2585
      %v2605 = vpack.c.bf16 %v2588, %v2587
      %v2606 = vpack.c.bf16 %v2590, %v2589
      %v2607 = vld [vmem:[%s13] sm:$0xf]
      %v2608 = vld [vmem:[%s13 + $0x4] sm:$0xf]
      %v2609 = vld [vmem:[%s13 + $0x8] sm:$0xf]
      %v2610 = vld [vmem:[%s13 + $0xc] sm:$0xf]
      %v2611 = vld [vmem:[%s14] sm:$0x1]
      %v2613 = vlaneseq
      %v2614 = vshrl.u32 %v2613, 7
      %v2615 = vsub.s32 0, %v2614
      %v2616 = vrot.slane %v2611, %v2615
      %v2622 = vunpack.c.l.b16 %v2607
      %v2623 = vunpack.c.l.b16 %v2608
      %v2624 = vunpack.c.l.b16 %v2609
      %v2625 = vunpack.c.l.b16 %v2610
      %v2626 = vpack.c.b16 %v2623, %v2622
      %v2627 = vpack.c.b16 %v2625, %v2624
      %v2631 = vsel %vm1235, %v2591, 0
      %v2634 = vsel %vm1235, %v2592, 0
      %v2637 = vsel %vm1235, %v2593, 0
      %v2640 = vsel %vm1235, %v2594, 0
      %v2643 = vsel %vm1235, %v2595, 0
      %v2646 = vsel %vm1235, %v2596, 0
      %v2649 = vsel %vm1235, %v2597, 0
      %v2652 = vsel %vm1235, %v2598, 0
      %v2655 = vsel %vm1235, %v2599, 0
      %v2658 = vsel %vm1235, %v2600, 0
      %v2661 = vsel %vm1235, %v2601, 0
      %v2664 = vsel %vm1235, %v2602, 0
      %v2667 = vsel %vm1235, %v2603, 0
      %v2670 = vsel %vm1235, %v2604, 0
      %v2673 = vsel %vm1235, %v2605, 0
      %v2676 = vsel %vm1235, %v2606, 0
      %2678 = vmatprep.subr.bf16.mxu0 0
      %2679 = vmatpush1.bf16.msra.mxu0 0
      %2680 = vmatprep.subr.bf16.mxu0 0
      %2681 = vmatpush1.bf16.msra.mxu0 0
      %2682 = vmatprep.subr.bf16.mxu0 0
      %2683 = vmatpush1.bf16.msra.mxu0 0
      %2684 = vmatprep.subr.bf16.mxu0 0
      %2685 = vmatpush1.bf16.msra.mxu0 0
      %2686 = vmatprep.subr.bf16.mxu0 0
      %2687 = vmatpush1.bf16.msra.mxu0 0
      %2688 = vmatprep.subr.bf16.mxu0 0
      %2689 = vmatpush1.bf16.msra.mxu0 0
      %2690 = vmatprep.subr.bf16.mxu0 0
      %2691 = vmatpush1.bf16.msra.mxu0 %v2627
      %2692 = vmatprep.subr.bf16.mxu0 0
      %2693 = vmatpush1.bf16.msra.mxu0 %v2626
      %2694 = vmatprep.subr.bf16.mxu0 0
      %2695 = vmatpush2.bf16.msra.mxu0 0
      %2696 = vmatprep.subr.bf16.mxu0 0
      %2697 = vmatpush2.bf16.msra.mxu0 0
      %2698 = vmatprep.subr.bf16.mxu0 0
      %2699 = vmatpush2.bf16.msra.mxu0 0
      %2700 = vmatprep.subr.bf16.mxu0 0
      %2701 = vmatpush2.bf16.msra.mxu0 0
      %2702 = vmatprep.subr.bf16.mxu0 0
      %2703 = vmatpush2.bf16.msra.mxu0 0
      %2704 = vmatprep.subr.bf16.mxu0 0
      %2705 = vmatpush2.bf16.msra.mxu0 0
      %2706 = vmatprep.subr.bf16.mxu0 0
      %2707 = vmatpush2.bf16.msra.mxu0 0
      %2708 = vmatprep.subr.bf16.mxu0 0
      %2709 = vmatpush2.bf16.msra.mxu0 0
      %2710 = vmatprep.mubr.bf16.mxu0 0
      %2711 = vmatmul.mubr.bf16.gmra.mxu0 %v2631
      %v2712 = vpop.f32.mrf.mxu0
      %v2713 = vadd.f32 %v2616, %v2712
      %v2714 = vpop.f32.mrf.mxu0
      %v2715 = vpop.f32.mrf.mxu0
      %v2716 = vadd.f32 %v2616, %v2715
      %v2717 = vpop.f32.mrf.mxu0
      %2718 = vmatprep.mubr.bf16.mxu0 0
      %2719 = vmatmul.mubr.bf16.gmra.mxu0 %v2634
      %v2720 = vpop.f32.mrf.mxu0
      %v2721 = vadd.f32 %v2616, %v2720
      %v2722 = vpop.f32.mrf.mxu0
      %v2723 = vpop.f32.mrf.mxu0
      %v2724 = vadd.f32 %v2616, %v2723
      %v2725 = vpop.f32.mrf.mxu0
      %2726 = vmatprep.mubr.bf16.mxu0 0
      %2727 = vmatmul.mubr.bf16.gmra.mxu0 %v2637
      %v2728 = vpop.f32.mrf.mxu0
      %v2729 = vadd.f32 %v2616, %v2728
      %v2730 = vpop.f32.mrf.mxu0
      %v2731 = vpop.f32.mrf.mxu0
      %v2732 = vadd.f32 %v2616, %v2731
      %v2733 = vpop.f32.mrf.mxu0
      %2734 = vmatprep.mubr.bf16.mxu0 0
      %2735 = vmatmul.mubr.bf16.gmra.mxu0 %v2640
      %v2736 = vpop.f32.mrf.mxu0
      %v2737 = vadd.f32 %v2616, %v2736
      %v2738 = vpop.f32.mrf.mxu0
      %v2739 = vpop.f32.mrf.mxu0
      %v2740 = vadd.f32 %v2616, %v2739
      %v2741 = vpop.f32.mrf.mxu0
      %2742 = vmatprep.mubr.bf16.mxu0 0
      %2743 = vmatmul.mubr.bf16.gmra.mxu0 %v2643
      %v2744 = vpop.f32.mrf.mxu0
      %v2745 = vadd.f32 %v2616, %v2744
      %v2746 = vpop.f32.mrf.mxu0
      %v2747 = vpop.f32.mrf.mxu0
      %v2748 = vadd.f32 %v2616, %v2747
      %v2749 = vpop.f32.mrf.mxu0
      %2750 = vmatprep.mubr.bf16.mxu0 0
      %2751 = vmatmul.mubr.bf16.gmra.mxu0 %v2646
      %v2752 = vpop.f32.mrf.mxu0
      %v2753 = vadd.f32 %v2616, %v2752
      %v2754 = vpop.f32.mrf.mxu0
      %v2755 = vpop.f32.mrf.mxu0
      %v2756 = vadd.f32 %v2616, %v2755
      %v2757 = vpop.f32.mrf.mxu0
      %2758 = vmatprep.mubr.bf16.mxu0 0
      %2759 = vmatmul.mubr.bf16.gmra.mxu0 %v2649
      %v2760 = vpop.f32.mrf.mxu0
      %v2761 = vadd.f32 %v2616, %v2760
      %v2762 = vpop.f32.mrf.mxu0
      %v2763 = vpop.f32.mrf.mxu0
      %v2764 = vadd.f32 %v2616, %v2763
      %v2765 = vpop.f32.mrf.mxu0
      %2766 = vmatprep.mubr.bf16.mxu0 0
      %2767 = vmatmul.mubr.bf16.gmra.mxu0 %v2652
      %v2768 = vpop.f32.mrf.mxu0
      %v2769 = vadd.f32 %v2616, %v2768
      %v2770 = vpop.f32.mrf.mxu0
      %v2771 = vpop.f32.mrf.mxu0
      %v2772 = vadd.f32 %v2616, %v2771
      %v2773 = vpop.f32.mrf.mxu0
      %2774 = vmatprep.mubr.bf16.mxu0 0
      %2775 = vmatmul.mubr.bf16.gmra.mxu0 %v2655
      %v2776 = vpop.f32.mrf.mxu0
      %v2777 = vadd.f32 %v2616, %v2776
      %v2778 = vpop.f32.mrf.mxu0
      %v2779 = vpop.f32.mrf.mxu0
      %v2780 = vadd.f32 %v2616, %v2779
      %v2781 = vpop.f32.mrf.mxu0
      %2782 = vmatprep.mubr.bf16.mxu0 0
      %2783 = vmatmul.mubr.bf16.gmra.mxu0 %v2658
      %v2784 = vpop.f32.mrf.mxu0
      %v2785 = vadd.f32 %v2616, %v2784
      %v2786 = vpop.f32.mrf.mxu0
      %v2787 = vpop.f32.mrf.mxu0
      %v2788 = vadd.f32 %v2616, %v2787
      %v2789 = vpop.f32.mrf.mxu0
      %2790 = vmatprep.mubr.bf16.mxu0 0
      %2791 = vmatmul.mubr.bf16.gmra.mxu0 %v2661
      %v2792 = vpop.f32.mrf.mxu0
      %v2793 = vadd.f32 %v2616, %v2792
      %v2794 = vpop.f32.mrf.mxu0
      %v2795 = vpop.f32.mrf.mxu0
      %v2796 = vadd.f32 %v2616, %v2795
      %v2797 = vpop.f32.mrf.mxu0
      %2798 = vmatprep.mubr.bf16.mxu0 0
      %2799 = vmatmul.mubr.bf16.gmra.mxu0 %v2664
      %v2800 = vpop.f32.mrf.mxu0
      %v2801 = vadd.f32 %v2616, %v2800
      %v2802 = vpop.f32.mrf.mxu0
      %v2803 = vpop.f32.mrf.mxu0
      %v2804 = vadd.f32 %v2616, %v2803
      %v2805 = vpop.f32.mrf.mxu0
      %2806 = vmatprep.mubr.bf16.mxu0 0
      %2807 = vmatmul.mubr.bf16.gmra.mxu0 %v2667
      %v2808 = vpop.f32.mrf.mxu0
      %v2809 = vadd.f32 %v2616, %v2808
      %v2810 = vpop.f32.mrf.mxu0
      %v2811 = vpop.f32.mrf.mxu0
      %v2812 = vadd.f32 %v2616, %v2811
      %v2813 = vpop.f32.mrf.mxu0
      %2814 = vmatprep.mubr.bf16.mxu0 0
      %2815 = vmatmul.mubr.bf16.gmra.mxu0 %v2670
      %v2816 = vpop.f32.mrf.mxu0
      %v2817 = vadd.f32 %v2616, %v2816
      %v2818 = vpop.f32.mrf.mxu0
      %v2819 = vpop.f32.mrf.mxu0
      %v2820 = vadd.f32 %v2616, %v2819
      %v2821 = vpop.f32.mrf.mxu0
      %2822 = vmatprep.mubr.bf16.mxu0 0
      %2823 = vmatmul.mubr.bf16.gmra.mxu0 %v2673
      %v2824 = vpop.f32.mrf.mxu0
      %v2825 = vadd.f32 %v2616, %v2824
      %v2826 = vpop.f32.mrf.mxu0
      %v2827 = vpop.f32.mrf.mxu0
      %v2828 = vadd.f32 %v2616, %v2827
      %v2829 = vpop.f32.mrf.mxu0
      %2830 = vmatprep.mubr.bf16.mxu0 0
      %2831 = vmatmul.mubr.bf16.gmra.mxu0 %v2676
      %v2832 = vpop.f32.mrf.mxu0
      %v2833 = vadd.f32 %v2616, %v2832
      %v2834 = vpop.f32.mrf.mxu0
      %v2835 = vpop.f32.mrf.mxu0
      %v2836 = vadd.f32 %v2616, %v2835
      %v2837 = vpop.f32.mrf.mxu0
      %2838 = vdwg.mxu0
      %v2839 = vmax.f32 %v2713, 0.0
      %v2840 = vmax.f32 %v2716, 0.0
      %v2841 = vmax.f32 %v2721, 0.0
      %v2842 = vmax.f32 %v2724, 0.0
      %v2843 = vmax.f32 %v2729, 0.0
      %v2844 = vmax.f32 %v2732, 0.0
      %v2845 = vmax.f32 %v2737, 0.0
      %v2846 = vmax.f32 %v2740, 0.0
      %v2847 = vmax.f32 %v2745, 0.0
      %v2848 = vmax.f32 %v2748, 0.0
      %v2849 = vmax.f32 %v2753, 0.0
      %v2850 = vmax.f32 %v2756, 0.0
      %v2851 = vmax.f32 %v2761, 0.0
      %v2852 = vmax.f32 %v2764, 0.0
      %v2853 = vmax.f32 %v2769, 0.0
      %v2854 = vmax.f32 %v2772, 0.0
      %v2855 = vmax.f32 %v2777, 0.0
      %v2856 = vmax.f32 %v2780, 0.0
      %v2857 = vmax.f32 %v2785, 0.0
      %v2858 = vmax.f32 %v2788, 0.0
      %v2859 = vmax.f32 %v2793, 0.0
      %v2860 = vmax.f32 %v2796, 0.0
      %v2861 = vmax.f32 %v2801, 0.0
      %v2862 = vmax.f32 %v2804, 0.0
      %v2863 = vmax.f32 %v2809, 0.0
      %v2864 = vmax.f32 %v2812, 0.0
      %v2865 = vmax.f32 %v2817, 0.0
      %v2866 = vmax.f32 %v2820, 0.0
      %v2867 = vmax.f32 %v2825, 0.0
      %v2868 = vmax.f32 %v2828, 0.0
      %v2869 = vmax.f32 %v2833, 0.0
      %v2870 = vmax.f32 %v2836, 0.0
      %v2871 = vpack.c.bf16 %v2840, %v2839
      %v2872 = vpack.c.bf16 %v2842, %v2841
      %v2873 = vpack.c.bf16 %v2844, %v2843
      %v2874 = vpack.c.bf16 %v2846, %v2845
      %v2875 = vpack.c.bf16 %v2848, %v2847
      %v2876 = vpack.c.bf16 %v2850, %v2849
      %v2877 = vpack.c.bf16 %v2852, %v2851
      %v2878 = vpack.c.bf16 %v2854, %v2853
      %v2879 = vpack.c.bf16 %v2856, %v2855
      %v2880 = vpack.c.bf16 %v2858, %v2857
      %v2881 = vpack.c.bf16 %v2860, %v2859
      %v2882 = vpack.c.bf16 %v2862, %v2861
      %v2883 = vpack.c.bf16 %v2864, %v2863
      %v2884 = vpack.c.bf16 %v2866, %v2865
      %v2885 = vpack.c.bf16 %v2868, %v2867
      %v2886 = vpack.c.bf16 %v2870, %v2869
      %v2887 = vld [vmem:[%s15] sm:$0xf]
      %v2888 = vld [vmem:[%s15 + $0x4] sm:$0xf]
      %v2889 = vld [vmem:[%s15 + $0x8] sm:$0xf]
      %v2890 = vld [vmem:[%s15 + $0xc] sm:$0xf]
      %v2891 = vld [vmem:[%s16] sm:$0x1]
      %v2893 = vlaneseq
      %v2894 = vshrl.u32 %v2893, 7
      %v2895 = vsub.s32 0, %v2894
      %v2896 = vrot.slane %v2891, %v2895
      %v2902 = vunpack.c.l.b16 %v2887
      %v2903 = vunpack.c.l.b16 %v2888
      %v2904 = vunpack.c.l.b16 %v2889
      %v2905 = vunpack.c.l.b16 %v2890
      %v2906 = vpack.c.b16 %v2903, %v2902
      %v2907 = vpack.c.b16 %v2905, %v2904
      %v2911 = vsel %vm1235, %v2871, 0
      %v2914 = vsel %vm1235, %v2872, 0
      %v2917 = vsel %vm1235, %v2873, 0
      %v2920 = vsel %vm1235, %v2874, 0
      %v2923 = vsel %vm1235, %v2875, 0
      %v2926 = vsel %vm1235, %v2876, 0
      %v2929 = vsel %vm1235, %v2877, 0
      %v2932 = vsel %vm1235, %v2878, 0
      %v2935 = vsel %vm1235, %v2879, 0
      %v2938 = vsel %vm1235, %v2880, 0
      %v2941 = vsel %vm1235, %v2881, 0
      %v2944 = vsel %vm1235, %v2882, 0
      %v2947 = vsel %vm1235, %v2883, 0
      %v2950 = vsel %vm1235, %v2884, 0
      %v2953 = vsel %vm1235, %v2885, 0
      %v2956 = vsel %vm1235, %v2886, 0
      %2958 = vmatprep.subr.bf16.mxu0 0
      %2959 = vmatpush1.bf16.msra.mxu0 0
      %2960 = vmatprep.subr.bf16.mxu0 0
      %2961 = vmatpush1.bf16.msra.mxu0 0
      %2962 = vmatprep.subr.bf16.mxu0 0
      %2963 = vmatpush1.bf16.msra.mxu0 0
      %2964 = vmatprep.subr.bf16.mxu0 0
      %2965 = vmatpush1.bf16.msra.mxu0 0
      %2966 = vmatprep.subr.bf16.mxu0 0
      %2967 = vmatpush1.bf16.msra.mxu0 0
      %2968 = vmatprep.subr.bf16.mxu0 0
      %2969 = vmatpush1.bf16.msra.mxu0 0
      %2970 = vmatprep.subr.bf16.mxu0 0
      %2971 = vmatpush1.bf16.msra.mxu0 %v2907
      %2972 = vmatprep.subr.bf16.mxu0 0
      %2973 = vmatpush1.bf16.msra.mxu0 %v2906
      %2974 = vmatprep.subr.bf16.mxu0 0
      %2975 = vmatpush2.bf16.msra.mxu0 0
      %2976 = vmatprep.subr.bf16.mxu0 0
      %2977 = vmatpush2.bf16.msra.mxu0 0
      %2978 = vmatprep.subr.bf16.mxu0 0
      %2979 = vmatpush2.bf16.msra.mxu0 0
      %2980 = vmatprep.subr.bf16.mxu0 0
      %2981 = vmatpush2.bf16.msra.mxu0 0
      %2982 = vmatprep.subr.bf16.mxu0 0
      %2983 = vmatpush2.bf16.msra.mxu0 0
      %2984 = vmatprep.subr.bf16.mxu0 0
      %2985 = vmatpush2.bf16.msra.mxu0 0
      %2986 = vmatprep.subr.bf16.mxu0 0
      %2987 = vmatpush2.bf16.msra.mxu0 0
      %2988 = vmatprep.subr.bf16.mxu0 0
      %2989 = vmatpush2.bf16.msra.mxu0 0
      %2990 = vmatprep.mubr.bf16.mxu0 0
      %2991 = vmatmul.mubr.bf16.gmra.mxu0 %v2911
      %v2992 = vpop.f32.mrf.mxu0
      %v2993 = vadd.f32 %v2896, %v2992
      %v2994 = vpop.f32.mrf.mxu0
      %v2995 = vpop.f32.mrf.mxu0
      %v2996 = vadd.f32 %v2896, %v2995
      %v2997 = vpop.f32.mrf.mxu0
      %2998 = vmatprep.mubr.bf16.mxu0 0
      %2999 = vmatmul.mubr.bf16.gmra.mxu0 %v2914
      %v3000 = vpop.f32.mrf.mxu0
      %v3001 = vadd.f32 %v2896, %v3000
      %v3002 = vpop.f32.mrf.mxu0
      %v3003 = vpop.f32.mrf.mxu0
      %v3004 = vadd.f32 %v2896, %v3003
      %v3005 = vpop.f32.mrf.mxu0
      %3006 = vmatprep.mubr.bf16.mxu0 0
      %3007 = vmatmul.mubr.bf16.gmra.mxu0 %v2917
      %v3008 = vpop.f32.mrf.mxu0
      %v3009 = vadd.f32 %v2896, %v3008
      %v3010 = vpop.f32.mrf.mxu0
      %v3011 = vpop.f32.mrf.mxu0
      %v3012 = vadd.f32 %v2896, %v3011
      %v3013 = vpop.f32.mrf.mxu0
      %3014 = vmatprep.mubr.bf16.mxu0 0
      %3015 = vmatmul.mubr.bf16.gmra.mxu0 %v2920
      %v3016 = vpop.f32.mrf.mxu0
      %v3017 = vadd.f32 %v2896, %v3016
      %v3018 = vpop.f32.mrf.mxu0
      %v3019 = vpop.f32.mrf.mxu0
      %v3020 = vadd.f32 %v2896, %v3019
      %v3021 = vpop.f32.mrf.mxu0
      %3022 = vmatprep.mubr.bf16.mxu0 0
      %3023 = vmatmul.mubr.bf16.gmra.mxu0 %v2923
      %v3024 = vpop.f32.mrf.mxu0
      %v3025 = vadd.f32 %v2896, %v3024
      %v3026 = vpop.f32.mrf.mxu0
      %v3027 = vpop.f32.mrf.mxu0
      %v3028 = vadd.f32 %v2896, %v3027
      %v3029 = vpop.f32.mrf.mxu0
      %3030 = vmatprep.mubr.bf16.mxu0 0
      %3031 = vmatmul.mubr.bf16.gmra.mxu0 %v2926
      %v3032 = vpop.f32.mrf.mxu0
      %v3033 = vadd.f32 %v2896, %v3032
      %v3034 = vpop.f32.mrf.mxu0
      %v3035 = vpop.f32.mrf.mxu0
      %v3036 = vadd.f32 %v2896, %v3035
      %v3037 = vpop.f32.mrf.mxu0
      %3038 = vmatprep.mubr.bf16.mxu0 0
      %3039 = vmatmul.mubr.bf16.gmra.mxu0 %v2929
      %v3040 = vpop.f32.mrf.mxu0
      %v3041 = vadd.f32 %v2896, %v3040
      %v3042 = vpop.f32.mrf.mxu0
      %v3043 = vpop.f32.mrf.mxu0
      %v3044 = vadd.f32 %v2896, %v3043
      %v3045 = vpop.f32.mrf.mxu0
      %3046 = vmatprep.mubr.bf16.mxu0 0
      %3047 = vmatmul.mubr.bf16.gmra.mxu0 %v2932
      %v3048 = vpop.f32.mrf.mxu0
      %v3049 = vadd.f32 %v2896, %v3048
      %v3050 = vpop.f32.mrf.mxu0
      %v3051 = vpop.f32.mrf.mxu0
      %v3052 = vadd.f32 %v2896, %v3051
      %v3053 = vpop.f32.mrf.mxu0
      %3054 = vmatprep.mubr.bf16.mxu0 0
      %3055 = vmatmul.mubr.bf16.gmra.mxu0 %v2935
      %v3056 = vpop.f32.mrf.mxu0
      %v3057 = vadd.f32 %v2896, %v3056
      %v3058 = vpop.f32.mrf.mxu0
      %v3059 = vpop.f32.mrf.mxu0
      %v3060 = vadd.f32 %v2896, %v3059
      %v3061 = vpop.f32.mrf.mxu0
      %3062 = vmatprep.mubr.bf16.mxu0 0
      %3063 = vmatmul.mubr.bf16.gmra.mxu0 %v2938
      %v3064 = vpop.f32.mrf.mxu0
      %v3065 = vadd.f32 %v2896, %v3064
      %v3066 = vpop.f32.mrf.mxu0
      %v3067 = vpop.f32.mrf.mxu0
      %v3068 = vadd.f32 %v2896, %v3067
      %v3069 = vpop.f32.mrf.mxu0
      %3070 = vmatprep.mubr.bf16.mxu0 0
      %3071 = vmatmul.mubr.bf16.gmra.mxu0 %v2941
      %v3072 = vpop.f32.mrf.mxu0
      %v3073 = vadd.f32 %v2896, %v3072
      %v3074 = vpop.f32.mrf.mxu0
      %v3075 = vpop.f32.mrf.mxu0
      %v3076 = vadd.f32 %v2896, %v3075
      %v3077 = vpop.f32.mrf.mxu0
      %3078 = vmatprep.mubr.bf16.mxu0 0
      %3079 = vmatmul.mubr.bf16.gmra.mxu0 %v2944
      %v3080 = vpop.f32.mrf.mxu0
      %v3081 = vadd.f32 %v2896, %v3080
      %v3082 = vpop.f32.mrf.mxu0
      %v3083 = vpop.f32.mrf.mxu0
      %v3084 = vadd.f32 %v2896, %v3083
      %v3085 = vpop.f32.mrf.mxu0
      %3086 = vmatprep.mubr.bf16.mxu0 0
      %3087 = vmatmul.mubr.bf16.gmra.mxu0 %v2947
      %v3088 = vpop.f32.mrf.mxu0
      %v3089 = vadd.f32 %v2896, %v3088
      %v3090 = vpop.f32.mrf.mxu0
      %v3091 = vpop.f32.mrf.mxu0
      %v3092 = vadd.f32 %v2896, %v3091
      %v3093 = vpop.f32.mrf.mxu0
      %3094 = vmatprep.mubr.bf16.mxu0 0
      %3095 = vmatmul.mubr.bf16.gmra.mxu0 %v2950
      %v3096 = vpop.f32.mrf.mxu0
      %v3097 = vadd.f32 %v2896, %v3096
      %v3098 = vpop.f32.mrf.mxu0
      %v3099 = vpop.f32.mrf.mxu0
      %v3100 = vadd.f32 %v2896, %v3099
      %v3101 = vpop.f32.mrf.mxu0
      %3102 = vmatprep.mubr.bf16.mxu0 0
      %3103 = vmatmul.mubr.bf16.gmra.mxu0 %v2953
      %v3104 = vpop.f32.mrf.mxu0
      %v3105 = vadd.f32 %v2896, %v3104
      %v3106 = vpop.f32.mrf.mxu0
      %v3107 = vpop.f32.mrf.mxu0
      %v3108 = vadd.f32 %v2896, %v3107
      %v3109 = vpop.f32.mrf.mxu0
      %3110 = vmatprep.mubr.bf16.mxu0 0
      %3111 = vmatmul.mubr.bf16.gmra.mxu0 %v2956
      %v3112 = vpop.f32.mrf.mxu0
      %v3113 = vadd.f32 %v2896, %v3112
      %v3114 = vpop.f32.mrf.mxu0
      %v3115 = vpop.f32.mrf.mxu0
      %v3116 = vadd.f32 %v2896, %v3115
      %v3117 = vpop.f32.mrf.mxu0
      %3118 = vdwg.mxu0
      %3119 = vst.msk [vmem:[%s836] sm:$0xff] %vm954, %v2993
      %3120 = vst.msk [vmem:[%s836 + $0x8] sm:$0xff] %vm954, %v2996
      %3121 = vst.msk [vmem:[%s836 + $0x10] sm:$0xff] %vm954, %v3001
      %3122 = vst.msk [vmem:[%s836 + $0x18] sm:$0xff] %vm954, %v3004
      %3123 = vst.msk [vmem:[%s836 + $0x20] sm:$0xff] %vm954, %v3009
      %3124 = vst.msk [vmem:[%s836 + $0x28] sm:$0xff] %vm954, %v3012
      %3125 = vst.msk [vmem:[%s836 + $0x30] sm:$0xff] %vm954, %v3017
      %3126 = vst.msk [vmem:[%s836 + $0x38] sm:$0xff] %vm954, %v3020
      %3127 = vst.msk [vmem:[%s836 + $0x40] sm:$0xff] %vm954, %v3025
      %3128 = vst.msk [vmem:[%s836 + $0x48] sm:$0xff] %vm954, %v3028
      %3129 = vst.msk [vmem:[%s836 + $0x50] sm:$0xff] %vm954, %v3033
      %3130 = vst.msk [vmem:[%s836 + $0x58] sm:$0xff] %vm954, %v3036
      %3131 = vst.msk [vmem:[%s836 + $0x60] sm:$0xff] %vm954, %v3041
      %3132 = vst.msk [vmem:[%s836 + $0x68] sm:$0xff] %vm954, %v3044
      %3133 = vst.msk [vmem:[%s836 + $0x70] sm:$0xff] %vm954, %v3049
      %3134 = vst.msk [vmem:[%s836 + $0x78] sm:$0xff] %vm954, %v3052
      %3135 = vst.msk [vmem:[%s836 + $0x80] sm:$0xff] %vm954, %v3057
      %3136 = vst.msk [vmem:[%s836 + $0x88] sm:$0xff] %vm954, %v3060
      %3137 = vst.msk [vmem:[%s836 + $0x90] sm:$0xff] %vm954, %v3065
      %3138 = vst.msk [vmem:[%s836 + $0x98] sm:$0xff] %vm954, %v3068
      %3139 = vst.msk [vmem:[%s836 + $0xa0] sm:$0xff] %vm954, %v3073
      %3140 = vst.msk [vmem:[%s836 + $0xa8] sm:$0xff] %vm954, %v3076
      %3141 = vst.msk [vmem:[%s836 + $0xb0] sm:$0xff] %vm954, %v3081
      %3142 = vst.msk [vmem:[%s836 + $0xb8] sm:$0xff] %vm954, %v3084
      %3143 = vst.msk [vmem:[%s836 + $0xc0] sm:$0xff] %vm954, %v3089
      %3144 = vst.msk [vmem:[%s836 + $0xc8] sm:$0xff] %vm954, %v3092
      %3145 = vst.msk [vmem:[%s836 + $0xd0] sm:$0xff] %vm954, %v3097
      %3146 = vst.msk [vmem:[%s836 + $0xd8] sm:$0xff] %vm954, %v3100
      %3147 = vst.msk [vmem:[%s836 + $0xe0] sm:$0xff] %vm954, %v3105
      %3148 = vst.msk [vmem:[%s836 + $0xe8] sm:$0xff] %vm954, %v3108
      %3149 = vst.msk [vmem:[%s836 + $0xf0] sm:$0xff] %vm954, %v3113
      %3150 = vst.msk [vmem:[%s836 + $0xf8] sm:$0xff] %vm954, %v3116
      %3151 = vst.msk [vmem:[%s842] sm:$0xff] %vm1235, %v1164
      %3152 = vst.msk [vmem:[%s842 + $0x8] sm:$0xff] %vm1235, %v1165
      %3153 = vst.msk [vmem:[%s842 + $0x10] sm:$0xff] %vm1235, %v1166
      %3154 = vst.msk [vmem:[%s842 + $0x18] sm:$0xff] %vm1235, %v1167
      %3155 = vst.msk [vmem:[%s842 + $0x20] sm:$0xff] %vm1235, %v1168
      %3156 = vst.msk [vmem:[%s842 + $0x28] sm:$0xff] %vm1235, %v1169
      %3157 = vst.msk [vmem:[%s842 + $0x30] sm:$0xff] %vm1235, %v1170
      %3158 = vst.msk [vmem:[%s842 + $0x38] sm:$0xff] %vm1235, %v1171
      %3159 = vst.msk [vmem:[%s842 + $0x40] sm:$0xff] %vm1235, %v1172
      %3160 = vst.msk [vmem:[%s842 + $0x48] sm:$0xff] %vm1235, %v1173
      %3161 = vst.msk [vmem:[%s842 + $0x50] sm:$0xff] %vm1235, %v1174
      %3162 = vst.msk [vmem:[%s842 + $0x58] sm:$0xff] %vm1235, %v1175
      %3163 = vst.msk [vmem:[%s842 + $0x60] sm:$0xff] %vm1235, %v1176
      %3164 = vst.msk [vmem:[%s842 + $0x68] sm:$0xff] %vm1235, %v1177
      %3165 = vst.msk [vmem:[%s842 + $0x70] sm:$0xff] %vm1235, %v1178
      %3166 = vst.msk [vmem:[%s842 + $0x78] sm:$0xff] %vm1235, %v1179
      %3167 = vst.msk [vmem:[%s842 + $0x80] sm:$0xff] %vm1235, %v1180
      %3168 = vst.msk [vmem:[%s842 + $0x88] sm:$0xff] %vm1235, %v1181
      %3169 = vst.msk [vmem:[%s842 + $0x90] sm:$0xff] %vm1235, %v1182
      %3170 = vst.msk [vmem:[%s842 + $0x98] sm:$0xff] %vm1235, %v1183
      %3171 = vst.msk [vmem:[%s842 + $0xa0] sm:$0xff] %vm1235, %v1184
      %3172 = vst.msk [vmem:[%s842 + $0xa8] sm:$0xff] %vm1235, %v1185
      %3173 = vst.msk [vmem:[%s842 + $0xb0] sm:$0xff] %vm1235, %v1186
      %3174 = vst.msk [vmem:[%s842 + $0xb8] sm:$0xff] %vm1235, %v1187
      %3175 = vst.msk [vmem:[%s842 + $0xc0] sm:$0xff] %vm1235, %v1188
      %3176 = vst.msk [vmem:[%s842 + $0xc8] sm:$0xff] %vm1235, %v1189
      %3177 = vst.msk [vmem:[%s842 + $0xd0] sm:$0xff] %vm1235, %v1190
      %3178 = vst.msk [vmem:[%s842 + $0xd8] sm:$0xff] %vm1235, %v1191
      %3179 = vst.msk [vmem:[%s842 + $0xe0] sm:$0xff] %vm1235, %v1192
      %3180 = vst.msk [vmem:[%s842 + $0xe8] sm:$0xff] %vm1235, %v1193
      %3181 = vst.msk [vmem:[%s842 + $0xf0] sm:$0xff] %vm1235, %v1194
      %3182 = vst.msk [vmem:[%s842 + $0xf8] sm:$0xff] %vm1235, %v1195
      %3183 = vst.msk [vmem:[%s848] sm:$0xff] %vm1235, %v1445
      %3184 = vst.msk [vmem:[%s848 + $0x8] sm:$0xff] %vm1235, %v1446
      %3185 = vst.msk [vmem:[%s848 + $0x10] sm:$0xff] %vm1235, %v1447
      %3186 = vst.msk [vmem:[%s848 + $0x18] sm:$0xff] %vm1235, %v1448
      %3187 = vst.msk [vmem:[%s848 + $0x20] sm:$0xff] %vm1235, %v1449
      %3188 = vst.msk [vmem:[%s848 + $0x28] sm:$0xff] %vm1235, %v1450
      %3189 = vst.msk [vmem:[%s848 + $0x30] sm:$0xff] %vm1235, %v1451
      %3190 = vst.msk [vmem:[%s848 + $0x38] sm:$0xff] %vm1235, %v1452
      %3191 = vst.msk [vmem:[%s848 + $0x40] sm:$0xff] %vm1235, %v1453
      %3192 = vst.msk [vmem:[%s848 + $0x48] sm:$0xff] %vm1235, %v1454
      %3193 = vst.msk [vmem:[%s848 + $0x50] sm:$0xff] %vm1235, %v1455
      %3194 = vst.msk [vmem:[%s848 + $0x58] sm:$0xff] %vm1235, %v1456
      %3195 = vst.msk [vmem:[%s848 + $0x60] sm:$0xff] %vm1235, %v1457
      %3196 = vst.msk [vmem:[%s848 + $0x68] sm:$0xff] %vm1235, %v1458
      %3197 = vst.msk [vmem:[%s848 + $0x70] sm:$0xff] %vm1235, %v1459
      %3198 = vst.msk [vmem:[%s848 + $0x78] sm:$0xff] %vm1235, %v1460
      %3199 = vst.msk [vmem:[%s848 + $0x80] sm:$0xff] %vm1235, %v1461
      %3200 = vst.msk [vmem:[%s848 + $0x88] sm:$0xff] %vm1235, %v1462
      %3201 = vst.msk [vmem:[%s848 + $0x90] sm:$0xff] %vm1235, %v1463
      %3202 = vst.msk [vmem:[%s848 + $0x98] sm:$0xff] %vm1235, %v1464
      %3203 = vst.msk [vmem:[%s848 + $0xa0] sm:$0xff] %vm1235, %v1465
      %3204 = vst.msk [vmem:[%s848 + $0xa8] sm:$0xff] %vm1235, %v1466
      %3205 = vst.msk [vmem:[%s848 + $0xb0] sm:$0xff] %vm1235, %v1467
      %3206 = vst.msk [vmem:[%s848 + $0xb8] sm:$0xff] %vm1235, %v1468
      %3207 = vst.msk [vmem:[%s848 + $0xc0] sm:$0xff] %vm1235, %v1469
      %3208 = vst.msk [vmem:[%s848 + $0xc8] sm:$0xff] %vm1235, %v1470
      %3209 = vst.msk [vmem:[%s848 + $0xd0] sm:$0xff] %vm1235, %v1471
      %3210 = vst.msk [vmem:[%s848 + $0xd8] sm:$0xff] %vm1235, %v1472
      %3211 = vst.msk [vmem:[%s848 + $0xe0] sm:$0xff] %vm1235, %v1473
      %3212 = vst.msk [vmem:[%s848 + $0xe8] sm:$0xff] %vm1235, %v1474
      %3213 = vst.msk [vmem:[%s848 + $0xf0] sm:$0xff] %vm1235, %v1475
      %3214 = vst.msk [vmem:[%s848 + $0xf8] sm:$0xff] %vm1235, %v1476
      %3215 = vst.msk [vmem:[%s854] sm:$0xff] %vm1812, %v1725
      %3216 = vst.msk [vmem:[%s854 + $0x8] sm:$0xff] %vm1812, %v1726
      %3217 = vst.msk [vmem:[%s854 + $0x10] sm:$0xff] %vm1812, %v1727
      %3218 = vst.msk [vmem:[%s854 + $0x18] sm:$0xff] %vm1812, %v1728
      %3219 = vst.msk [vmem:[%s854 + $0x20] sm:$0xff] %vm1812, %v1729
      %3220 = vst.msk [vmem:[%s854 + $0x28] sm:$0xff] %vm1812, %v1730
      %3221 = vst.msk [vmem:[%s854 + $0x30] sm:$0xff] %vm1812, %v1731
      %3222 = vst.msk [vmem:[%s854 + $0x38] sm:$0xff] %vm1812, %v1732
      %3223 = vst.msk [vmem:[%s854 + $0x40] sm:$0xff] %vm1812, %v1733
      %3224 = vst.msk [vmem:[%s854 + $0x48] sm:$0xff] %vm1812, %v1734
      %3225 = vst.msk [vmem:[%s854 + $0x50] sm:$0xff] %vm1812, %v1735
      %3226 = vst.msk [vmem:[%s854 + $0x58] sm:$0xff] %vm1812, %v1736
      %3227 = vst.msk [vmem:[%s854 + $0x60] sm:$0xff] %vm1812, %v1737
      %3228 = vst.msk [vmem:[%s854 + $0x68] sm:$0xff] %vm1812, %v1738
      %3229 = vst.msk [vmem:[%s854 + $0x70] sm:$0xff] %vm1812, %v1739
      %3230 = vst.msk [vmem:[%s854 + $0x78] sm:$0xff] %vm1812, %v1740
      %3231 = vst.msk [vmem:[%s854 + $0x80] sm:$0xff] %vm1812, %v1741
      %3232 = vst.msk [vmem:[%s854 + $0x88] sm:$0xff] %vm1812, %v1742
      %3233 = vst.msk [vmem:[%s854 + $0x90] sm:$0xff] %vm1812, %v1743
      %3234 = vst.msk [vmem:[%s854 + $0x98] sm:$0xff] %vm1812, %v1744
      %3235 = vst.msk [vmem:[%s854 + $0xa0] sm:$0xff] %vm1812, %v1745
      %3236 = vst.msk [vmem:[%s854 + $0xa8] sm:$0xff] %vm1812, %v1746
      %3237 = vst.msk [vmem:[%s854 + $0xb0] sm:$0xff] %vm1812, %v1747
      %3238 = vst.msk [vmem:[%s854 + $0xb8] sm:$0xff] %vm1812, %v1748
      %3239 = vst.msk [vmem:[%s854 + $0xc0] sm:$0xff] %vm1812, %v1749
      %3240 = vst.msk [vmem:[%s854 + $0xc8] sm:$0xff] %vm1812, %v1750
      %3241 = vst.msk [vmem:[%s854 + $0xd0] sm:$0xff] %vm1812, %v1751
      %3242 = vst.msk [vmem:[%s854 + $0xd8] sm:$0xff] %vm1812, %v1752
      %3243 = vst.msk [vmem:[%s854 + $0xe0] sm:$0xff] %vm1812, %v1753
      %3244 = vst.msk [vmem:[%s854 + $0xe8] sm:$0xff] %vm1812, %v1754
      %3245 = vst.msk [vmem:[%s854 + $0xf0] sm:$0xff] %vm1812, %v1755
      %3246 = vst.msk [vmem:[%s854 + $0xf8] sm:$0xff] %vm1812, %v1756
      %3247 = vst.msk [vmem:[%s860] sm:$0xff] %vm2053, %v1896
      %3248 = vst.msk [vmem:[%s860 + $0x8] sm:$0xff] %vm2053, %v1899
      %3249 = vst.msk [vmem:[%s860 + $0x10] sm:$0xff] %vm2053, %v1904
      %3250 = vst.msk [vmem:[%s860 + $0x18] sm:$0xff] %vm2053, %v1907
      %3251 = vst.msk [vmem:[%s860 + $0x20] sm:$0xff] %vm2053, %v1912
      %3252 = vst.msk [vmem:[%s860 + $0x28] sm:$0xff] %vm2053, %v1915
      %3253 = vst.msk [vmem:[%s860 + $0x30] sm:$0xff] %vm2053, %v1920
      %3254 = vst.msk [vmem:[%s860 + $0x38] sm:$0xff] %vm2053, %v1923
      %3255 = vst.msk [vmem:[%s860 + $0x40] sm:$0xff] %vm2053, %v1928
      %3256 = vst.msk [vmem:[%s860 + $0x48] sm:$0xff] %vm2053, %v1931
      %3257 = vst.msk [vmem:[%s860 + $0x50] sm:$0xff] %vm2053, %v1936
      %3258 = vst.msk [vmem:[%s860 + $0x58] sm:$0xff] %vm2053, %v1939
      %3259 = vst.msk [vmem:[%s860 + $0x60] sm:$0xff] %vm2053, %v1944
      %3260 = vst.msk [vmem:[%s860 + $0x68] sm:$0xff] %vm2053, %v1947
      %3261 = vst.msk [vmem:[%s860 + $0x70] sm:$0xff] %vm2053, %v1952
      %3262 = vst.msk [vmem:[%s860 + $0x78] sm:$0xff] %vm2053, %v1955
      %3263 = vst.msk [vmem:[%s860 + $0x80] sm:$0xff] %vm2053, %v1960
      %3264 = vst.msk [vmem:[%s860 + $0x88] sm:$0xff] %vm2053, %v1963
      %3265 = vst.msk [vmem:[%s860 + $0x90] sm:$0xff] %vm2053, %v1968
      %3266 = vst.msk [vmem:[%s860 + $0x98] sm:$0xff] %vm2053, %v1971
      %3267 = vst.msk [vmem:[%s860 + $0xa0] sm:$0xff] %vm2053, %v1976
      %3268 = vst.msk [vmem:[%s860 + $0xa8] sm:$0xff] %vm2053, %v1979
      %3269 = vst.msk [vmem:[%s860 + $0xb0] sm:$0xff] %vm2053, %v1984
      %3270 = vst.msk [vmem:[%s860 + $0xb8] sm:$0xff] %vm2053, %v1987
      %3271 = vst.msk [vmem:[%s860 + $0xc0] sm:$0xff] %vm2053, %v1992
      %3272 = vst.msk [vmem:[%s860 + $0xc8] sm:$0xff] %vm2053, %v1995
      %3273 = vst.msk [vmem:[%s860 + $0xd0] sm:$0xff] %vm2053, %v2000
      %3274 = vst.msk [vmem:[%s860 + $0xd8] sm:$0xff] %vm2053, %v2003
      %3275 = vst.msk [vmem:[%s860 + $0xe0] sm:$0xff] %vm2053, %v2008
      %3276 = vst.msk [vmem:[%s860 + $0xe8] sm:$0xff] %vm2053, %v2011
      %3277 = vst.msk [vmem:[%s860 + $0xf0] sm:$0xff] %vm2053, %v2016
      %3278 = vst.msk [vmem:[%s860 + $0xf8] sm:$0xff] %vm2053, %v2019
      %v3279 = vld [vmem:[%s17] sm:$0xf]
      %v3280 = vld [vmem:[%s17 + $0x4] sm:$0xf]
      %v3281 = vld [vmem:[%s17 + $0x8] sm:$0xf]
      %v3282 = vld [vmem:[%s17 + $0xc] sm:$0xf]
      %v3283 = vld [vmem:[%s17 + $0x10] sm:$0xf]
      %v3284 = vld [vmem:[%s17 + $0x14] sm:$0xf]
      %v3291 = vunpack.c.l.b16 %v3279
      %v3292 = vunpack.c.l.b16 %v3280
      %v3293 = vunpack.c.l.b16 %v3281
      %v3294 = vunpack.c.l.b16 %v3282
      %v3295 = vunpack.c.l.b16 %v3283
      %v3296 = vunpack.c.l.b16 %v3284
      %v3297 = vpack.c.b16 %v3292, %v3291
      %v3298 = vpack.c.b16 %v3294, %v3293
      %v3299 = vpack.c.b16 %v3296, %v3295
      %3303 = vmatprep.subr.bf16.mxu0 0
      %3304 = vmatpush1.bf16.msra.mxu0 0
      %3305 = vmatprep.subr.bf16.mxu0 0
      %3306 = vmatpush1.bf16.msra.mxu0 0
      %3307 = vmatprep.subr.bf16.mxu0 0
      %3308 = vmatpush1.bf16.msra.mxu0 0
      %3309 = vmatprep.subr.bf16.mxu0 0
      %3310 = vmatpush1.bf16.msra.mxu0 0
      %3311 = vmatprep.subr.bf16.mxu0 0
      %3312 = vmatpush1.bf16.msra.mxu0 0
      %3313 = vmatprep.subr.bf16.mxu0 0
      %3314 = vmatpush1.bf16.msra.mxu0 %v3299
      %3315 = vmatprep.subr.bf16.mxu0 0
      %3316 = vmatpush1.bf16.msra.mxu0 %v3298
      %3317 = vmatprep.subr.bf16.mxu0 0
      %3318 = vmatpush1.bf16.msra.mxu0 %v3297
      %3319 = vmatprep.subr.bf16.mxu0 0
      %3320 = vmatpush2.bf16.msra.mxu0 0
      %3321 = vmatprep.subr.bf16.mxu0 0
      %3322 = vmatpush2.bf16.msra.mxu0 0
      %3323 = vmatprep.subr.bf16.mxu0 0
      %3324 = vmatpush2.bf16.msra.mxu0 0
      %3325 = vmatprep.subr.bf16.mxu0 0
      %3326 = vmatpush2.bf16.msra.mxu0 0
      %3327 = vmatprep.subr.bf16.mxu0 0
      %3328 = vmatpush2.bf16.msra.mxu0 0
      %3329 = vmatprep.subr.bf16.mxu0 0
      %3330 = vmatpush2.bf16.msra.mxu0 0
      %3331 = vmatprep.subr.bf16.mxu0 0
      %3332 = vmatpush2.bf16.msra.mxu0 0
      %3333 = vmatprep.subr.bf16.mxu0 0
      %3334 = vmatpush2.bf16.msra.mxu0 0
      %3335 = vmatprep.mubr.bf16.mxu0 0
      %3336 = vmatmul.mubr.bf16.gmra.mxu0 %v956
      %v3337 = vpop.f32.mrf.mxu0
      %v3338 = vadd.f32 0.0, %v3337
      %v3339 = vpop.f32.mrf.mxu0
      %v3340 = vpop.f32.mrf.mxu0
      %v3341 = vadd.f32 0.0, %v3340
      %v3342 = vpop.f32.mrf.mxu0
      %3343 = vmatprep.mubr.bf16.mxu0 0
      %3344 = vmatmul.mubr.bf16.gmra.mxu0 %v959
      %v3345 = vpop.f32.mrf.mxu0
      %v3346 = vadd.f32 0.0, %v3345
      %v3347 = vpop.f32.mrf.mxu0
      %v3348 = vpop.f32.mrf.mxu0
      %v3349 = vadd.f32 0.0, %v3348
      %v3350 = vpop.f32.mrf.mxu0
      %3351 = vmatprep.mubr.bf16.mxu0 0
      %3352 = vmatmul.mubr.bf16.gmra.mxu0 %v962
      %v3353 = vpop.f32.mrf.mxu0
      %v3354 = vadd.f32 0.0, %v3353
      %v3355 = vpop.f32.mrf.mxu0
      %v3356 = vpop.f32.mrf.mxu0
      %v3357 = vadd.f32 0.0, %v3356
      %v3358 = vpop.f32.mrf.mxu0
      %3359 = vmatprep.mubr.bf16.mxu0 0
      %3360 = vmatmul.mubr.bf16.gmra.mxu0 %v965
      %v3361 = vpop.f32.mrf.mxu0
      %v3362 = vadd.f32 0.0, %v3361
      %v3363 = vpop.f32.mrf.mxu0
      %v3364 = vpop.f32.mrf.mxu0
      %v3365 = vadd.f32 0.0, %v3364
      %v3366 = vpop.f32.mrf.mxu0
      %3367 = vmatprep.mubr.bf16.mxu0 0
      %3368 = vmatmul.mubr.bf16.gmra.mxu0 %v968
      %v3369 = vpop.f32.mrf.mxu0
      %v3370 = vadd.f32 0.0, %v3369
      %v3371 = vpop.f32.mrf.mxu0
      %v3372 = vpop.f32.mrf.mxu0
      %v3373 = vadd.f32 0.0, %v3372
      %v3374 = vpop.f32.mrf.mxu0
      %3375 = vmatprep.mubr.bf16.mxu0 0
      %3376 = vmatmul.mubr.bf16.gmra.mxu0 %v971
      %v3377 = vpop.f32.mrf.mxu0
      %v3378 = vadd.f32 0.0, %v3377
      %v3379 = vpop.f32.mrf.mxu0
      %v3380 = vpop.f32.mrf.mxu0
      %v3381 = vadd.f32 0.0, %v3380
      %v3382 = vpop.f32.mrf.mxu0
      %3383 = vmatprep.mubr.bf16.mxu0 0
      %3384 = vmatmul.mubr.bf16.gmra.mxu0 %v974
      %v3385 = vpop.f32.mrf.mxu0
      %v3386 = vadd.f32 0.0, %v3385
      %v3387 = vpop.f32.mrf.mxu0
      %v3388 = vpop.f32.mrf.mxu0
      %v3389 = vadd.f32 0.0, %v3388
      %v3390 = vpop.f32.mrf.mxu0
      %3391 = vmatprep.mubr.bf16.mxu0 0
      %3392 = vmatmul.mubr.bf16.gmra.mxu0 %v977
      %v3393 = vpop.f32.mrf.mxu0
      %v3394 = vadd.f32 0.0, %v3393
      %v3395 = vpop.f32.mrf.mxu0
      %v3396 = vpop.f32.mrf.mxu0
      %v3397 = vadd.f32 0.0, %v3396
      %v3398 = vpop.f32.mrf.mxu0
      %3399 = vmatprep.mubr.bf16.mxu0 0
      %3400 = vmatmul.mubr.bf16.gmra.mxu0 %v980
      %v3401 = vpop.f32.mrf.mxu0
      %v3402 = vadd.f32 0.0, %v3401
      %v3403 = vpop.f32.mrf.mxu0
      %v3404 = vpop.f32.mrf.mxu0
      %v3405 = vadd.f32 0.0, %v3404
      %v3406 = vpop.f32.mrf.mxu0
      %3407 = vmatprep.mubr.bf16.mxu0 0
      %3408 = vmatmul.mubr.bf16.gmra.mxu0 %v983
      %v3409 = vpop.f32.mrf.mxu0
      %v3410 = vadd.f32 0.0, %v3409
      %v3411 = vpop.f32.mrf.mxu0
      %v3412 = vpop.f32.mrf.mxu0
      %v3413 = vadd.f32 0.0, %v3412
      %v3414 = vpop.f32.mrf.mxu0
      %3415 = vmatprep.mubr.bf16.mxu0 0
      %3416 = vmatmul.mubr.bf16.gmra.mxu0 %v986
      %v3417 = vpop.f32.mrf.mxu0
      %v3418 = vadd.f32 0.0, %v3417
      %v3419 = vpop.f32.mrf.mxu0
      %v3420 = vpop.f32.mrf.mxu0
      %v3421 = vadd.f32 0.0, %v3420
      %v3422 = vpop.f32.mrf.mxu0
      %3423 = vmatprep.mubr.bf16.mxu0 0
      %3424 = vmatmul.mubr.bf16.gmra.mxu0 %v989
      %v3425 = vpop.f32.mrf.mxu0
      %v3426 = vadd.f32 0.0, %v3425
      %v3427 = vpop.f32.mrf.mxu0
      %v3428 = vpop.f32.mrf.mxu0
      %v3429 = vadd.f32 0.0, %v3428
      %v3430 = vpop.f32.mrf.mxu0
      %3431 = vmatprep.mubr.bf16.mxu0 0
      %3432 = vmatmul.mubr.bf16.gmra.mxu0 %v992
      %v3433 = vpop.f32.mrf.mxu0
      %v3434 = vadd.f32 0.0, %v3433
      %v3435 = vpop.f32.mrf.mxu0
      %v3436 = vpop.f32.mrf.mxu0
      %v3437 = vadd.f32 0.0, %v3436
      %v3438 = vpop.f32.mrf.mxu0
      %3439 = vmatprep.mubr.bf16.mxu0 0
      %3440 = vmatmul.mubr.bf16.gmra.mxu0 %v995
      %v3441 = vpop.f32.mrf.mxu0
      %v3442 = vadd.f32 0.0, %v3441
      %v3443 = vpop.f32.mrf.mxu0
      %v3444 = vpop.f32.mrf.mxu0
      %v3445 = vadd.f32 0.0, %v3444
      %v3446 = vpop.f32.mrf.mxu0
      %3447 = vmatprep.mubr.bf16.mxu0 0
      %3448 = vmatmul.mubr.bf16.gmra.mxu0 %v998
      %v3449 = vpop.f32.mrf.mxu0
      %v3450 = vadd.f32 0.0, %v3449
      %v3451 = vpop.f32.mrf.mxu0
      %v3452 = vpop.f32.mrf.mxu0
      %v3453 = vadd.f32 0.0, %v3452
      %v3454 = vpop.f32.mrf.mxu0
      %3455 = vmatprep.mubr.bf16.mxu0 0
      %3456 = vmatmul.mubr.bf16.gmra.mxu0 %v1001
      %v3457 = vpop.f32.mrf.mxu0
      %v3458 = vadd.f32 0.0, %v3457
      %v3459 = vpop.f32.mrf.mxu0
      %v3460 = vpop.f32.mrf.mxu0
      %v3461 = vadd.f32 0.0, %v3460
      %v3462 = vpop.f32.mrf.mxu0
      %3463 = vdwg.mxu0
      %v3464 = vpack.c.bf16 %v3341, %v3338
      %v3465 = vpack.c.bf16 %v3349, %v3346
      %v3466 = vpack.c.bf16 %v3357, %v3354
      %v3467 = vpack.c.bf16 %v3365, %v3362
      %v3468 = vpack.c.bf16 %v3373, %v3370
      %v3469 = vpack.c.bf16 %v3381, %v3378
      %v3470 = vpack.c.bf16 %v3389, %v3386
      %v3471 = vpack.c.bf16 %v3397, %v3394
      %v3472 = vpack.c.bf16 %v3405, %v3402
      %v3473 = vpack.c.bf16 %v3413, %v3410
      %v3474 = vpack.c.bf16 %v3421, %v3418
      %v3475 = vpack.c.bf16 %v3429, %v3426
      %v3476 = vpack.c.bf16 %v3437, %v3434
      %v3477 = vpack.c.bf16 %v3445, %v3442
      %v3478 = vpack.c.bf16 %v3453, %v3450
      %v3479 = vpack.c.bf16 %v3461, %v3458
      %v3496 = vunpack.c.l.b16 %v3464
      %v3497 = vunpack.c.h.b16 %v3464
      %v3498 = vunpack.c.l.b16 %v3465
      %v3499 = vunpack.c.h.b16 %v3465
      %v3500 = vunpack.c.l.b16 %v3466
      %v3501 = vunpack.c.h.b16 %v3466
      %v3502 = vunpack.c.l.b16 %v3467
      %v3503 = vunpack.c.h.b16 %v3467
      %v3504 = vunpack.c.l.b16 %v3468
      %v3505 = vunpack.c.h.b16 %v3468
      %v3506 = vunpack.c.l.b16 %v3469
      %v3507 = vunpack.c.h.b16 %v3469
      %v3508 = vunpack.c.l.b16 %v3470
      %v3509 = vunpack.c.h.b16 %v3470
      %v3510 = vunpack.c.l.b16 %v3471
      %v3511 = vunpack.c.h.b16 %v3471
      %v3512 = vunpack.c.l.b16 %v3472
      %v3513 = vunpack.c.h.b16 %v3472
      %v3514 = vunpack.c.l.b16 %v3473
      %v3515 = vunpack.c.h.b16 %v3473
      %v3516 = vunpack.c.l.b16 %v3474
      %v3517 = vunpack.c.h.b16 %v3474
      %v3518 = vunpack.c.l.b16 %v3475
      %v3519 = vunpack.c.h.b16 %v3475
      %v3520 = vunpack.c.l.b16 %v3476
      %v3521 = vunpack.c.h.b16 %v3476
      %v3522 = vunpack.c.l.b16 %v3477
      %v3523 = vunpack.c.h.b16 %v3477
      %v3524 = vunpack.c.l.b16 %v3478
      %v3525 = vunpack.c.h.b16 %v3478
      %v3526 = vunpack.c.l.b16 %v3479
      %v3527 = vunpack.c.h.b16 %v3479
      %v3528 = vpack.c.b16 %v3496, %v3496
      %v3529 = vpack.c.b16 %v3497, %v3497
      %v3530 = vpack.c.b16 %v3498, %v3498
      %v3531 = vpack.c.b16 %v3499, %v3499
      %v3532 = vpack.c.b16 %v3500, %v3500
      %v3533 = vpack.c.b16 %v3501, %v3501
      %v3534 = vpack.c.b16 %v3502, %v3502
      %v3535 = vpack.c.b16 %v3503, %v3503
      %v3536 = vpack.c.b16 %v3504, %v3504
      %v3537 = vpack.c.b16 %v3505, %v3505
      %v3538 = vpack.c.b16 %v3506, %v3506
      %v3539 = vpack.c.b16 %v3507, %v3507
      %v3540 = vpack.c.b16 %v3508, %v3508
      %v3541 = vpack.c.b16 %v3509, %v3509
      %v3542 = vpack.c.b16 %v3510, %v3510
      %v3543 = vpack.c.b16 %v3511, %v3511
      %v3544 = vpack.c.b16 %v3512, %v3512
      %v3545 = vpack.c.b16 %v3513, %v3513
      %v3546 = vpack.c.b16 %v3514, %v3514
      %v3547 = vpack.c.b16 %v3515, %v3515
      %v3548 = vpack.c.b16 %v3516, %v3516
      %v3549 = vpack.c.b16 %v3517, %v3517
      %v3550 = vpack.c.b16 %v3518, %v3518
      %v3551 = vpack.c.b16 %v3519, %v3519
      %v3552 = vpack.c.b16 %v3520, %v3520
      %v3553 = vpack.c.b16 %v3521, %v3521
      %v3554 = vpack.c.b16 %v3522, %v3522
      %v3555 = vpack.c.b16 %v3523, %v3523
      %v3556 = vpack.c.b16 %v3524, %v3524
      %v3557 = vpack.c.b16 %v3525, %v3525
      %v3558 = vpack.c.b16 %v3526, %v3526
      %v3559 = vpack.c.b16 %v3527, %v3527
      %vm3592 = vcmask 257024
      %3593 = vst.msk [vmem:[%s866] sm:$0xf] %vm3592, %v3528
      %3594 = vst.msk [vmem:[%s866 + $0x4] sm:$0xf] %vm3592, %v3529
      %3595 = vst.msk [vmem:[%s866 + $0x8] sm:$0xf] %vm3592, %v3530
      %3596 = vst.msk [vmem:[%s866 + $0xc] sm:$0xf] %vm3592, %v3531
      %3597 = vst.msk [vmem:[%s866 + $0x10] sm:$0xf] %vm3592, %v3532
      %3598 = vst.msk [vmem:[%s866 + $0x14] sm:$0xf] %vm3592, %v3533
      %3599 = vst.msk [vmem:[%s866 + $0x18] sm:$0xf] %vm3592, %v3534
      %3600 = vst.msk [vmem:[%s866 + $0x1c] sm:$0xf] %vm3592, %v3535
      %3601 = vst.msk [vmem:[%s866 + $0x20] sm:$0xf] %vm3592, %v3536
      %3602 = vst.msk [vmem:[%s866 + $0x24] sm:$0xf] %vm3592, %v3537
      %3603 = vst.msk [vmem:[%s866 + $0x28] sm:$0xf] %vm3592, %v3538
      %3604 = vst.msk [vmem:[%s866 + $0x2c] sm:$0xf] %vm3592, %v3539
      %3605 = vst.msk [vmem:[%s866 + $0x30] sm:$0xf] %vm3592, %v3540
      %3606 = vst.msk [vmem:[%s866 + $0x34] sm:$0xf] %vm3592, %v3541
      %3607 = vst.msk [vmem:[%s866 + $0x38] sm:$0xf] %vm3592, %v3542
      %3608 = vst.msk [vmem:[%s866 + $0x3c] sm:$0xf] %vm3592, %v3543
      %3609 = vst.msk [vmem:[%s866 + $0x40] sm:$0xf] %vm3592, %v3544
      %3610 = vst.msk [vmem:[%s866 + $0x44] sm:$0xf] %vm3592, %v3545
      %3611 = vst.msk [vmem:[%s866 + $0x48] sm:$0xf] %vm3592, %v3546
      %3612 = vst.msk [vmem:[%s866 + $0x4c] sm:$0xf] %vm3592, %v3547
      %3613 = vst.msk [vmem:[%s866 + $0x50] sm:$0xf] %vm3592, %v3548
      %3614 = vst.msk [vmem:[%s866 + $0x54] sm:$0xf] %vm3592, %v3549
      %3615 = vst.msk [vmem:[%s866 + $0x58] sm:$0xf] %vm3592, %v3550
      %3616 = vst.msk [vmem:[%s866 + $0x5c] sm:$0xf] %vm3592, %v3551
      %3617 = vst.msk [vmem:[%s866 + $0x60] sm:$0xf] %vm3592, %v3552
      %3618 = vst.msk [vmem:[%s866 + $0x64] sm:$0xf] %vm3592, %v3553
      %3619 = vst.msk [vmem:[%s866 + $0x68] sm:$0xf] %vm3592, %v3554
      %3620 = vst.msk [vmem:[%s866 + $0x6c] sm:$0xf] %vm3592, %v3555
      %3621 = vst.msk [vmem:[%s866 + $0x70] sm:$0xf] %vm3592, %v3556
      %3622 = vst.msk [vmem:[%s866 + $0x74] sm:$0xf] %vm3592, %v3557
      %3623 = vst.msk [vmem:[%s866 + $0x78] sm:$0xf] %vm3592, %v3558
      %3624 = vst.msk [vmem:[%s866 + $0x7c] sm:$0xf] %vm3592, %v3559
      %v3625 = vld [vmem:[%s18] sm:$0xff]
      %v3626 = vld [vmem:[%s18 + $0x8] sm:$0xff]
      %v3627 = vmul.f32 %v1896, %v1896
      %v3628 = vmul.f32 %v1899, %v1899
      %v3629 = vmul.f32 %v1904, %v1904
      %v3630 = vmul.f32 %v1907, %v1907
      %v3631 = vmul.f32 %v1912, %v1912
      %v3632 = vmul.f32 %v1915, %v1915
      %v3633 = vmul.f32 %v1920, %v1920
      %v3634 = vmul.f32 %v1923, %v1923
      %v3635 = vmul.f32 %v1928, %v1928
      %v3636 = vmul.f32 %v1931, %v1931
      %v3637 = vmul.f32 %v1936, %v1936
      %v3638 = vmul.f32 %v1939, %v1939
      %v3639 = vmul.f32 %v1944, %v1944
      %v3640 = vmul.f32 %v1947, %v1947
      %v3641 = vmul.f32 %v1952, %v1952
      %v3642 = vmul.f32 %v1955, %v1955
      %v3643 = vmul.f32 %v1960, %v1960
      %v3644 = vmul.f32 %v1963, %v1963
      %v3645 = vmul.f32 %v1968, %v1968
      %v3646 = vmul.f32 %v1971, %v1971
      %v3647 = vmul.f32 %v1976, %v1976
      %v3648 = vmul.f32 %v1979, %v1979
      %v3649 = vmul.f32 %v1984, %v1984
      %v3650 = vmul.f32 %v1987, %v1987
      %v3651 = vmul.f32 %v1992, %v1992
      %v3652 = vmul.f32 %v1995, %v1995
      %v3653 = vmul.f32 %v2000, %v2000
      %v3654 = vmul.f32 %v2003, %v2003
      %v3655 = vmul.f32 %v2008, %v2008
      %v3656 = vmul.f32 %v2011, %v2011
      %v3657 = vmul.f32 %v2016, %v2016
      %v3658 = vmul.f32 %v2019, %v2019
      %v3659 = vsel %vm2053, %v3627, 0.0
      %3660 = vadd.xlane.f32.xlu0 %v3659
      %v3661 = vpop.xlane.xlu0 %3660
      %v3662 = vsel %vm2053, %v3628, 0.0
      %3663 = vadd.xlane.f32.xlu0 %v3662
      %v3664 = vpop.xlane.xlu0 %3663
      %v3665 = vsel %vm2053, %v3629, 0.0
      %3666 = vadd.xlane.f32.xlu0 %v3665
      %v3667 = vpop.xlane.xlu0 %3666
      %v3668 = vsel %vm2053, %v3630, 0.0
      %3669 = vadd.xlane.f32.xlu0 %v3668
      %v3670 = vpop.xlane.xlu0 %3669
      %v3671 = vsel %vm2053, %v3631, 0.0
      %3672 = vadd.xlane.f32.xlu0 %v3671
      %v3673 = vpop.xlane.xlu0 %3672
      %v3674 = vsel %vm2053, %v3632, 0.0
      %3675 = vadd.xlane.f32.xlu0 %v3674
      %v3676 = vpop.xlane.xlu0 %3675
      %v3677 = vsel %vm2053, %v3633, 0.0
      %3678 = vadd.xlane.f32.xlu0 %v3677
      %v3679 = vpop.xlane.xlu0 %3678
      %v3680 = vsel %vm2053, %v3634, 0.0
      %3681 = vadd.xlane.f32.xlu0 %v3680
      %v3682 = vpop.xlane.xlu0 %3681
      %v3683 = vsel %vm2053, %v3635, 0.0
      %3684 = vadd.xlane.f32.xlu0 %v3683
      %v3685 = vpop.xlane.xlu0 %3684
      %v3686 = vsel %vm2053, %v3636, 0.0
      %3687 = vadd.xlane.f32.xlu0 %v3686
      %v3688 = vpop.xlane.xlu0 %3687
      %v3689 = vsel %vm2053, %v3637, 0.0
      %3690 = vadd.xlane.f32.xlu0 %v3689
      %v3691 = vpop.xlane.xlu0 %3690
      %v3692 = vsel %vm2053, %v3638, 0.0
      %3693 = vadd.xlane.f32.xlu0 %v3692
      %v3694 = vpop.xlane.xlu0 %3693
      %v3695 = vsel %vm2053, %v3639, 0.0
      %3696 = vadd.xlane.f32.xlu0 %v3695
      %v3697 = vpop.xlane.xlu0 %3696
      %v3698 = vsel %vm2053, %v3640, 0.0
      %3699 = vadd.xlane.f32.xlu0 %v3698
      %v3700 = vpop.xlane.xlu0 %3699
      %v3701 = vsel %vm2053, %v3641, 0.0
      %3702 = vadd.xlane.f32.xlu0 %v3701
      %v3703 = vpop.xlane.xlu0 %3702
      %v3704 = vsel %vm2053, %v3642, 0.0
      %3705 = vadd.xlane.f32.xlu0 %v3704
      %v3706 = vpop.xlane.xlu0 %3705
      %v3707 = vsel %vm2053, %v3643, 0.0
      %3708 = vadd.xlane.f32.xlu0 %v3707
      %v3709 = vpop.xlane.xlu0 %3708
      %v3710 = vsel %vm2053, %v3644, 0.0
      %3711 = vadd.xlane.f32.xlu0 %v3710
      %v3712 = vpop.xlane.xlu0 %3711
      %v3713 = vsel %vm2053, %v3645, 0.0
      %3714 = vadd.xlane.f32.xlu0 %v3713
      %v3715 = vpop.xlane.xlu0 %3714
      %v3716 = vsel %vm2053, %v3646, 0.0
      %3717 = vadd.xlane.f32.xlu0 %v3716
      %v3718 = vpop.xlane.xlu0 %3717
      %v3719 = vsel %vm2053, %v3647, 0.0
      %3720 = vadd.xlane.f32.xlu0 %v3719
      %v3721 = vpop.xlane.xlu0 %3720
      %v3722 = vsel %vm2053, %v3648, 0.0
      %3723 = vadd.xlane.f32.xlu0 %v3722
      %v3724 = vpop.xlane.xlu0 %3723
      %v3725 = vsel %vm2053, %v3649, 0.0
      %3726 = vadd.xlane.f32.xlu0 %v3725
      %v3727 = vpop.xlane.xlu0 %3726
      %v3728 = vsel %vm2053, %v3650, 0.0
      %3729 = vadd.xlane.f32.xlu0 %v3728
      %v3730 = vpop.xlane.xlu0 %3729
      %v3731 = vsel %vm2053, %v3651, 0.0
      %3732 = vadd.xlane.f32.xlu0 %v3731
      %v3733 = vpop.xlane.xlu0 %3732
      %v3734 = vsel %vm2053, %v3652, 0.0
      %3735 = vadd.xlane.f32.xlu0 %v3734
      %v3736 = vpop.xlane.xlu0 %3735
      %v3737 = vsel %vm2053, %v3653, 0.0
      %3738 = vadd.xlane.f32.xlu0 %v3737
      %v3739 = vpop.xlane.xlu0 %3738
      %v3740 = vsel %vm2053, %v3654, 0.0
      %3741 = vadd.xlane.f32.xlu0 %v3740
      %v3742 = vpop.xlane.xlu0 %3741
      %v3743 = vsel %vm2053, %v3655, 0.0
      %3744 = vadd.xlane.f32.xlu0 %v3743
      %v3745 = vpop.xlane.xlu0 %3744
      %v3746 = vsel %vm2053, %v3656, 0.0
      %3747 = vadd.xlane.f32.xlu0 %v3746
      %v3748 = vpop.xlane.xlu0 %3747
      %v3749 = vsel %vm2053, %v3657, 0.0
      %3750 = vadd.xlane.f32.xlu0 %v3749
      %v3751 = vpop.xlane.xlu0 %3750
      %v3752 = vsel %vm2053, %v3658, 0.0
      %3753 = vadd.xlane.f32.xlu0 %v3752
      %v3754 = vpop.xlane.xlu0 %3753
      %v3755 = vld [vmem:[%s19] sm:$0x1]
      %v3757 = vlaneseq
      %v3758 = vshrl.u32 %v3757, 7
      %v3759 = vsub.s32 0, %v3758
      %v3760 = vrot.slane %v3755, %v3759
      %v3762 = vadd.f32 %v3661, %v3760
      %v3763 = vadd.f32 %v3664, %v3760
      %v3764 = vadd.f32 %v3667, %v3760
      %v3765 = vadd.f32 %v3670, %v3760
      %v3766 = vadd.f32 %v3673, %v3760
      %v3767 = vadd.f32 %v3676, %v3760
      %v3768 = vadd.f32 %v3679, %v3760
      %v3769 = vadd.f32 %v3682, %v3760
      %v3770 = vadd.f32 %v3685, %v3760
      %v3771 = vadd.f32 %v3688, %v3760
      %v3772 = vadd.f32 %v3691, %v3760
      %v3773 = vadd.f32 %v3694, %v3760
      %v3774 = vadd.f32 %v3697, %v3760
      %v3775 = vadd.f32 %v3700, %v3760
      %v3776 = vadd.f32 %v3703, %v3760
      %v3777 = vadd.f32 %v3706, %v3760
      %v3778 = vadd.f32 %v3709, %v3760
      %v3779 = vadd.f32 %v3712, %v3760
      %v3780 = vadd.f32 %v3715, %v3760
      %v3781 = vadd.f32 %v3718, %v3760
      %v3782 = vadd.f32 %v3721, %v3760
      %v3783 = vadd.f32 %v3724, %v3760
      %v3784 = vadd.f32 %v3727, %v3760
      %v3785 = vadd.f32 %v3730, %v3760
      %v3786 = vadd.f32 %v3733, %v3760
      %v3787 = vadd.f32 %v3736, %v3760
      %v3788 = vadd.f32 %v3739, %v3760
      %v3789 = vadd.f32 %v3742, %v3760
      %v3790 = vadd.f32 %v3745, %v3760
      %v3791 = vadd.f32 %v3748, %v3760
      %v3792 = vadd.f32 %v3751, %v3760
      %v3793 = vadd.f32 %v3754, %v3760
      %v3795 = vsel %vm2053, %v1896, 0
      %v3798 = vsel %vm2053, %v1899, 0
      %v3801 = vsel %vm2053, %v1904, 0
      %v3804 = vsel %vm2053, %v1907, 0
      %v3807 = vsel %vm2053, %v1912, 0
      %v3810 = vsel %vm2053, %v1915, 0
      %v3813 = vsel %vm2053, %v1920, 0
      %v3816 = vsel %vm2053, %v1923, 0
      %v3819 = vsel %vm2053, %v1928, 0
      %v3822 = vsel %vm2053, %v1931, 0
      %v3825 = vsel %vm2053, %v1936, 0
      %v3828 = vsel %vm2053, %v1939, 0
      %v3831 = vsel %vm2053, %v1944, 0
      %v3834 = vsel %vm2053, %v1947, 0
      %v3837 = vsel %vm2053, %v1952, 0
      %v3840 = vsel %vm2053, %v1955, 0
      %v3843 = vsel %vm2053, %v1960, 0
      %v3846 = vsel %vm2053, %v1963, 0
      %v3849 = vsel %vm2053, %v1968, 0
      %v3852 = vsel %vm2053, %v1971, 0
      %v3855 = vsel %vm2053, %v1976, 0
      %v3858 = vsel %vm2053, %v1979, 0
      %v3861 = vsel %vm2053, %v1984, 0
      %v3864 = vsel %vm2053, %v1987, 0
      %v3867 = vsel %vm2053, %v1992, 0
      %v3870 = vsel %vm2053, %v1995, 0
      %v3873 = vsel %vm2053, %v2000, 0
      %v3876 = vsel %vm2053, %v2003, 0
      %v3879 = vsel %vm2053, %v2008, 0
      %v3882 = vsel %vm2053, %v2011, 0
      %v3885 = vsel %vm2053, %v2016, 0
      %v3888 = vsel %vm2053, %v2019, 0
      %3890 = vmatprep.subr.mxu0 0.0
      %3891 = vmatpush1.msra.mxu0 0.0
      %3892 = vmatprep.subr.mxu0 0.0
      %3893 = vmatpush1.msra.mxu0 0.0
      %3894 = vmatprep.subr.mxu0 0.0
      %3895 = vmatpush1.msra.mxu0 0.0
      %3896 = vmatprep.subr.mxu0 0.0
      %3897 = vmatpush1.msra.mxu0 0.0
      %3898 = vmatprep.subr.mxu0 0.0
      %3899 = vmatpush1.msra.mxu0 0.0
      %3900 = vmatprep.subr.mxu0 0.0
      %3901 = vmatpush1.msra.mxu0 0.0
      %3902 = vmatprep.subr.mxu0 0.0
      %3903 = vmatpush1.msra.mxu0 0.0
      %3904 = vmatprep.subr.mxu0 0.0
      %3905 = vmatpush1.msra.mxu0 0.0
      %3906 = vmatprep.subr.mxu0 0.0
      %3907 = vmatpush1.msra.mxu0 0.0
      %3908 = vmatprep.subr.mxu0 0.0
      %3909 = vmatpush1.msra.mxu0 0.0
      %3910 = vmatprep.subr.mxu0 0.0
      %3911 = vmatpush1.msra.mxu0 0.0
      %3912 = vmatprep.subr.mxu0 0.0
      %3913 = vmatpush1.msra.mxu0 0.0
      %3914 = vmatprep.subr.mxu0 0.0
      %3915 = vmatpush1.msra.mxu0 0.0
      %3916 = vmatprep.subr.mxu0 0.0
      %3917 = vmatpush1.msra.mxu0 0.0
      %3918 = vmatprep.subr.mxu0 0.0
      %3919 = vmatpush1.msra.mxu0 %v3626
      %3920 = vmatprep.subr.mxu0 0.0
      %3921 = vmatpush1.msra.mxu0 %v3625
      %3922 = vmatprep.subr.mxu0 0.0
      %3923 = vmatpush2.msra.mxu0 0.0
      %3924 = vmatprep.subr.mxu0 0.0
      %3925 = vmatpush2.msra.mxu0 0.0
      %3926 = vmatprep.subr.mxu0 0.0
      %3927 = vmatpush2.msra.mxu0 0.0
      %3928 = vmatprep.subr.mxu0 0.0
      %3929 = vmatpush2.msra.mxu0 0.0
      %3930 = vmatprep.subr.mxu0 0.0
      %3931 = vmatpush2.msra.mxu0 0.0
      %3932 = vmatprep.subr.mxu0 0.0
      %3933 = vmatpush2.msra.mxu0 0.0
      %3934 = vmatprep.subr.mxu0 0.0
      %3935 = vmatpush2.msra.mxu0 0.0
      %3936 = vmatprep.subr.mxu0 0.0
      %3937 = vmatpush2.msra.mxu0 0.0
      %3938 = vmatprep.subr.mxu0 0.0
      %3939 = vmatpush2.msra.mxu0 0.0
      %3940 = vmatprep.subr.mxu0 0.0
      %3941 = vmatpush2.msra.mxu0 0.0
      %3942 = vmatprep.subr.mxu0 0.0
      %3943 = vmatpush2.msra.mxu0 0.0
      %3944 = vmatprep.subr.mxu0 0.0
      %3945 = vmatpush2.msra.mxu0 0.0
      %3946 = vmatprep.subr.mxu0 0.0
      %3947 = vmatpush2.msra.mxu0 0.0
      %3948 = vmatprep.subr.mxu0 0.0
      %3949 = vmatpush2.msra.mxu0 0.0
      %3950 = vmatprep.subr.mxu0 0.0
      %3951 = vmatpush2.msra.mxu0 0.0
      %3952 = vmatprep.subr.mxu0 0.0
      %3953 = vmatpush2.msra.mxu0 0.0
      %3954 = vmatprep.mubr.f32.mxu0 0.0
      %3955 = vmatmul.mubr.f32.gmra.mxu0 %v3795
      %v3956 = vpop.f32.mrf.mxu0
      %v3957 = vadd.f32 0.0, %v3956
      %v3958 = vpop.f32.mrf.mxu0
      %3959 = vmatprep.mubr.f32.mxu0 0.0
      %3960 = vmatmul.mubr.f32.gmra.mxu0 %v3798
      %v3961 = vpop.f32.mrf.mxu0
      %v3962 = vadd.f32 0.0, %v3961
      %v3963 = vpop.f32.mrf.mxu0
      %3964 = vmatprep.mubr.f32.mxu0 0.0
      %3965 = vmatmul.mubr.f32.gmra.mxu0 %v3801
      %v3966 = vpop.f32.mrf.mxu0
      %v3967 = vadd.f32 0.0, %v3966
      %v3968 = vpop.f32.mrf.mxu0
      %3969 = vmatprep.mubr.f32.mxu0 0.0
      %3970 = vmatmul.mubr.f32.gmra.mxu0 %v3804
      %v3971 = vpop.f32.mrf.mxu0
      %v3972 = vadd.f32 0.0, %v3971
      %v3973 = vpop.f32.mrf.mxu0
      %3974 = vmatprep.mubr.f32.mxu0 0.0
      %3975 = vmatmul.mubr.f32.gmra.mxu0 %v3807
      %v3976 = vpop.f32.mrf.mxu0
      %v3977 = vadd.f32 0.0, %v3976
      %v3978 = vpop.f32.mrf.mxu0
      %3979 = vmatprep.mubr.f32.mxu0 0.0
      %3980 = vmatmul.mubr.f32.gmra.mxu0 %v3810
      %v3981 = vpop.f32.mrf.mxu0
      %v3982 = vadd.f32 0.0, %v3981
      %v3983 = vpop.f32.mrf.mxu0
      %3984 = vmatprep.mubr.f32.mxu0 0.0
      %3985 = vmatmul.mubr.f32.gmra.mxu0 %v3813
      %v3986 = vpop.f32.mrf.mxu0
      %v3987 = vadd.f32 0.0, %v3986
      %v3988 = vpop.f32.mrf.mxu0
      %3989 = vmatprep.mubr.f32.mxu0 0.0
      %3990 = vmatmul.mubr.f32.gmra.mxu0 %v3816
      %v3991 = vpop.f32.mrf.mxu0
      %v3992 = vadd.f32 0.0, %v3991
      %v3993 = vpop.f32.mrf.mxu0
      %3994 = vmatprep.mubr.f32.mxu0 0.0
      %3995 = vmatmul.mubr.f32.gmra.mxu0 %v3819
      %v3996 = vpop.f32.mrf.mxu0
      %v3997 = vadd.f32 0.0, %v3996
      %v3998 = vpop.f32.mrf.mxu0
      %3999 = vmatprep.mubr.f32.mxu0 0.0
      %4000 = vmatmul.mubr.f32.gmra.mxu0 %v3822
      %v4001 = vpop.f32.mrf.mxu0
      %v4002 = vadd.f32 0.0, %v4001
      %v4003 = vpop.f32.mrf.mxu0
      %4004 = vmatprep.mubr.f32.mxu0 0.0
      %4005 = vmatmul.mubr.f32.gmra.mxu0 %v3825
      %v4006 = vpop.f32.mrf.mxu0
      %v4007 = vadd.f32 0.0, %v4006
      %v4008 = vpop.f32.mrf.mxu0
      %4009 = vmatprep.mubr.f32.mxu0 0.0
      %4010 = vmatmul.mubr.f32.gmra.mxu0 %v3828
      %v4011 = vpop.f32.mrf.mxu0
      %v4012 = vadd.f32 0.0, %v4011
      %v4013 = vpop.f32.mrf.mxu0
      %4014 = vmatprep.mubr.f32.mxu0 0.0
      %4015 = vmatmul.mubr.f32.gmra.mxu0 %v3831
      %v4016 = vpop.f32.mrf.mxu0
      %v4017 = vadd.f32 0.0, %v4016
      %v4018 = vpop.f32.mrf.mxu0
      %4019 = vmatprep.mubr.f32.mxu0 0.0
      %4020 = vmatmul.mubr.f32.gmra.mxu0 %v3834
      %v4021 = vpop.f32.mrf.mxu0
      %v4022 = vadd.f32 0.0, %v4021
      %v4023 = vpop.f32.mrf.mxu0
      %4024 = vmatprep.mubr.f32.mxu0 0.0
      %4025 = vmatmul.mubr.f32.gmra.mxu0 %v3837
      %v4026 = vpop.f32.mrf.mxu0
      %v4027 = vadd.f32 0.0, %v4026
      %v4028 = vpop.f32.mrf.mxu0
      %4029 = vmatprep.mubr.f32.mxu0 0.0
      %4030 = vmatmul.mubr.f32.gmra.mxu0 %v3840
      %v4031 = vpop.f32.mrf.mxu0
      %v4032 = vadd.f32 0.0, %v4031
      %v4033 = vpop.f32.mrf.mxu0
      %4034 = vmatprep.mubr.f32.mxu0 0.0
      %4035 = vmatmul.mubr.f32.gmra.mxu0 %v3843
      %v4036 = vpop.f32.mrf.mxu0
      %v4037 = vadd.f32 0.0, %v4036
      %v4038 = vpop.f32.mrf.mxu0
      %4039 = vmatprep.mubr.f32.mxu0 0.0
      %4040 = vmatmul.mubr.f32.gmra.mxu0 %v3846
      %v4041 = vpop.f32.mrf.mxu0
      %v4042 = vadd.f32 0.0, %v4041
      %v4043 = vpop.f32.mrf.mxu0
      %4044 = vmatprep.mubr.f32.mxu0 0.0
      %4045 = vmatmul.mubr.f32.gmra.mxu0 %v3849
      %v4046 = vpop.f32.mrf.mxu0
      %v4047 = vadd.f32 0.0, %v4046
      %v4048 = vpop.f32.mrf.mxu0
      %4049 = vmatprep.mubr.f32.mxu0 0.0
      %4050 = vmatmul.mubr.f32.gmra.mxu0 %v3852
      %v4051 = vpop.f32.mrf.mxu0
      %v4052 = vadd.f32 0.0, %v4051
      %v4053 = vpop.f32.mrf.mxu0
      %4054 = vmatprep.mubr.f32.mxu0 0.0
      %4055 = vmatmul.mubr.f32.gmra.mxu0 %v3855
      %v4056 = vpop.f32.mrf.mxu0
      %v4057 = vadd.f32 0.0, %v4056
      %v4058 = vpop.f32.mrf.mxu0
      %4059 = vmatprep.mubr.f32.mxu0 0.0
      %4060 = vmatmul.mubr.f32.gmra.mxu0 %v3858
      %v4061 = vpop.f32.mrf.mxu0
      %v4062 = vadd.f32 0.0, %v4061
      %v4063 = vpop.f32.mrf.mxu0
      %4064 = vmatprep.mubr.f32.mxu0 0.0
      %4065 = vmatmul.mubr.f32.gmra.mxu0 %v3861
      %v4066 = vpop.f32.mrf.mxu0
      %v4067 = vadd.f32 0.0, %v4066
      %v4068 = vpop.f32.mrf.mxu0
      %4069 = vmatprep.mubr.f32.mxu0 0.0
      %4070 = vmatmul.mubr.f32.gmra.mxu0 %v3864
      %v4071 = vpop.f32.mrf.mxu0
      %v4072 = vadd.f32 0.0, %v4071
      %v4073 = vpop.f32.mrf.mxu0
      %4074 = vmatprep.mubr.f32.mxu0 0.0
      %4075 = vmatmul.mubr.f32.gmra.mxu0 %v3867
      %v4076 = vpop.f32.mrf.mxu0
      %v4077 = vadd.f32 0.0, %v4076
      %v4078 = vpop.f32.mrf.mxu0
      %4079 = vmatprep.mubr.f32.mxu0 0.0
      %4080 = vmatmul.mubr.f32.gmra.mxu0 %v3870
      %v4081 = vpop.f32.mrf.mxu0
      %v4082 = vadd.f32 0.0, %v4081
      %v4083 = vpop.f32.mrf.mxu0
      %4084 = vmatprep.mubr.f32.mxu0 0.0
      %4085 = vmatmul.mubr.f32.gmra.mxu0 %v3873
      %v4086 = vpop.f32.mrf.mxu0
      %v4087 = vadd.f32 0.0, %v4086
      %v4088 = vpop.f32.mrf.mxu0
      %4089 = vmatprep.mubr.f32.mxu0 0.0
      %4090 = vmatmul.mubr.f32.gmra.mxu0 %v3876
      %v4091 = vpop.f32.mrf.mxu0
      %v4092 = vadd.f32 0.0, %v4091
      %v4093 = vpop.f32.mrf.mxu0
      %4094 = vmatprep.mubr.f32.mxu0 0.0
      %4095 = vmatmul.mubr.f32.gmra.mxu0 %v3879
      %v4096 = vpop.f32.mrf.mxu0
      %v4097 = vadd.f32 0.0, %v4096
      %v4098 = vpop.f32.mrf.mxu0
      %4099 = vmatprep.mubr.f32.mxu0 0.0
      %4100 = vmatmul.mubr.f32.gmra.mxu0 %v3882
      %v4101 = vpop.f32.mrf.mxu0
      %v4102 = vadd.f32 0.0, %v4101
      %v4103 = vpop.f32.mrf.mxu0
      %4104 = vmatprep.mubr.f32.mxu0 0.0
      %4105 = vmatmul.mubr.f32.gmra.mxu0 %v3885
      %v4106 = vpop.f32.mrf.mxu0
      %v4107 = vadd.f32 0.0, %v4106
      %v4108 = vpop.f32.mrf.mxu0
      %4109 = vmatprep.mubr.f32.mxu0 0.0
      %4110 = vmatmul.mubr.f32.gmra.mxu0 %v3888
      %v4111 = vpop.f32.mrf.mxu0
      %v4112 = vadd.f32 0.0, %v4111
      %v4113 = vpop.f32.mrf.mxu0
      %4114 = vdwg.mxu0
      %v4115 = vmul.f32 %v3957, 2.0
      %v4116 = vmul.f32 %v3962, 2.0
      %v4117 = vmul.f32 %v3967, 2.0
      %v4118 = vmul.f32 %v3972, 2.0
      %v4119 = vmul.f32 %v3977, 2.0
      %v4120 = vmul.f32 %v3982, 2.0
      %v4121 = vmul.f32 %v3987, 2.0
      %v4122 = vmul.f32 %v3992, 2.0
      %v4123 = vmul.f32 %v3997, 2.0
      %v4124 = vmul.f32 %v4002, 2.0
      %v4125 = vmul.f32 %v4007, 2.0
      %v4126 = vmul.f32 %v4012, 2.0
      %v4127 = vmul.f32 %v4017, 2.0
      %v4128 = vmul.f32 %v4022, 2.0
      %v4129 = vmul.f32 %v4027, 2.0
      %v4130 = vmul.f32 %v4032, 2.0
      %v4131 = vmul.f32 %v4037, 2.0
      %v4132 = vmul.f32 %v4042, 2.0
      %v4133 = vmul.f32 %v4047, 2.0
      %v4134 = vmul.f32 %v4052, 2.0
      %v4135 = vmul.f32 %v4057, 2.0
      %v4136 = vmul.f32 %v4062, 2.0
      %v4137 = vmul.f32 %v4067, 2.0
      %v4138 = vmul.f32 %v4072, 2.0
      %v4139 = vmul.f32 %v4077, 2.0
      %v4140 = vmul.f32 %v4082, 2.0
      %v4141 = vmul.f32 %v4087, 2.0
      %v4142 = vmul.f32 %v4092, 2.0
      %v4143 = vmul.f32 %v4097, 2.0
      %v4144 = vmul.f32 %v4102, 2.0
      %v4145 = vmul.f32 %v4107, 2.0
      %v4146 = vmul.f32 %v4112, 2.0
      %v4147 = vsub.f32 %v3762, %v4115
      %v4148 = vsub.f32 %v3763, %v4116
      %v4149 = vsub.f32 %v3764, %v4117
      %v4150 = vsub.f32 %v3765, %v4118
      %v4151 = vsub.f32 %v3766, %v4119
      %v4152 = vsub.f32 %v3767, %v4120
      %v4153 = vsub.f32 %v3768, %v4121
      %v4154 = vsub.f32 %v3769, %v4122
      %v4155 = vsub.f32 %v3770, %v4123
      %v4156 = vsub.f32 %v3771, %v4124
      %v4157 = vsub.f32 %v3772, %v4125
      %v4158 = vsub.f32 %v3773, %v4126
      %v4159 = vsub.f32 %v3774, %v4127
      %v4160 = vsub.f32 %v3775, %v4128
      %v4161 = vsub.f32 %v3776, %v4129
      %v4162 = vsub.f32 %v3777, %v4130
      %v4163 = vsub.f32 %v3778, %v4131
      %v4164 = vsub.f32 %v3779, %v4132
      %v4165 = vsub.f32 %v3780, %v4133
      %v4166 = vsub.f32 %v3781, %v4134
      %v4167 = vsub.f32 %v3782, %v4135
      %v4168 = vsub.f32 %v3783, %v4136
      %v4169 = vsub.f32 %v3784, %v4137
      %v4170 = vsub.f32 %v3785, %v4138
      %v4171 = vsub.f32 %v3786, %v4139
      %v4172 = vsub.f32 %v3787, %v4140
      %v4173 = vsub.f32 %v3788, %v4141
      %v4174 = vsub.f32 %v3789, %v4142
      %v4175 = vsub.f32 %v3790, %v4143
      %v4176 = vsub.f32 %v3791, %v4144
      %v4177 = vsub.f32 %v3792, %v4145
      %v4178 = vsub.f32 %v3793, %v4146
      %v4179 = vmax.f32 %v4147, 0.0
      %v4180 = vmax.f32 %v4148, 0.0
      %v4181 = vmax.f32 %v4149, 0.0
      %v4182 = vmax.f32 %v4150, 0.0
      %v4183 = vmax.f32 %v4151, 0.0
      %v4184 = vmax.f32 %v4152, 0.0
      %v4185 = vmax.f32 %v4153, 0.0
      %v4186 = vmax.f32 %v4154, 0.0
      %v4187 = vmax.f32 %v4155, 0.0
      %v4188 = vmax.f32 %v4156, 0.0
      %v4189 = vmax.f32 %v4157, 0.0
      %v4190 = vmax.f32 %v4158, 0.0
      %v4191 = vmax.f32 %v4159, 0.0
      %v4192 = vmax.f32 %v4160, 0.0
      %v4193 = vmax.f32 %v4161, 0.0
      %v4194 = vmax.f32 %v4162, 0.0
      %v4195 = vmax.f32 %v4163, 0.0
      %v4196 = vmax.f32 %v4164, 0.0
      %v4197 = vmax.f32 %v4165, 0.0
      %v4198 = vmax.f32 %v4166, 0.0
      %v4199 = vmax.f32 %v4167, 0.0
      %v4200 = vmax.f32 %v4168, 0.0
      %v4201 = vmax.f32 %v4169, 0.0
      %v4202 = vmax.f32 %v4170, 0.0
      %v4203 = vmax.f32 %v4171, 0.0
      %v4204 = vmax.f32 %v4172, 0.0
      %v4205 = vmax.f32 %v4173, 0.0
      %v4206 = vmax.f32 %v4174, 0.0
      %v4207 = vmax.f32 %v4175, 0.0
      %v4208 = vmax.f32 %v4176, 0.0
      %v4209 = vmax.f32 %v4177, 0.0
      %v4210 = vmax.f32 %v4178, 0.0
      %v4211 = vadd.f32 %v4179, 1.0
      %v4212 = vadd.f32 %v4180, 1.0
      %v4213 = vadd.f32 %v4181, 1.0
      %v4214 = vadd.f32 %v4182, 1.0
      %v4215 = vadd.f32 %v4183, 1.0
      %v4216 = vadd.f32 %v4184, 1.0
      %v4217 = vadd.f32 %v4185, 1.0
      %v4218 = vadd.f32 %v4186, 1.0
      %v4219 = vadd.f32 %v4187, 1.0
      %v4220 = vadd.f32 %v4188, 1.0
      %v4221 = vadd.f32 %v4189, 1.0
      %v4222 = vadd.f32 %v4190, 1.0
      %v4223 = vadd.f32 %v4191, 1.0
      %v4224 = vadd.f32 %v4192, 1.0
      %v4225 = vadd.f32 %v4193, 1.0
      %v4226 = vadd.f32 %v4194, 1.0
      %v4227 = vadd.f32 %v4195, 1.0
      %v4228 = vadd.f32 %v4196, 1.0
      %v4229 = vadd.f32 %v4197, 1.0
      %v4230 = vadd.f32 %v4198, 1.0
      %v4231 = vadd.f32 %v4199, 1.0
      %v4232 = vadd.f32 %v4200, 1.0
      %v4233 = vadd.f32 %v4201, 1.0
      %v4234 = vadd.f32 %v4202, 1.0
      %v4235 = vadd.f32 %v4203, 1.0
      %v4236 = vadd.f32 %v4204, 1.0
      %v4237 = vadd.f32 %v4205, 1.0
      %v4238 = vadd.f32 %v4206, 1.0
      %v4239 = vadd.f32 %v4207, 1.0
      %v4240 = vadd.f32 %v4208, 1.0
      %v4241 = vadd.f32 %v4209, 1.0
      %v4242 = vadd.f32 %v4210, 1.0
      %v4243 = vrcp.pop %v4211
      %v4244 = vmul.f32 1.0, %v4243
      %v4245 = vrcp.pop %v4212
      %v4246 = vmul.f32 1.0, %v4245
      %v4247 = vrcp.pop %v4213
      %v4248 = vmul.f32 1.0, %v4247
      %v4249 = vrcp.pop %v4214
      %v4250 = vmul.f32 1.0, %v4249
      %v4251 = vrcp.pop %v4215
      %v4252 = vmul.f32 1.0, %v4251
      %v4253 = vrcp.pop %v4216
      %v4254 = vmul.f32 1.0, %v4253
      %v4255 = vrcp.pop %v4217
      %v4256 = vmul.f32 1.0, %v4255
      %v4257 = vrcp.pop %v4218
      %v4258 = vmul.f32 1.0, %v4257
      %v4259 = vrcp.pop %v4219
      %v4260 = vmul.f32 1.0, %v4259
      %v4261 = vrcp.pop %v4220
      %v4262 = vmul.f32 1.0, %v4261
      %v4263 = vrcp.pop %v4221
      %v4264 = vmul.f32 1.0, %v4263
      %v4265 = vrcp.pop %v4222
      %v4266 = vmul.f32 1.0, %v4265
      %v4267 = vrcp.pop %v4223
      %v4268 = vmul.f32 1.0, %v4267
      %v4269 = vrcp.pop %v4224
      %v4270 = vmul.f32 1.0, %v4269
      %v4271 = vrcp.pop %v4225
      %v4272 = vmul.f32 1.0, %v4271
      %v4273 = vrcp.pop %v4226
      %v4274 = vmul.f32 1.0, %v4273
      %v4275 = vrcp.pop %v4227
      %v4276 = vmul.f32 1.0, %v4275
      %v4277 = vrcp.pop %v4228
      %v4278 = vmul.f32 1.0, %v4277
      %v4279 = vrcp.pop %v4229
      %v4280 = vmul.f32 1.0, %v4279
      %v4281 = vrcp.pop %v4230
      %v4282 = vmul.f32 1.0, %v4281
      %v4283 = vrcp.pop %v4231
      %v4284 = vmul.f32 1.0, %v4283
      %v4285 = vrcp.pop %v4232
      %v4286 = vmul.f32 1.0, %v4285
      %v4287 = vrcp.pop %v4233
      %v4288 = vmul.f32 1.0, %v4287
      %v4289 = vrcp.pop %v4234
      %v4290 = vmul.f32 1.0, %v4289
      %v4291 = vrcp.pop %v4235
      %v4292 = vmul.f32 1.0, %v4291
      %v4293 = vrcp.pop %v4236
      %v4294 = vmul.f32 1.0, %v4293
      %v4295 = vrcp.pop %v4237
      %v4296 = vmul.f32 1.0, %v4295
      %v4297 = vrcp.pop %v4238
      %v4298 = vmul.f32 1.0, %v4297
      %v4299 = vrcp.pop %v4239
      %v4300 = vmul.f32 1.0, %v4299
      %v4301 = vrcp.pop %v4240
      %v4302 = vmul.f32 1.0, %v4301
      %v4303 = vrcp.pop %v4241
      %v4304 = vmul.f32 1.0, %v4303
      %v4305 = vrcp.pop %v4242
      %v4306 = vmul.f32 1.0, %v4305
      %vm4307 = vcmask 64512
      %v4308 = vsel %vm4307, %v4244, 0.0
      %4309 = vadd.xlane.f32.xlu0 %v4308
      %v4310 = vpop.xlane.xlu0 %4309
      %v4311 = vsel %vm4307, %v4246, 0.0
      %4312 = vadd.xlane.f32.xlu0 %v4311
      %v4313 = vpop.xlane.xlu0 %4312
      %v4314 = vsel %vm4307, %v4248, 0.0
      %4315 = vadd.xlane.f32.xlu0 %v4314
      %v4316 = vpop.xlane.xlu0 %4315
      %v4317 = vsel %vm4307, %v4250, 0.0
      %4318 = vadd.xlane.f32.xlu0 %v4317
      %v4319 = vpop.xlane.xlu0 %4318
      %v4320 = vsel %vm4307, %v4252, 0.0
      %4321 = vadd.xlane.f32.xlu0 %v4320
      %v4322 = vpop.xlane.xlu0 %4321
      %v4323 = vsel %vm4307, %v4254, 0.0
      %4324 = vadd.xlane.f32.xlu0 %v4323
      %v4325 = vpop.xlane.xlu0 %4324
      %v4326 = vsel %vm4307, %v4256, 0.0
      %4327 = vadd.xlane.f32.xlu0 %v4326
      %v4328 = vpop.xlane.xlu0 %4327
      %v4329 = vsel %vm4307, %v4258, 0.0
      %4330 = vadd.xlane.f32.xlu0 %v4329
      %v4331 = vpop.xlane.xlu0 %4330
      %v4332 = vsel %vm4307, %v4260, 0.0
      %4333 = vadd.xlane.f32.xlu0 %v4332
      %v4334 = vpop.xlane.xlu0 %4333
      %v4335 = vsel %vm4307, %v4262, 0.0
      %4336 = vadd.xlane.f32.xlu0 %v4335
      %v4337 = vpop.xlane.xlu0 %4336
      %v4338 = vsel %vm4307, %v4264, 0.0
      %4339 = vadd.xlane.f32.xlu0 %v4338
      %v4340 = vpop.xlane.xlu0 %4339
      %v4341 = vsel %vm4307, %v4266, 0.0
      %4342 = vadd.xlane.f32.xlu0 %v4341
      %v4343 = vpop.xlane.xlu0 %4342
      %v4344 = vsel %vm4307, %v4268, 0.0
      %4345 = vadd.xlane.f32.xlu0 %v4344
      %v4346 = vpop.xlane.xlu0 %4345
      %v4347 = vsel %vm4307, %v4270, 0.0
      %4348 = vadd.xlane.f32.xlu0 %v4347
      %v4349 = vpop.xlane.xlu0 %4348
      %v4350 = vsel %vm4307, %v4272, 0.0
      %4351 = vadd.xlane.f32.xlu0 %v4350
      %v4352 = vpop.xlane.xlu0 %4351
      %v4353 = vsel %vm4307, %v4274, 0.0
      %4354 = vadd.xlane.f32.xlu0 %v4353
      %v4355 = vpop.xlane.xlu0 %4354
      %v4356 = vsel %vm4307, %v4276, 0.0
      %4357 = vadd.xlane.f32.xlu0 %v4356
      %v4358 = vpop.xlane.xlu0 %4357
      %v4359 = vsel %vm4307, %v4278, 0.0
      %4360 = vadd.xlane.f32.xlu0 %v4359
      %v4361 = vpop.xlane.xlu0 %4360
      %v4362 = vsel %vm4307, %v4280, 0.0
      %4363 = vadd.xlane.f32.xlu0 %v4362
      %v4364 = vpop.xlane.xlu0 %4363
      %v4365 = vsel %vm4307, %v4282, 0.0
      %4366 = vadd.xlane.f32.xlu0 %v4365
      %v4367 = vpop.xlane.xlu0 %4366
      %v4368 = vsel %vm4307, %v4284, 0.0
      %4369 = vadd.xlane.f32.xlu0 %v4368
      %v4370 = vpop.xlane.xlu0 %4369
      %v4371 = vsel %vm4307, %v4286, 0.0
      %4372 = vadd.xlane.f32.xlu0 %v4371
      %v4373 = vpop.xlane.xlu0 %4372
      %v4374 = vsel %vm4307, %v4288, 0.0
      %4375 = vadd.xlane.f32.xlu0 %v4374
      %v4376 = vpop.xlane.xlu0 %4375
      %v4377 = vsel %vm4307, %v4290, 0.0
      %4378 = vadd.xlane.f32.xlu0 %v4377
      %v4379 = vpop.xlane.xlu0 %4378
      %v4380 = vsel %vm4307, %v4292, 0.0
      %4381 = vadd.xlane.f32.xlu0 %v4380
      %v4382 = vpop.xlane.xlu0 %4381
      %v4383 = vsel %vm4307, %v4294, 0.0
      %4384 = vadd.xlane.f32.xlu0 %v4383
      %v4385 = vpop.xlane.xlu0 %4384
      %v4386 = vsel %vm4307, %v4296, 0.0
      %4387 = vadd.xlane.f32.xlu0 %v4386
      %v4388 = vpop.xlane.xlu0 %4387
      %v4389 = vsel %vm4307, %v4298, 0.0
      %4390 = vadd.xlane.f32.xlu0 %v4389
      %v4391 = vpop.xlane.xlu0 %4390
      %v4392 = vsel %vm4307, %v4300, 0.0
      %4393 = vadd.xlane.f32.xlu0 %v4392
      %v4394 = vpop.xlane.xlu0 %4393
      %v4395 = vsel %vm4307, %v4302, 0.0
      %4396 = vadd.xlane.f32.xlu0 %v4395
      %v4397 = vpop.xlane.xlu0 %4396
      %v4398 = vsel %vm4307, %v4304, 0.0
      %4399 = vadd.xlane.f32.xlu0 %v4398
      %v4400 = vpop.xlane.xlu0 %4399
      %v4401 = vsel %vm4307, %v4306, 0.0
      %4402 = vadd.xlane.f32.xlu0 %v4401
      %v4403 = vpop.xlane.xlu0 %4402
      %v4404 = vrcp.pop %v4310
      %v4405 = vmul.f32 %v4244, %v4404
      %v4406 = vrcp.pop %v4313
      %v4407 = vmul.f32 %v4246, %v4406
      %v4408 = vrcp.pop %v4316
      %v4409 = vmul.f32 %v4248, %v4408
      %v4410 = vrcp.pop %v4319
      %v4411 = vmul.f32 %v4250, %v4410
      %v4412 = vrcp.pop %v4322
      %v4413 = vmul.f32 %v4252, %v4412
      %v4414 = vrcp.pop %v4325
      %v4415 = vmul.f32 %v4254, %v4414
      %v4416 = vrcp.pop %v4328
      %v4417 = vmul.f32 %v4256, %v4416
      %v4418 = vrcp.pop %v4331
      %v4419 = vmul.f32 %v4258, %v4418
      %v4420 = vrcp.pop %v4334
      %v4421 = vmul.f32 %v4260, %v4420
      %v4422 = vrcp.pop %v4337
      %v4423 = vmul.f32 %v4262, %v4422
      %v4424 = vrcp.pop %v4340
      %v4425 = vmul.f32 %v4264, %v4424
      %v4426 = vrcp.pop %v4343
      %v4427 = vmul.f32 %v4266, %v4426
      %v4428 = vrcp.pop %v4346
      %v4429 = vmul.f32 %v4268, %v4428
      %v4430 = vrcp.pop %v4349
      %v4431 = vmul.f32 %v4270, %v4430
      %v4432 = vrcp.pop %v4352
      %v4433 = vmul.f32 %v4272, %v4432
      %v4434 = vrcp.pop %v4355
      %v4435 = vmul.f32 %v4274, %v4434
      %v4436 = vrcp.pop %v4358
      %v4437 = vmul.f32 %v4276, %v4436
      %v4438 = vrcp.pop %v4361
      %v4439 = vmul.f32 %v4278, %v4438
      %v4440 = vrcp.pop %v4364
      %v4441 = vmul.f32 %v4280, %v4440
      %v4442 = vrcp.pop %v4367
      %v4443 = vmul.f32 %v4282, %v4442
      %v4444 = vrcp.pop %v4370
      %v4445 = vmul.f32 %v4284, %v4444
      %v4446 = vrcp.pop %v4373
      %v4447 = vmul.f32 %v4286, %v4446
      %v4448 = vrcp.pop %v4376
      %v4449 = vmul.f32 %v4288, %v4448
      %v4450 = vrcp.pop %v4379
      %v4451 = vmul.f32 %v4290, %v4450
      %v4452 = vrcp.pop %v4382
      %v4453 = vmul.f32 %v4292, %v4452
      %v4454 = vrcp.pop %v4385
      %v4455 = vmul.f32 %v4294, %v4454
      %v4456 = vrcp.pop %v4388
      %v4457 = vmul.f32 %v4296, %v4456
      %v4458 = vrcp.pop %v4391
      %v4459 = vmul.f32 %v4298, %v4458
      %v4460 = vrcp.pop %v4394
      %v4461 = vmul.f32 %v4300, %v4460
      %v4462 = vrcp.pop %v4397
      %v4463 = vmul.f32 %v4302, %v4462
      %v4464 = vrcp.pop %v4400
      %v4465 = vmul.f32 %v4304, %v4464
      %v4466 = vrcp.pop %v4403
      %v4467 = vmul.f32 %v4306, %v4466
      %4468 = vst.msk [vmem:[%s872] sm:$0xff] %vm4307, %v4405
      %4469 = vst.msk [vmem:[%s872 + $0x8] sm:$0xff] %vm4307, %v4407
      %4470 = vst.msk [vmem:[%s872 + $0x10] sm:$0xff] %vm4307, %v4409
      %4471 = vst.msk [vmem:[%s872 + $0x18] sm:$0xff] %vm4307, %v4411
      %4472 = vst.msk [vmem:[%s872 + $0x20] sm:$0xff] %vm4307, %v4413
      %4473 = vst.msk [vmem:[%s872 + $0x28] sm:$0xff] %vm4307, %v4415
      %4474 = vst.msk [vmem:[%s872 + $0x30] sm:$0xff] %vm4307, %v4417
      %4475 = vst.msk [vmem:[%s872 + $0x38] sm:$0xff] %vm4307, %v4419
      %4476 = vst.msk [vmem:[%s872 + $0x40] sm:$0xff] %vm4307, %v4421
      %4477 = vst.msk [vmem:[%s872 + $0x48] sm:$0xff] %vm4307, %v4423
      %4478 = vst.msk [vmem:[%s872 + $0x50] sm:$0xff] %vm4307, %v4425
      %4479 = vst.msk [vmem:[%s872 + $0x58] sm:$0xff] %vm4307, %v4427
      %4480 = vst.msk [vmem:[%s872 + $0x60] sm:$0xff] %vm4307, %v4429
      %4481 = vst.msk [vmem:[%s872 + $0x68] sm:$0xff] %vm4307, %v4431
      %4482 = vst.msk [vmem:[%s872 + $0x70] sm:$0xff] %vm4307, %v4433
      %4483 = vst.msk [vmem:[%s872 + $0x78] sm:$0xff] %vm4307, %v4435
      %4484 = vst.msk [vmem:[%s872 + $0x80] sm:$0xff] %vm4307, %v4437
      %4485 = vst.msk [vmem:[%s872 + $0x88] sm:$0xff] %vm4307, %v4439
      %4486 = vst.msk [vmem:[%s872 + $0x90] sm:$0xff] %vm4307, %v4441
      %4487 = vst.msk [vmem:[%s872 + $0x98] sm:$0xff] %vm4307, %v4443
      %4488 = vst.msk [vmem:[%s872 + $0xa0] sm:$0xff] %vm4307, %v4445
      %4489 = vst.msk [vmem:[%s872 + $0xa8] sm:$0xff] %vm4307, %v4447
      %4490 = vst.msk [vmem:[%s872 + $0xb0] sm:$0xff] %vm4307, %v4449
      %4491 = vst.msk [vmem:[%s872 + $0xb8] sm:$0xff] %vm4307, %v4451
      %4492 = vst.msk [vmem:[%s872 + $0xc0] sm:$0xff] %vm4307, %v4453
      %4493 = vst.msk [vmem:[%s872 + $0xc8] sm:$0xff] %vm4307, %v4455
      %4494 = vst.msk [vmem:[%s872 + $0xd0] sm:$0xff] %vm4307, %v4457
      %4495 = vst.msk [vmem:[%s872 + $0xd8] sm:$0xff] %vm4307, %v4459
      %4496 = vst.msk [vmem:[%s872 + $0xe0] sm:$0xff] %vm4307, %v4461
      %4497 = vst.msk [vmem:[%s872 + $0xe8] sm:$0xff] %vm4307, %v4463
      %4498 = vst.msk [vmem:[%s872 + $0xf0] sm:$0xff] %vm4307, %v4465
      %4499 = vst.msk [vmem:[%s872 + $0xf8] sm:$0xff] %vm4307, %v4467
      %s4500 = smul.u32 32, %s38
      %p4501 = scmp.lt.s32.totalorder %s4500, 63
      %s4502 = scalar_select %p4501, %s4500, 63
      %s4503 = smul.addr %s4502, 8
      %s4504 = scalar_lea.vmem %s20, %s4503
      %s4505 = smul.u32 32, %s38
      %p4506 = scmp.lt.s32.totalorder %s4505, 63
      %s4507 = scalar_select %p4506, %s4505, 63
      %s4508 = smul.addr %s4507, 8
      %s4509 = scalar_lea.vmem %s21, %s4508
      %s4510 = smul.u32 32, %s38
      %p4511 = scmp.lt.s32.totalorder %s4510, 63
      %s4512 = scalar_select %p4511, %s4510, 63
      %s4513 = smul.addr %s4512, 8
      %s4514 = scalar_lea.vmem %s22, %s4513
      %s4515 = smul.u32 32, %s38
      %p4516 = scmp.lt.s32.totalorder %s4515, 63
      %s4517 = scalar_select %p4516, %s4515, 63
      %s4518 = smul.addr %s4517, 8
      %s4519 = scalar_lea.vmem %s23, %s4518
      %s4520 = smul.u32 32, %s38
      %p4521 = scmp.lt.s32.totalorder %s4520, 63
      %s4522 = scalar_select %p4521, %s4520, 63
      %s4523 = smul.addr %s4522, 8
      %s4524 = scalar_lea.vmem %s24, %s4523
      %s4525 = smul.u32 32, %s38
      %p4526 = scmp.lt.s32.totalorder %s4525, 63
      %s4527 = scalar_select %p4526, %s4525, 63
      %s4528 = smul.addr %s4527, 4
      %s4529 = scalar_lea.vmem %s25, %s4528
      %s4530 = smul.u32 32, %s38
      %p4531 = scmp.lt.s32.totalorder %s4530, 63
      %s4532 = scalar_select %p4531, %s4530, 63
      %s4533 = smul.addr %s4532, 8
      %s4534 = scalar_lea.vmem %s26, %s4533
      // Predicated region
      $region101: #{tpu_custom_call.1} parent=99 // pred_check
        %p4535 = pneg %p481
      $region102: #{tpu_custom_call.1} parent=99 // pred_check_branch
        %4537 = sbr.rel (%p4535) target = $region104
      $region103: #{tpu_custom_call.1} parent=99 // pred_region
        %s4538 = smul.u32 32, %s38
      $region104: #{tpu_custom_call.1} parent=99 // pred_fallthru
        _
      // Predicated region
      $region105: #{tpu_custom_call.1} parent=99 // pred_check
        %p4539 = pneg %p507
      $region106: #{tpu_custom_call.1} parent=99 // pred_check_branch
        %4541 = sbr.rel (%p4539) target = $region108
      $region107: #{tpu_custom_call.1} parent=99 // pred_region
        %s4542 = smul.u32 32, %s38
      $region108: #{tpu_custom_call.1} parent=99 // pred_fallthru
        _
      // Predicated region
      $region109: #{tpu_custom_call.1} parent=99 // pred_check
        %p4543 = pneg %p533
      $region110: #{tpu_custom_call.1} parent=99 // pred_check_branch
        %4545 = sbr.rel (%p4543) target = $region112
      $region111: #{tpu_custom_call.1} parent=99 // pred_region
        %s4546 = smul.u32 32, %s38
      $region112: #{tpu_custom_call.1} parent=99 // pred_fallthru
        _
      // Predicated region
      $region113: #{tpu_custom_call.1} parent=99 // pred_check
        %p4547 = pneg %p559
      $region114: #{tpu_custom_call.1} parent=99 // pred_check_branch
        %4549 = sbr.rel (%p4547) target = $region116
      $region115: #{tpu_custom_call.1} parent=99 // pred_region
        %s4550 = smul.u32 32, %s38
      $region116: #{tpu_custom_call.1} parent=99 // pred_fallthru
        _
      // Predicated region
      $region117: #{tpu_custom_call.1} parent=99 // pred_check
        %p4551 = pneg %p585
      $region118: #{tpu_custom_call.1} parent=99 // pred_check_branch
        %4553 = sbr.rel (%p4551) target = $region120
      $region119: #{tpu_custom_call.1} parent=99 // pred_region
        %s4554 = smul.u32 32, %s38
      $region120: #{tpu_custom_call.1} parent=99 // pred_fallthru
        _
      // Predicated region
      $region121: #{tpu_custom_call.1} parent=99 // pred_check
        %p4555 = pneg %p611
      $region122: #{tpu_custom_call.1} parent=99 // pred_check_branch
        %4557 = sbr.rel (%p4555) target = $region124
      $region123: #{tpu_custom_call.1} parent=99 // pred_region
        %s4558 = smul.u32 32, %s38
      $region124: #{tpu_custom_call.1} parent=99 // pred_fallthru
        _
      // Predicated region
      $region125: #{tpu_custom_call.1} parent=99 // pred_check
        %p4559 = pneg %p637
      $region126: #{tpu_custom_call.1} parent=99 // pred_check_branch
        %4561 = sbr.rel (%p4559) target = $region128
      $region127: #{tpu_custom_call.1} parent=99 // pred_region
        %s4562 = smul.u32 32, %s38
      $region128: #{tpu_custom_call.1} parent=99 // pred_fallthru
        _
    $region100: #{tpu_custom_call.1} parent=5 // pred_fallthru
      _
    %p4563 = scmp.le.s32.totalorder 2, %s33
    // Predicated region
    $region129: #{tpu_custom_call.1} parent=5 // pred_check
      %p4564 = pneg %p4563
    $region130: #{tpu_custom_call.1} parent=5 // pred_check_branch
      %4566 = sbr.rel (%p4564) target = $region132
    $region131: #{tpu_custom_call.1} parent=5 // pred_region
      %s4567 = ssub.s32 %s33, 2
      // Predicated region
      $region133: #{tpu_custom_call.1} parent=131 // pred_check
        %p4568 = pneg %p487
      $region134: #{tpu_custom_call.1} parent=131 // pred_check_branch
        %4570 = sbr.rel (%p4568) target = $region136
      $region135: #{tpu_custom_call.1} parent=131 // pred_region
        %s4571 = smul.u32 32, %s39
        %p4572 = scmp.lt.s32.totalorder %s4571, 63
        %s4573 = scalar_select %p4572, %s4571, 63
        %s4574 = smul.addr %s4573, 8
        %s4575 = scalar_lea.vmem %s20, %s4574
      $region136: #{tpu_custom_call.1} parent=131 // pred_fallthru
        _
      // Predicated region
      $region137: #{tpu_custom_call.1} parent=131 // pred_check
        %p4576 = pneg %p513
      $region138: #{tpu_custom_call.1} parent=131 // pred_check_branch
        %4578 = sbr.rel (%p4576) target = $region140
      $region139: #{tpu_custom_call.1} parent=131 // pred_region
        %s4579 = smul.u32 32, %s39
        %p4580 = scmp.lt.s32.totalorder %s4579, 63
        %s4581 = scalar_select %p4580, %s4579, 63
        %s4582 = smul.addr %s4581, 8
        %s4583 = scalar_lea.vmem %s21, %s4582
      $region140: #{tpu_custom_call.1} parent=131 // pred_fallthru
        _
      // Predicated region
      $region141: #{tpu_custom_call.1} parent=131 // pred_check
        %p4584 = pneg %p539
      $region142: #{tpu_custom_call.1} parent=131 // pred_check_branch
        %4586 = sbr.rel (%p4584) target = $region144
      $region143: #{tpu_custom_call.1} parent=131 // pred_region
        %s4587 = smul.u32 32, %s39
        %p4588 = scmp.lt.s32.totalorder %s4587, 63
        %s4589 = scalar_select %p4588, %s4587, 63
        %s4590 = smul.addr %s4589, 8
        %s4591 = scalar_lea.vmem %s22, %s4590
      $region144: #{tpu_custom_call.1} parent=131 // pred_fallthru
        _
      // Predicated region
      $region145: #{tpu_custom_call.1} parent=131 // pred_check
        %p4592 = pneg %p565
      $region146: #{tpu_custom_call.1} parent=131 // pred_check_branch
        %4594 = sbr.rel (%p4592) target = $region148
      $region147: #{tpu_custom_call.1} parent=131 // pred_region
        %s4595 = smul.u32 32, %s39
        %p4596 = scmp.lt.s32.totalorder %s4595, 63
        %s4597 = scalar_select %p4596, %s4595, 63
        %s4598 = smul.addr %s4597, 8
        %s4599 = scalar_lea.vmem %s23, %s4598
      $region148: #{tpu_custom_call.1} parent=131 // pred_fallthru
        _
      // Predicated region
      $region149: #{tpu_custom_call.1} parent=131 // pred_check
        %p4600 = pneg %p591
      $region150: #{tpu_custom_call.1} parent=131 // pred_check_branch
        %4602 = sbr.rel (%p4600) target = $region152
      $region151: #{tpu_custom_call.1} parent=131 // pred_region
        %s4603 = smul.u32 32, %s39
        %p4604 = scmp.lt.s32.totalorder %s4603, 63
        %s4605 = scalar_select %p4604, %s4603, 63
        %s4606 = smul.addr %s4605, 8
        %s4607 = scalar_lea.vmem %s24, %s4606
      $region152: #{tpu_custom_call.1} parent=131 // pred_fallthru
        _
      // Predicated region
      $region153: #{tpu_custom_call.1} parent=131 // pred_check
        %p4608 = pneg %p617
      $region154: #{tpu_custom_call.1} parent=131 // pred_check_branch
        %4610 = sbr.rel (%p4608) target = $region156
      $region155: #{tpu_custom_call.1} parent=131 // pred_region
        %s4611 = smul.u32 32, %s39
        %p4612 = scmp.lt.s32.totalorder %s4611, 63
        %s4613 = scalar_select %p4612, %s4611, 63
        %s4614 = smul.addr %s4613, 4
        %s4615 = scalar_lea.vmem %s25, %s4614
      $region156: #{tpu_custom_call.1} parent=131 // pred_fallthru
        _
      // Predicated region
      $region157: #{tpu_custom_call.1} parent=131 // pred_check
        %p4616 = pneg %p643
      $region158: #{tpu_custom_call.1} parent=131 // pred_check_branch
        %4618 = sbr.rel (%p4616) target = $region160
      $region159: #{tpu_custom_call.1} parent=131 // pred_region
        %s4619 = smul.u32 32, %s39
        %p4620 = scmp.lt.s32.totalorder %s4619, 63
        %s4621 = scalar_select %p4620, %s4619, 63
        %s4622 = smul.addr %s4621, 8
        %s4623 = scalar_lea.vmem %s26, %s4622
      $region160: #{tpu_custom_call.1} parent=131 // pred_fallthru
        _
    $region132: #{tpu_custom_call.1} parent=5 // pred_fallthru
      _
  $region6: #{tpu_custom_call.1} parent=0 // loop_footer
    %s37 = sadd.s32 1, %s33
  $region7: #{tpu_custom_call.1} parent=0 // loop_footer_branch
    %32 = sbr.rel target = $region3
  $region8: #{tpu_custom_call.1} parent=0 // loop_exit
    _

</llo_original>
